<compile_context>
chip_gen: v7x
topology: tpu7x:2x2x1
jax: 0.10.0
libtpu: 0.0.40
codegen_flags: <defaults>
</compile_context>

<pallas_src>
import functools

import jax
import jax.numpy as jnp
from jax.experimental import pallas as pl
from jax.experimental.pallas import tpu as pltpu

# Layer sizes from the PyTorch module.
DIMS_ENC = [28 * 28, 128, 64, 12, 3]
DIMS_DEC = [3, 12, 64, 128, 28 * 28]

ENC_PAD = 8          # enc head padded from 3 to 8 lanes for an aligned store
_MIN_SPLIT = 128     # batches >= 2*_MIN_SPLIT are split into >= 2 grid steps


def autoencoder_kernel(x_ref,
                       w1, b1, w2, b2, w3, b3, w4p, b4p,      # encoder params
                       w45, b45, w6, b6, w7, b7, w8, b8,      # decoder params (layer 5 folded)
                       enc_ref, dec_ref):
    # x arrives as bf16 from the producer (astype is a no-op then); f32 inputs
    # are also accepted and cast here.
    x = x_ref[...].astype(jnp.bfloat16)

    # ---- encoder: Linear -> Tanh (x3) -> Linear ----
    # Layers 1/2 in bf16 on the MXU, f32 accumulation.
    h = jnp.tanh(jnp.dot(x, w1[...], preferred_element_type=jnp.float32) + b1[...])
    h = jnp.tanh(jnp.dot(h.astype(jnp.bfloat16), w2[...],
                         preferred_element_type=jnp.float32) + b2[...])
    h3 = jnp.tanh(jnp.dot(h, w3[...], preferred_element_type=jnp.float32) + b3[...])

    # enc head: w4p/b4p are zero-padded (12,8)/(1,8) on the host, so this is a
    # full lane-aligned block store; the wrapper slices the first 3 columns.
    enc_ref[...] = (jnp.dot(h3, w4p[...], preferred_element_type=jnp.float32)
                    + b4p[...]).astype(enc_ref.dtype)

    # ---- decoder: Linear -> Tanh (x3) -> Linear -> Sigmoid ----
    # Encoder layer 4 is folded into decoder layer 5 on the host
    # (w45 = w4@w5, b45 = b4@w5 + b5), skipping the degenerate K=3 MXU pass.
    h = jnp.tanh(jnp.dot(h3, w45[...], preferred_element_type=jnp.float32) + b45[...])
    h = jnp.tanh(jnp.dot(h, w6[...], preferred_element_type=jnp.float32) + b6[...])
    h = jnp.tanh(jnp.dot(h.astype(jnp.bfloat16), w7[...],
                         preferred_element_type=jnp.float32) + b7[...])
    # Layer 8 (128 -> 784): bf16 inputs, f32 accumulation; sigmoid in f32.
    dec = jax.nn.sigmoid(
        jnp.dot(h.astype(jnp.bfloat16), w8[...],
                preferred_element_type=jnp.float32) + b8[...])
    # bf16 store halves the dominant 784-wide HBM write stream.
    dec_ref[...] = dec.astype(dec_ref.dtype)
    # TODO(synk): on v7x, if the EUP ever binds at large tiles, evaluate the
    # sigmoid in bf16 directly; kept f32 here (portable, DMA-bound everywhere).


def init_params(key):
    """Deterministic PyTorch-Linear-style init: U(-1/sqrt(fan_in), 1/sqrt(fan_in))."""
    params = []
    dims = list(zip(DIMS_ENC[:-1], DIMS_ENC[1:])) + list(zip(DIMS_DEC[:-1], DIMS_DEC[1:]))
    for (fan_in, fan_out) in dims:
        key, kw, kb = jax.random.split(key, 3)
        bound = 1.0 / jnp.sqrt(jnp.float32(fan_in))
        w = jax.random.uniform(kw, (fan_in, fan_out), jnp.float32, -bound, bound)
        b = jax.random.uniform(kb, (1, fan_out), jnp.float32, -bound, bound)
        params.append((w, b))
    return params


def prepare_kernel_params(params):
    """One-time parameter preparation (call at load time, NOT inside the forward):
       * fold encoder layer 4 (12->3) into decoder layer 5 (3->12): exact,
       * zero-pad the enc head from 3 to ENC_PAD output lanes,
       * cast w1/w2/w7/w8 to bf16 (f32 accumulation stays in the kernel).
    """
    (w1, b1), (w2, b2), (w3, b3), (w4, b4) = params[:4]
    (w5, b5), (w6, b6), (w7, b7), (w8, b8) = params[4:]
    w45 = jnp.dot(w4, w5)            # (12, 12)
    b45 = jnp.dot(b4, w5) + b5       # (1, 12)
    w4p = jnp.pad(w4, ((0, 0), (0, ENC_PAD - w4.shape[1])))   # (12, 8)
    b4p = jnp.pad(b4, ((0, 0), (0, ENC_PAD - b4.shape[1])))   # (1, 8)
    return [
        w1.astype(jnp.bfloat16), b1,
        w2.astype(jnp.bfloat16), b2,
        w3, b3,
        w4p, b4p,
        w45, b45,
        w6, b6,
        w7.astype(jnp.bfloat16), b7,
        w8.astype(jnp.bfloat16), b8,
    ]


def _round_up(x, m):
    return (x + m - 1) // m * m


def _choose_tile(B, tile_cap):
    """Balanced batch tiles: cap padding waste and keep >= 2 grid steps for
    batches large enough to split (so both v7x TensorCores get work)."""
    n_tiles = pl.cdiv(B, tile_cap)
    if n_tiles == 1 and B >= 2 * _MIN_SPLIT:
        n_tiles = 2
    # multiple of 16: sublane packing for the bf16 x / dec tiles.
    return _round_up(pl.cdiv(B, n_tiles), 16)


@functools.partial(jax.jit, static_argnames=("tile_b",))
def autoencoder_forward(x, kparams, *, tile_b=1024):
    """x: (B, 784) in bf16 (preferred) or f32. kparams: prepare_kernel_params(...)."""
    B, D = x.shape
    assert D == 28 * 28

    tb = _choose_tile(B, tile_b)
    Bp = pl.cdiv(B, tb) * tb
    x_p = jnp.pad(x, ((0, Bp - B), (0, 0))) if Bp != B else x

    # Weights/biases are grid-invariant: single resident VMEM copy
    # (no block_shape => whole array, no double-buffering).
    weight_spec = pl.BlockSpec(memory_space=pltpu.MemorySpace.VMEM)
    in_specs = [pl.BlockSpec((tb, D), lambda i: (i, 0))] + [weight_spec] * len(kparams)

    out_specs = [
        pl.BlockSpec((tb, ENC_PAD), lambda i: (i, 0)),
        pl.BlockSpec((tb, D), lambda i: (i, 0)),
    ]
    out_shapes = (
        jax.ShapeDtypeStruct((Bp, ENC_PAD), jnp.float32),
        jax.ShapeDtypeStruct((Bp, D), jnp.bfloat16),   # bf16 decoder output
    )

    encode, decode = pl.pallas_call(
        autoencoder_kernel,
        out_shape=out_shapes,
        grid_spec=pltpu.PrefetchScalarGridSpec(
            num_scalar_prefetch=0,
            grid=(Bp // tb,),
            in_specs=in_specs,
            out_specs=out_specs,
        ),
        compiler_params=pltpu.CompilerParams(
            dimension_semantics=("parallel",),
            vmem_limit_bytes=40 << 20,   # full double-buffering at tb<=1024 on all gens
        ),
    )(x_p, *kparams)
    return encode[:B, :DIMS_ENC[-1]], decode[:B]


def reference_forward(x, params):
    """Pure-f32 JAX reference matching the PyTorch forward."""
    h = x
    for idx, (w, b) in enumerate(params[:4]):
        h = jnp.dot(h, w) + b
        if idx < 3:
            h = jnp.tanh(h)
    enc = h
    h = enc
    for idx, (w, b) in enumerate(params[4:]):
        h = jnp.dot(h, w) + b
        h = jnp.tanh(h) if idx < 3 else jax.nn.sigmoid(h)
    return enc, h


if __name__ == "__main__":
    key = jax.random.PRNGKey(0)
    key_params, key_x = jax.random.split(key)

    params = init_params(key_params)
    # Hoisted out of the forward: prepared once at parameter-load time.
    kparams = prepare_kernel_params(params)

    # B not a tile multiple: exercises balanced-tile pad/slice and a 2-step grid
    # (so both v7x TensorCores get work).
    B = 300
    x_f32 = jax.random.uniform(key_x, (B, 28 * 28), jnp.float32)   # MNIST-like pixels
    # Upstream producer stores pixels in bf16; the kernel only consumes bf16 for
    # layer 1, so feeding bf16 halves the x HBM read stream (no in-graph cast op).
    x = x_f32.astype(jnp.bfloat16)

    encode, decode = autoencoder_forward(x, kparams, tile_b=1024)
    encode, decode = jax.block_until_ready((encode, decode))

    assert encode.shape == (B, 3) and decode.shape == (B, 28 * 28)
    assert decode.dtype == jnp.bfloat16

    # Reference on the same (bf16-rounded) inputs, all-f32 weights.
    enc_ref, dec_ref = reference_forward(x.astype(jnp.float32), params)
    # Tolerances account for bf16 MXU inputs on layers 1/2/7/8 and the bf16
    # decoder output (accumulation is f32 throughout); observed error ~ few e-3.
    err_enc = float(jnp.max(jnp.abs(encode - enc_ref)))
    err_dec = float(jnp.max(jnp.abs(decode.astype(jnp.float32) - dec_ref)))
    assert jnp.allclose(encode, enc_ref, atol=2e-2, rtol=2e-2), err_enc
    assert jnp.allclose(decode.astype(jnp.float32), dec_ref, atol=2e-2, rtol=2e-2), err_dec

    print("KERNEL_OK")
</pallas_src>

<mosaic_0001>
module attributes {stable_mosaic.version = 11 : i64} {
  func.func @autoencoder_kernel(%arg0: i32, %arg1: memref<160x784xbf16, #tpu.memory_space<vmem>>, %arg2: memref<784x128xbf16, #tpu.memory_space<vmem>>, %arg3: memref<1x128xf32, #tpu.memory_space<vmem>>, %arg4: memref<128x64xbf16, #tpu.memory_space<vmem>>, %arg5: memref<1x64xf32, #tpu.memory_space<vmem>>, %arg6: memref<64x12xf32, #tpu.memory_space<vmem>>, %arg7: memref<1x12xf32, #tpu.memory_space<vmem>>, %arg8: memref<12x8xf32, #tpu.memory_space<vmem>>, %arg9: memref<1x8xf32, #tpu.memory_space<vmem>>, %arg10: memref<12x12xf32, #tpu.memory_space<vmem>>, %arg11: memref<1x12xf32, #tpu.memory_space<vmem>>, %arg12: memref<12x64xf32, #tpu.memory_space<vmem>>, %arg13: memref<1x64xf32, #tpu.memory_space<vmem>>, %arg14: memref<64x128xbf16, #tpu.memory_space<vmem>>, %arg15: memref<1x128xf32, #tpu.memory_space<vmem>>, %arg16: memref<128x784xbf16, #tpu.memory_space<vmem>>, %arg17: memref<1x784xf32, #tpu.memory_space<vmem>>, %arg18: memref<160x8xf32, #tpu.memory_space<vmem>>, %arg19: memref<160x784xbf16, #tpu.memory_space<vmem>>) attributes {dimension_semantics = [#tpu.dimension_semantics<parallel>], iteration_bounds = array<i64: 2>, scalar_prefetch = 0 : i64, scratch_operands = 0 : i64, tpu.core_type = #tpu.core_type<tc>, window_params = [{transform_indices = @transform_0, window_bounds = array<i64: 160, 784>}, {pipeline_mode = #tpu.pipeline_mode<synchronous>, transform_indices = @transform_1, window_bounds = array<i64: 784, 128>}, {pipeline_mode = #tpu.pipeline_mode<synchronous>, transform_indices = @transform_2, window_bounds = array<i64: 1, 128>}, {pipeline_mode = #tpu.pipeline_mode<synchronous>, transform_indices = @transform_3, window_bounds = array<i64: 128, 64>}, {pipeline_mode = #tpu.pipeline_mode<synchronous>, transform_indices = @transform_4, window_bounds = array<i64: 1, 64>}, {pipeline_mode = #tpu.pipeline_mode<synchronous>, transform_indices = @transform_5, window_bounds = array<i64: 64, 12>}, {pipeline_mode = #tpu.pipeline_mode<synchronous>, transform_indices = @transform_6, window_bounds = array<i64: 1, 12>}, {pipeline_mode = #tpu.pipeline_mode<synchronous>, transform_indices = @transform_7, window_bounds = array<i64: 12, 8>}, {pipeline_mode = #tpu.pipeline_mode<synchronous>, transform_indices = @transform_8, window_bounds = array<i64: 1, 8>}, {pipeline_mode = #tpu.pipeline_mode<synchronous>, transform_indices = @transform_9, window_bounds = array<i64: 12, 12>}, {pipeline_mode = #tpu.pipeline_mode<synchronous>, transform_indices = @transform_10, window_bounds = array<i64: 1, 12>}, {pipeline_mode = #tpu.pipeline_mode<synchronous>, transform_indices = @transform_11, window_bounds = array<i64: 12, 64>}, {pipeline_mode = #tpu.pipeline_mode<synchronous>, transform_indices = @transform_12, window_bounds = array<i64: 1, 64>}, {pipeline_mode = #tpu.pipeline_mode<synchronous>, transform_indices = @transform_13, window_bounds = array<i64: 64, 128>}, {pipeline_mode = #tpu.pipeline_mode<synchronous>, transform_indices = @transform_14, window_bounds = array<i64: 1, 128>}, {pipeline_mode = #tpu.pipeline_mode<synchronous>, transform_indices = @transform_15, window_bounds = array<i64: 128, 784>}, {pipeline_mode = #tpu.pipeline_mode<synchronous>, transform_indices = @transform_16, window_bounds = array<i64: 1, 784>}, {transform_indices = @transform_17, window_bounds = array<i64: 160, 8>}, {transform_indices = @transform_18, window_bounds = array<i64: 160, 784>}]} {
    %c0 = arith.constant 0 : index
    %c0_0 = arith.constant 0 : index
    %0 = vector.load %arg1[%c0, %c0_0] : memref<160x784xbf16, #tpu.memory_space<vmem>>, vector<160x784xbf16>
    %c0_1 = arith.constant 0 : index
    %c0_2 = arith.constant 0 : index
    %1 = vector.load %arg2[%c0_1, %c0_2] : memref<784x128xbf16, #tpu.memory_space<vmem>>, vector<784x128xbf16>
    %cst = arith.constant dense<0.000000e+00> : vector<160x128xf32>
    %2 = tpu.matmul %0, %1, %cst {dimension_numbers = #tpu.dot_dimension_numbers<[1], [0], [0], [1], [0, 0, 1, 1], [], []>} : vector<160x784xbf16>, vector<784x128xbf16>, vector<160x128xf32> -> vector<160x128xf32>
    %c0_3 = arith.constant 0 : index
    %c0_4 = arith.constant 0 : index
    %3 = vector.load %arg3[%c0_3, %c0_4] : memref<1x128xf32, #tpu.memory_space<vmem>>, vector<1x128xf32>
    %4 = vector.broadcast %3 : vector<1x128xf32> to vector<160x128xf32>
    %5 = arith.addf %2, %4 : vector<160x128xf32>
    %6 = math.tanh %5 : vector<160x128xf32>
    %7 = arith.truncf %6 : vector<160x128xf32> to vector<160x128xbf16>
    %c0_5 = arith.constant 0 : index
    %c0_6 = arith.constant 0 : index
    %8 = vector.load %arg4[%c0_5, %c0_6] : memref<128x64xbf16, #tpu.memory_space<vmem>>, vector<128x64xbf16>
    %cst_7 = arith.constant dense<0.000000e+00> : vector<160x64xf32>
    %9 = tpu.matmul %7, %8, %cst_7 {dimension_numbers = #tpu.dot_dimension_numbers<[1], [0], [0], [1], [0, 0, 1, 1], [], []>} : vector<160x128xbf16>, vector<128x64xbf16>, vector<160x64xf32> -> vector<160x64xf32>
    %c0_8 = arith.constant 0 : index
    %c0_9 = arith.constant 0 : index
    %10 = vector.load %arg5[%c0_8, %c0_9] : memref<1x64xf32, #tpu.memory_space<vmem>>, vector<1x64xf32>
    %11 = vector.broadcast %10 : vector<1x64xf32> to vector<160x64xf32>
    %12 = arith.addf %9, %11 : vector<160x64xf32>
    %13 = math.tanh %12 : vector<160x64xf32>
    %c0_10 = arith.constant 0 : index
    %c0_11 = arith.constant 0 : index
    %14 = vector.load %arg6[%c0_10, %c0_11] : memref<64x12xf32, #tpu.memory_space<vmem>>, vector<64x12xf32>
    %cst_12 = arith.constant dense<0.000000e+00> : vector<160x12xf32>
    %15 = tpu.matmul %13, %14, %cst_12 {dimension_numbers = #tpu.dot_dimension_numbers<[1], [0], [0], [1], [0, 0, 1, 1], [], []>} : vector<160x64xf32>, vector<64x12xf32>, vector<160x12xf32> -> vector<160x12xf32>
    %c0_13 = arith.constant 0 : index
    %c0_14 = arith.constant 0 : index
    %16 = vector.load %arg7[%c0_13, %c0_14] : memref<1x12xf32, #tpu.memory_space<vmem>>, vector<1x12xf32>
    %17 = vector.broadcast %16 : vector<1x12xf32> to vector<160x12xf32>
    %18 = arith.addf %15, %17 : vector<160x12xf32>
    %19 = math.tanh %18 : vector<160x12xf32>
    %c0_15 = arith.constant 0 : index
    %c0_16 = arith.constant 0 : index
    %20 = vector.load %arg8[%c0_15, %c0_16] : memref<12x8xf32, #tpu.memory_space<vmem>>, vector<12x8xf32>
    %cst_17 = arith.constant dense<0.000000e+00> : vector<160x8xf32>
    %21 = tpu.matmul %19, %20, %cst_17 {dimension_numbers = #tpu.dot_dimension_numbers<[1], [0], [0], [1], [0, 0, 1, 1], [], []>} : vector<160x12xf32>, vector<12x8xf32>, vector<160x8xf32> -> vector<160x8xf32>
    %c0_18 = arith.constant 0 : index
    %c0_19 = arith.constant 0 : index
    %22 = vector.load %arg9[%c0_18, %c0_19] : memref<1x8xf32, #tpu.memory_space<vmem>>, vector<1x8xf32>
    %23 = vector.broadcast %22 : vector<1x8xf32> to vector<160x8xf32>
    %24 = arith.addf %21, %23 : vector<160x8xf32>
    %c0_20 = arith.constant 0 : index
    %c0_21 = arith.constant 0 : index
    %25 = vector.load %arg18[%c0_20, %c0_21] : memref<160x8xf32, #tpu.memory_space<vmem>>, vector<160x8xf32>
    tpu.vector_store %arg18[%c0_20, %c0_21], %24 {strides = array<i32>} : memref<160x8xf32, #tpu.memory_space<vmem>>, vector<160x8xf32>,
    %c0_22 = arith.constant 0 : index
    %c0_23 = arith.constant 0 : index
    %26 = vector.load %arg10[%c0_22, %c0_23] : memref<12x12xf32, #tpu.memory_space<vmem>>, vector<12x12xf32>
    %cst_24 = arith.constant dense<0.000000e+00> : vector<160x12xf32>
    %27 = tpu.matmul %19, %26, %cst_24 {dimension_numbers = #tpu.dot_dimension_numbers<[1], [0], [0], [1], [0, 0, 1, 1], [], []>} : vector<160x12xf32>, vector<12x12xf32>, vector<160x12xf32> -> vector<160x12xf32>
    %c0_25 = arith.constant 0 : index
    %c0_26 = arith.constant 0 : index
    %28 = vector.load %arg11[%c0_25, %c0_26] : memref<1x12xf32, #tpu.memory_space<vmem>>, vector<1x12xf32>
    %29 = vector.broadcast %28 : vector<1x12xf32> to vector<160x12xf32>
    %30 = arith.addf %27, %29 : vector<160x12xf32>
    %31 = math.tanh %30 : vector<160x12xf32>
    %c0_27 = arith.constant 0 : index
    %c0_28 = arith.constant 0 : index
    %32 = vector.load %arg12[%c0_27, %c0_28] : memref<12x64xf32, #tpu.memory_space<vmem>>, vector<12x64xf32>
    %cst_29 = arith.constant dense<0.000000e+00> : vector<160x64xf32>
    %33 = tpu.matmul %31, %32, %cst_29 {dimension_numbers = #tpu.dot_dimension_numbers<[1], [0], [0], [1], [0, 0, 1, 1], [], []>} : vector<160x12xf32>, vector<12x64xf32>, vector<160x64xf32> -> vector<160x64xf32>
    %c0_30 = arith.constant 0 : index
    %c0_31 = arith.constant 0 : index
    %34 = vector.load %arg13[%c0_30, %c0_31] : memref<1x64xf32, #tpu.memory_space<vmem>>, vector<1x64xf32>
    %35 = vector.broadcast %34 : vector<1x64xf32> to vector<160x64xf32>
    %36 = arith.addf %33, %35 : vector<160x64xf32>
    %37 = math.tanh %36 : vector<160x64xf32>
    %38 = arith.truncf %37 : vector<160x64xf32> to vector<160x64xbf16>
    %c0_32 = arith.constant 0 : index
    %c0_33 = arith.constant 0 : index
    %39 = vector.load %arg14[%c0_32, %c0_33] : memref<64x128xbf16, #tpu.memory_space<vmem>>, vector<64x128xbf16>
    %cst_34 = arith.constant dense<0.000000e+00> : vector<160x128xf32>
    %40 = tpu.matmul %38, %39, %cst_34 {dimension_numbers = #tpu.dot_dimension_numbers<[1], [0], [0], [1], [0, 0, 1, 1], [], []>} : vector<160x64xbf16>, vector<64x128xbf16>, vector<160x128xf32> -> vector<160x128xf32>
    %c0_35 = arith.constant 0 : index
    %c0_36 = arith.constant 0 : index
    %41 = vector.load %arg15[%c0_35, %c0_36] : memref<1x128xf32, #tpu.memory_space<vmem>>, vector<1x128xf32>
    %42 = vector.broadcast %41 : vector<1x128xf32> to vector<160x128xf32>
    %43 = arith.addf %40, %42 : vector<160x128xf32>
    %44 = math.tanh %43 : vector<160x128xf32>
    %45 = arith.truncf %44 : vector<160x128xf32> to vector<160x128xbf16>
    %c0_37 = arith.constant 0 : index
    %c0_38 = arith.constant 0 : index
    %46 = vector.load %arg16[%c0_37, %c0_38] : memref<128x784xbf16, #tpu.memory_space<vmem>>, vector<128x784xbf16>
    %cst_39 = arith.constant dense<0.000000e+00> : vector<160x784xf32>
    %47 = tpu.matmul %45, %46, %cst_39 {dimension_numbers = #tpu.dot_dimension_numbers<[1], [0], [0], [1], [0, 0, 1, 1], [], []>} : vector<160x128xbf16>, vector<128x784xbf16>, vector<160x784xf32> -> vector<160x784xf32>
    %c0_40 = arith.constant 0 : index
    %c0_41 = arith.constant 0 : index
    %48 = vector.load %arg17[%c0_40, %c0_41] : memref<1x784xf32, #tpu.memory_space<vmem>>, vector<1x784xf32>
    %49 = vector.broadcast %48 : vector<1x784xf32> to vector<160x784xf32>
    %50 = arith.addf %47, %49 : vector<160x784xf32>
    %51 = arith.negf %50 : vector<160x784xf32>
    %52 = math.exp %51 : vector<160x784xf32>
    %cst_42 = arith.constant 1.000000e+00 : f32
    %53 = vector.broadcast %cst_42 : f32 to vector<160x784xf32>
    %54 = arith.addf %53, %52 : vector<160x784xf32>
    %55 = arith.divf %53, %54 : vector<160x784xf32>
    %56 = arith.truncf %55 : vector<160x784xf32> to vector<160x784xbf16>
    %c0_43 = arith.constant 0 : index
    %c0_44 = arith.constant 0 : index
    %57 = vector.load %arg19[%c0_43, %c0_44] : memref<160x784xbf16, #tpu.memory_space<vmem>>, vector<160x784xbf16>
    tpu.vector_store %arg19[%c0_43, %c0_44], %56 {strides = array<i32>} : memref<160x784xbf16, #tpu.memory_space<vmem>>, vector<160x784xbf16>,
    return
  }
  func.func @transform_0(%arg0: i32) -> (i32, i32) {
    %c0_i32 = arith.constant 0 : i32
    %c0_i32_0 = arith.constant 0 : i32
    return %arg0, %c0_i32 : i32, i32
  }
  func.func @transform_1(%arg0: i32) -> (i32, i32) {
    %c0_i32 = arith.constant 0 : i32
    %c0_i32_0 = arith.constant 0 : i32
    %c0_i32_1 = arith.constant 0 : i32
    return %c0_i32, %c0_i32_0 : i32, i32
  }
  func.func @transform_2(%arg0: i32) -> (i32, i32) {
    %c0_i32 = arith.constant 0 : i32
    %c0_i32_0 = arith.constant 0 : i32
    %c0_i32_1 = arith.constant 0 : i32
    return %c0_i32, %c0_i32_0 : i32, i32
  }
  func.func @transform_3(%arg0: i32) -> (i32, i32) {
    %c0_i32 = arith.constant 0 : i32
    %c0_i32_0 = arith.constant 0 : i32
    %c0_i32_1 = arith.constant 0 : i32
    return %c0_i32, %c0_i32_0 : i32, i32
  }
  func.func @transform_4(%arg0: i32) -> (i32, i32) {
    %c0_i32 = arith.constant 0 : i32
    %c0_i32_0 = arith.constant 0 : i32
    %c0_i32_1 = arith.constant 0 : i32
    return %c0_i32, %c0_i32_0 : i32, i32
  }
  func.func @transform_5(%arg0: i32) -> (i32, i32) {
    %c0_i32 = arith.constant 0 : i32
    %c0_i32_0 = arith.constant 0 : i32
    %c0_i32_1 = arith.constant 0 : i32
    return %c0_i32, %c0_i32_0 : i32, i32
  }
  func.func @transform_6(%arg0: i32) -> (i32, i32) {
    %c0_i32 = arith.constant 0 : i32
    %c0_i32_0 = arith.constant 0 : i32
    %c0_i32_1 = arith.constant 0 : i32
    return %c0_i32, %c0_i32_0 : i32, i32
  }
  func.func @transform_7(%arg0: i32) -> (i32, i32) {
    %c0_i32 = arith.constant 0 : i32
    %c0_i32_0 = arith.constant 0 : i32
    %c0_i32_1 = arith.constant 0 : i32
    return %c0_i32, %c0_i32_0 : i32, i32
  }
  func.func @transform_8(%arg0: i32) -> (i32, i32) {
    %c0_i32 = arith.constant 0 : i32
    %c0_i32_0 = arith.constant 0 : i32
    %c0_i32_1 = arith.constant 0 : i32
    return %c0_i32, %c0_i32_0 : i32, i32
  }
  func.func @transform_9(%arg0: i32) -> (i32, i32) {
    %c0_i32 = arith.constant 0 : i32
    %c0_i32_0 = arith.constant 0 : i32
    %c0_i32_1 = arith.constant 0 : i32
    return %c0_i32, %c0_i32_0 : i32, i32
  }
  func.func @transform_10(%arg0: i32) -> (i32, i32) {
    %c0_i32 = arith.constant 0 : i32
    %c0_i32_0 = arith.constant 0 : i32
    %c0_i32_1 = arith.constant 0 : i32
    return %c0_i32, %c0_i32_0 : i32, i32
  }
  func.func @transform_11(%arg0: i32) -> (i32, i32) {
    %c0_i32 = arith.constant 0 : i32
    %c0_i32_0 = arith.constant 0 : i32
    %c0_i32_1 = arith.constant 0 : i32
    return %c0_i32, %c0_i32_0 : i32, i32
  }
  func.func @transform_12(%arg0: i32) -> (i32, i32) {
    %c0_i32 = arith.constant 0 : i32
    %c0_i32_0 = arith.constant 0 : i32
    %c0_i32_1 = arith.constant 0 : i32
    return %c0_i32, %c0_i32_0 : i32, i32
  }
  func.func @transform_13(%arg0: i32) -> (i32, i32) {
    %c0_i32 = arith.constant 0 : i32
    %c0_i32_0 = arith.constant 0 : i32
    %c0_i32_1 = arith.constant 0 : i32
    return %c0_i32, %c0_i32_0 : i32, i32
  }
  func.func @transform_14(%arg0: i32) -> (i32, i32) {
    %c0_i32 = arith.constant 0 : i32
    %c0_i32_0 = arith.constant 0 : i32
    %c0_i32_1 = arith.constant 0 : i32
    return %c0_i32, %c0_i32_0 : i32, i32
  }
  func.func @transform_15(%arg0: i32) -> (i32, i32) {
    %c0_i32 = arith.constant 0 : i32
    %c0_i32_0 = arith.constant 0 : i32
    %c0_i32_1 = arith.constant 0 : i32
    return %c0_i32, %c0_i32_0 : i32, i32
  }
  func.func @transform_16(%arg0: i32) -> (i32, i32) {
    %c0_i32 = arith.constant 0 : i32
    %c0_i32_0 = arith.constant 0 : i32
    %c0_i32_1 = arith.constant 0 : i32
    return %c0_i32, %c0_i32_0 : i32, i32
  }
  func.func @transform_17(%arg0: i32) -> (i32, i32) {
    %c0_i32 = arith.constant 0 : i32
    %c0_i32_0 = arith.constant 0 : i32
    return %arg0, %c0_i32 : i32, i32
  }
  func.func @transform_18(%arg0: i32) -> (i32, i32) {
    %c0_i32 = arith.constant 0 : i32
    %c0_i32_0 = arith.constant 0 : i32
    return %arg0, %c0_i32 : i32, i32
  }
}

</mosaic_0001>

<llo_original>
// kernel: autoencoder_forward.1
$region0: #{autoencoder_forward.1}
  #allocation0 [shape = 'u32[]', space=smem, size = 0x4, offset = 0x4, fixed_abs, tag = 'smem constant byte address 0x4 - core index']
  #allocation1 [shape = 'u32[144,128]{1,0:T(1,128)}', space=vmem, size = 0x12000, scoped, tag = 'internal scratch']
  %s0 = inlined_call_operand.vmem [shape: bf16[320,784], index: 0, kind: input, shape index: {}]
  %s1 = inlined_call_operand.vmem [shape: bf16[784,128], index: 1, kind: input, shape index: {}]
  %s2 = inlined_call_operand.vmem [shape: f32[1,128], index: 2, kind: input, shape index: {}]
  %s3 = inlined_call_operand.vmem [shape: bf16[128,64], index: 3, kind: input, shape index: {}]
  %s4 = inlined_call_operand.vmem [shape: f32[1,64], index: 4, kind: input, shape index: {}]
  %s5 = inlined_call_operand.vmem [shape: f32[64,12], index: 5, kind: input, shape index: {}]
  %s6 = inlined_call_operand.vmem [shape: f32[1,12], index: 6, kind: input, shape index: {}]
  %s7 = inlined_call_operand.vmem [shape: f32[12,8], index: 7, kind: input, shape index: {}]
  %s8 = inlined_call_operand.vmem [shape: f32[1,8], index: 8, kind: input, shape index: {}]
  %s9 = inlined_call_operand.vmem [shape: f32[12,12], index: 9, kind: input, shape index: {}]
  %s10 = inlined_call_operand.vmem [shape: f32[1,12], index: 10, kind: input, shape index: {}]
  %s11 = inlined_call_operand.vmem [shape: f32[12,64], index: 11, kind: input, shape index: {}]
  %s12 = inlined_call_operand.vmem [shape: f32[1,64], index: 12, kind: input, shape index: {}]
  %s13 = inlined_call_operand.vmem [shape: bf16[64,128], index: 13, kind: input, shape index: {}]
  %s14 = inlined_call_operand.vmem [shape: f32[1,128], index: 14, kind: input, shape index: {}]
  %s15 = inlined_call_operand.vmem [shape: bf16[128,784], index: 15, kind: input, shape index: {}]
  %s16 = inlined_call_operand.vmem [shape: f32[1,784], index: 16, kind: input, shape index: {}]
  %s17 = inlined_call_operand.vmem [shape: f32[320,8], index: 17, kind: output, shape index: {0}]
  %s18 = inlined_call_operand.vmem [shape: bf16[320,784], index: 18, kind: output, shape index: {1}]
  %19 = xla_tuple %s17, %s18
  %s20 = sld [smem:[#allocation0]]
  $region109: #{autoencoder_forward.1} parent=0
    _
  %s22 = ssub.s32 1, %s20
  %s23 = scalar_select 0, %s22, %s20
  loop: start=0, step=1, limit=4
  $region2: #{autoencoder_forward.1} parent=0 // loop_pre_header
    _
  $region3: #{autoencoder_forward.1} parent=0 // loop_header
    %s25 = sphi 0, %s29
    %p26 = scmp.ge.s32.totalorder %s25, 4
    %s35 = sphi 0, %s37
    %s38 = sphi 0, %s35
    %s39 = sphi 0, %s38
    %s55 = sphi 0, %s39
    %s59 = sphi 0, %s59
    %s61 = sphi 0, %s59
    %s62 = sphi 0, %s61
    %s76 = sphi 0, %s62
    %s80 = sphi 0, %s80
    %s82 = sphi 0, %s80
    %s83 = sphi 0, %s82
    %s97 = sphi 0, %s83
    %s101 = sphi 0, %s101
    %s103 = sphi 0, %s101
    %s104 = sphi 0, %s103
    %s118 = sphi 0, %s104
    %s122 = sphi 0, %s122
    %s124 = sphi 0, %s122
    %s125 = sphi 0, %s124
    %s139 = sphi 0, %s125
    %s143 = sphi 0, %s143
    %s145 = sphi 0, %s143
    %s146 = sphi 0, %s145
    %s160 = sphi 0, %s146
    %s164 = sphi 0, %s164
    %s166 = sphi 0, %s164
    %s167 = sphi 0, %s166
    %s181 = sphi 0, %s167
    %s185 = sphi 0, %s185
    %s187 = sphi 0, %s185
    %s188 = sphi 0, %s187
    %s202 = sphi 0, %s188
    %s206 = sphi 0, %s206
    %s208 = sphi 0, %s206
    %s209 = sphi 0, %s208
    %s223 = sphi 0, %s209
    %s227 = sphi 0, %s227
    %s229 = sphi 0, %s227
    %s230 = sphi 0, %s229
    %s244 = sphi 0, %s230
    %s248 = sphi 0, %s248
    %s250 = sphi 0, %s248
    %s251 = sphi 0, %s250
    %s265 = sphi 0, %s251
    %s269 = sphi 0, %s269
    %s271 = sphi 0, %s269
    %s272 = sphi 0, %s271
    %s286 = sphi 0, %s272
    %s290 = sphi 0, %s290
    %s292 = sphi 0, %s290
    %s293 = sphi 0, %s292
    %s307 = sphi 0, %s293
    %s311 = sphi 0, %s311
    %s313 = sphi 0, %s311
    %s314 = sphi 0, %s313
    %s328 = sphi 0, %s314
    %s332 = sphi 0, %s332
    %s334 = sphi 0, %s332
    %s335 = sphi 0, %s334
    %s349 = sphi 0, %s335
    %s353 = sphi 0, %s353
    %s355 = sphi 0, %s353
    %s356 = sphi 0, %s355
    %s370 = sphi 0, %s356
    %s374 = sphi 0, %s374
    %s376 = sphi 0, %s374
    %s377 = sphi 0, %s376
    %s391 = sphi 0, %s377
    %s397 = sphi 0, %s399
    %s400 = sphi 0, %s397
    %s401 = sphi 0, %s400
    %s417 = sphi 0, %s401
    %s423 = sphi 0, %s425
    %s426 = sphi 0, %s423
    %s427 = sphi 0, %s426
    %s443 = sphi 0, %s427
  $region4: #{autoencoder_forward.1} parent=0 // loop_header_branch
    %28 = sbr.rel (%p26) target = $region8
  $region5: #{autoencoder_forward.1} parent=0 // loop_body
    %s30 = ssub.s32 %s25, 1
    %s31 = ssub.s32 %s25, 2
    %s32 = sadd.s32 %s25, 1
    %s33 = ssub.s32 %s25, %s32
    %p34 = scmp.eq.s32.totalorder %s33, 0
    %s36 = sadd.s32 %s35, 1
    %s37 = scalar_select %p34, %s35, %s36
    %p40 = pneg %p34
    %p41 = scmp.eq.s32.totalorder %s25, 1
    %p42 = por %p40, %p41
    %p43 = scmp.ne.s32.totalorder %s35, %s38
    %p44 = scmp.eq.s32.totalorder %s25, 0
    %p45 = por %p43, %p44
    %p46 = scmp.ne.s32.totalorder %s35, %s38
    %p47 = scmp.eq.s32.totalorder %s30, 1
    %p48 = por %p46, %p47
    %p49 = scmp.ne.s32.totalorder %s38, %s39
    %p50 = scmp.eq.s32.totalorder %s30, 0
    %p51 = por %p49, %p50
    %p52 = scmp.ne.s32.totalorder %s38, %s39
    %p53 = scmp.eq.s32.totalorder %s31, 1
    %p54 = por %p52, %p53
    %p56 = scmp.ne.s32.totalorder %s39, %s55
    %p57 = scmp.eq.s32.totalorder %s31, 0
    %p58 = por %p56, %p57
    %s60 = sadd.s32 %s59, 1
    %p63 = scmp.eq.s32.totalorder %s25, 1
    %p64 = scmp.ne.s32.totalorder %s59, %s61
    %p65 = scmp.eq.s32.totalorder %s25, 0
    %p66 = por %p64, %p65
    %p67 = scmp.ne.s32.totalorder %s59, %s61
    %p68 = scmp.eq.s32.totalorder %s30, 1
    %p69 = por %p67, %p68
    %p70 = scmp.ne.s32.totalorder %s61, %s62
    %p71 = scmp.eq.s32.totalorder %s30, 0
    %p72 = por %p70, %p71
    %p73 = scmp.ne.s32.totalorder %s61, %s62
    %p74 = scmp.eq.s32.totalorder %s31, 1
    %p75 = por %p73, %p74
    %p77 = scmp.ne.s32.totalorder %s62, %s76
    %p78 = scmp.eq.s32.totalorder %s31, 0
    %p79 = por %p77, %p78
    %s81 = sadd.s32 %s80, 1
    %p84 = scmp.eq.s32.totalorder %s25, 1
    %p85 = scmp.ne.s32.totalorder %s80, %s82
    %p86 = scmp.eq.s32.totalorder %s25, 0
    %p87 = por %p85, %p86
    %p88 = scmp.ne.s32.totalorder %s80, %s82
    %p89 = scmp.eq.s32.totalorder %s30, 1
    %p90 = por %p88, %p89
    %p91 = scmp.ne.s32.totalorder %s82, %s83
    %p92 = scmp.eq.s32.totalorder %s30, 0
    %p93 = por %p91, %p92
    %p94 = scmp.ne.s32.totalorder %s82, %s83
    %p95 = scmp.eq.s32.totalorder %s31, 1
    %p96 = por %p94, %p95
    %p98 = scmp.ne.s32.totalorder %s83, %s97
    %p99 = scmp.eq.s32.totalorder %s31, 0
    %p100 = por %p98, %p99
    %s102 = sadd.s32 %s101, 1
    %p105 = scmp.eq.s32.totalorder %s25, 1
    %p106 = scmp.ne.s32.totalorder %s101, %s103
    %p107 = scmp.eq.s32.totalorder %s25, 0
    %p108 = por %p106, %p107
    %p109 = scmp.ne.s32.totalorder %s101, %s103
    %p110 = scmp.eq.s32.totalorder %s30, 1
    %p111 = por %p109, %p110
    %p112 = scmp.ne.s32.totalorder %s103, %s104
    %p113 = scmp.eq.s32.totalorder %s30, 0
    %p114 = por %p112, %p113
    %p115 = scmp.ne.s32.totalorder %s103, %s104
    %p116 = scmp.eq.s32.totalorder %s31, 1
    %p117 = por %p115, %p116
    %p119 = scmp.ne.s32.totalorder %s104, %s118
    %p120 = scmp.eq.s32.totalorder %s31, 0
    %p121 = por %p119, %p120
    %s123 = sadd.s32 %s122, 1
    %p126 = scmp.eq.s32.totalorder %s25, 1
    %p127 = scmp.ne.s32.totalorder %s122, %s124
    %p128 = scmp.eq.s32.totalorder %s25, 0
    %p129 = por %p127, %p128
    %p130 = scmp.ne.s32.totalorder %s122, %s124
    %p131 = scmp.eq.s32.totalorder %s30, 1
    %p132 = por %p130, %p131
    %p133 = scmp.ne.s32.totalorder %s124, %s125
    %p134 = scmp.eq.s32.totalorder %s30, 0
    %p135 = por %p133, %p134
    %p136 = scmp.ne.s32.totalorder %s124, %s125
    %p137 = scmp.eq.s32.totalorder %s31, 1
    %p138 = por %p136, %p137
    %p140 = scmp.ne.s32.totalorder %s125, %s139
    %p141 = scmp.eq.s32.totalorder %s31, 0
    %p142 = por %p140, %p141
    %s144 = sadd.s32 %s143, 1
    %p147 = scmp.eq.s32.totalorder %s25, 1
    %p148 = scmp.ne.s32.totalorder %s143, %s145
    %p149 = scmp.eq.s32.totalorder %s25, 0
    %p150 = por %p148, %p149
    %p151 = scmp.ne.s32.totalorder %s143, %s145
    %p152 = scmp.eq.s32.totalorder %s30, 1
    %p153 = por %p151, %p152
    %p154 = scmp.ne.s32.totalorder %s145, %s146
    %p155 = scmp.eq.s32.totalorder %s30, 0
    %p156 = por %p154, %p155
    %p157 = scmp.ne.s32.totalorder %s145, %s146
    %p158 = scmp.eq.s32.totalorder %s31, 1
    %p159 = por %p157, %p158
    %p161 = scmp.ne.s32.totalorder %s146, %s160
    %p162 = scmp.eq.s32.totalorder %s31, 0
    %p163 = por %p161, %p162
    %s165 = sadd.s32 %s164, 1
    %p168 = scmp.eq.s32.totalorder %s25, 1
    %p169 = scmp.ne.s32.totalorder %s164, %s166
    %p170 = scmp.eq.s32.totalorder %s25, 0
    %p171 = por %p169, %p170
    %p172 = scmp.ne.s32.totalorder %s164, %s166
    %p173 = scmp.eq.s32.totalorder %s30, 1
    %p174 = por %p172, %p173
    %p175 = scmp.ne.s32.totalorder %s166, %s167
    %p176 = scmp.eq.s32.totalorder %s30, 0
    %p177 = por %p175, %p176
    %p178 = scmp.ne.s32.totalorder %s166, %s167
    %p179 = scmp.eq.s32.totalorder %s31, 1
    %p180 = por %p178, %p179
    %p182 = scmp.ne.s32.totalorder %s167, %s181
    %p183 = scmp.eq.s32.totalorder %s31, 0
    %p184 = por %p182, %p183
    %s186 = sadd.s32 %s185, 1
    %p189 = scmp.eq.s32.totalorder %s25, 1
    %p190 = scmp.ne.s32.totalorder %s185, %s187
    %p191 = scmp.eq.s32.totalorder %s25, 0
    %p192 = por %p190, %p191
    %p193 = scmp.ne.s32.totalorder %s185, %s187
    %p194 = scmp.eq.s32.totalorder %s30, 1
    %p195 = por %p193, %p194
    %p196 = scmp.ne.s32.totalorder %s187, %s188
    %p197 = scmp.eq.s32.totalorder %s30, 0
    %p198 = por %p196, %p197
    %p199 = scmp.ne.s32.totalorder %s187, %s188
    %p200 = scmp.eq.s32.totalorder %s31, 1
    %p201 = por %p199, %p200
    %p203 = scmp.ne.s32.totalorder %s188, %s202
    %p204 = scmp.eq.s32.totalorder %s31, 0
    %p205 = por %p203, %p204
    %s207 = sadd.s32 %s206, 1
    %p210 = scmp.eq.s32.totalorder %s25, 1
    %p211 = scmp.ne.s32.totalorder %s206, %s208
    %p212 = scmp.eq.s32.totalorder %s25, 0
    %p213 = por %p211, %p212
    %p214 = scmp.ne.s32.totalorder %s206, %s208
    %p215 = scmp.eq.s32.totalorder %s30, 1
    %p216 = por %p214, %p215
    %p217 = scmp.ne.s32.totalorder %s208, %s209
    %p218 = scmp.eq.s32.totalorder %s30, 0
    %p219 = por %p217, %p218
    %p220 = scmp.ne.s32.totalorder %s208, %s209
    %p221 = scmp.eq.s32.totalorder %s31, 1
    %p222 = por %p220, %p221
    %p224 = scmp.ne.s32.totalorder %s209, %s223
    %p225 = scmp.eq.s32.totalorder %s31, 0
    %p226 = por %p224, %p225
    %s228 = sadd.s32 %s227, 1
    %p231 = scmp.eq.s32.totalorder %s25, 1
    %p232 = scmp.ne.s32.totalorder %s227, %s229
    %p233 = scmp.eq.s32.totalorder %s25, 0
    %p234 = por %p232, %p233
    %p235 = scmp.ne.s32.totalorder %s227, %s229
    %p236 = scmp.eq.s32.totalorder %s30, 1
    %p237 = por %p235, %p236
    %p238 = scmp.ne.s32.totalorder %s229, %s230
    %p239 = scmp.eq.s32.totalorder %s30, 0
    %p240 = por %p238, %p239
    %p241 = scmp.ne.s32.totalorder %s229, %s230
    %p242 = scmp.eq.s32.totalorder %s31, 1
    %p243 = por %p241, %p242
    %p245 = scmp.ne.s32.totalorder %s230, %s244
    %p246 = scmp.eq.s32.totalorder %s31, 0
    %p247 = por %p245, %p246
    %s249 = sadd.s32 %s248, 1
    %p252 = scmp.eq.s32.totalorder %s25, 1
    %p253 = scmp.ne.s32.totalorder %s248, %s250
    %p254 = scmp.eq.s32.totalorder %s25, 0
    %p255 = por %p253, %p254
    %p256 = scmp.ne.s32.totalorder %s248, %s250
    %p257 = scmp.eq.s32.totalorder %s30, 1
    %p258 = por %p256, %p257
    %p259 = scmp.ne.s32.totalorder %s250, %s251
    %p260 = scmp.eq.s32.totalorder %s30, 0
    %p261 = por %p259, %p260
    %p262 = scmp.ne.s32.totalorder %s250, %s251
    %p263 = scmp.eq.s32.totalorder %s31, 1
    %p264 = por %p262, %p263
    %p266 = scmp.ne.s32.totalorder %s251, %s265
    %p267 = scmp.eq.s32.totalorder %s31, 0
    %p268 = por %p266, %p267
    %s270 = sadd.s32 %s269, 1
    %p273 = scmp.eq.s32.totalorder %s25, 1
    %p274 = scmp.ne.s32.totalorder %s269, %s271
    %p275 = scmp.eq.s32.totalorder %s25, 0
    %p276 = por %p274, %p275
    %p277 = scmp.ne.s32.totalorder %s269, %s271
    %p278 = scmp.eq.s32.totalorder %s30, 1
    %p279 = por %p277, %p278
    %p280 = scmp.ne.s32.totalorder %s271, %s272
    %p281 = scmp.eq.s32.totalorder %s30, 0
    %p282 = por %p280, %p281
    %p283 = scmp.ne.s32.totalorder %s271, %s272
    %p284 = scmp.eq.s32.totalorder %s31, 1
    %p285 = por %p283, %p284
    %p287 = scmp.ne.s32.totalorder %s272, %s286
    %p288 = scmp.eq.s32.totalorder %s31, 0
    %p289 = por %p287, %p288
    %s291 = sadd.s32 %s290, 1
    %p294 = scmp.eq.s32.totalorder %s25, 1
    %p295 = scmp.ne.s32.totalorder %s290, %s292
    %p296 = scmp.eq.s32.totalorder %s25, 0
    %p297 = por %p295, %p296
    %p298 = scmp.ne.s32.totalorder %s290, %s292
    %p299 = scmp.eq.s32.totalorder %s30, 1
    %p300 = por %p298, %p299
    %p301 = scmp.ne.s32.totalorder %s292, %s293
    %p302 = scmp.eq.s32.totalorder %s30, 0
    %p303 = por %p301, %p302
    %p304 = scmp.ne.s32.totalorder %s292, %s293
    %p305 = scmp.eq.s32.totalorder %s31, 1
    %p306 = por %p304, %p305
    %p308 = scmp.ne.s32.totalorder %s293, %s307
    %p309 = scmp.eq.s32.totalorder %s31, 0
    %p310 = por %p308, %p309
    %s312 = sadd.s32 %s311, 1
    %p315 = scmp.eq.s32.totalorder %s25, 1
    %p316 = scmp.ne.s32.totalorder %s311, %s313
    %p317 = scmp.eq.s32.totalorder %s25, 0
    %p318 = por %p316, %p317
    %p319 = scmp.ne.s32.totalorder %s311, %s313
    %p320 = scmp.eq.s32.totalorder %s30, 1
    %p321 = por %p319, %p320
    %p322 = scmp.ne.s32.totalorder %s313, %s314
    %p323 = scmp.eq.s32.totalorder %s30, 0
    %p324 = por %p322, %p323
    %p325 = scmp.ne.s32.totalorder %s313, %s314
    %p326 = scmp.eq.s32.totalorder %s31, 1
    %p327 = por %p325, %p326
    %p329 = scmp.ne.s32.totalorder %s314, %s328
    %p330 = scmp.eq.s32.totalorder %s31, 0
    %p331 = por %p329, %p330
    %s333 = sadd.s32 %s332, 1
    %p336 = scmp.eq.s32.totalorder %s25, 1
    %p337 = scmp.ne.s32.totalorder %s332, %s334
    %p338 = scmp.eq.s32.totalorder %s25, 0
    %p339 = por %p337, %p338
    %p340 = scmp.ne.s32.totalorder %s332, %s334
    %p341 = scmp.eq.s32.totalorder %s30, 1
    %p342 = por %p340, %p341
    %p343 = scmp.ne.s32.totalorder %s334, %s335
    %p344 = scmp.eq.s32.totalorder %s30, 0
    %p345 = por %p343, %p344
    %p346 = scmp.ne.s32.totalorder %s334, %s335
    %p347 = scmp.eq.s32.totalorder %s31, 1
    %p348 = por %p346, %p347
    %p350 = scmp.ne.s32.totalorder %s335, %s349
    %p351 = scmp.eq.s32.totalorder %s31, 0
    %p352 = por %p350, %p351
    %s354 = sadd.s32 %s353, 1
    %p357 = scmp.eq.s32.totalorder %s25, 1
    %p358 = scmp.ne.s32.totalorder %s353, %s355
    %p359 = scmp.eq.s32.totalorder %s25, 0
    %p360 = por %p358, %p359
    %p361 = scmp.ne.s32.totalorder %s353, %s355
    %p362 = scmp.eq.s32.totalorder %s30, 1
    %p363 = por %p361, %p362
    %p364 = scmp.ne.s32.totalorder %s355, %s356
    %p365 = scmp.eq.s32.totalorder %s30, 0
    %p366 = por %p364, %p365
    %p367 = scmp.ne.s32.totalorder %s355, %s356
    %p368 = scmp.eq.s32.totalorder %s31, 1
    %p369 = por %p367, %p368
    %p371 = scmp.ne.s32.totalorder %s356, %s370
    %p372 = scmp.eq.s32.totalorder %s31, 0
    %p373 = por %p371, %p372
    %s375 = sadd.s32 %s374, 1
    %p378 = scmp.eq.s32.totalorder %s25, 1
    %p379 = scmp.ne.s32.totalorder %s374, %s376
    %p380 = scmp.eq.s32.totalorder %s25, 0
    %p381 = por %p379, %p380
    %p382 = scmp.ne.s32.totalorder %s374, %s376
    %p383 = scmp.eq.s32.totalorder %s30, 1
    %p384 = por %p382, %p383
    %p385 = scmp.ne.s32.totalorder %s376, %s377
    %p386 = scmp.eq.s32.totalorder %s30, 0
    %p387 = por %p385, %p386
    %p388 = scmp.ne.s32.totalorder %s376, %s377
    %p389 = scmp.eq.s32.totalorder %s31, 1
    %p390 = por %p388, %p389
    %p392 = scmp.ne.s32.totalorder %s377, %s391
    %p393 = scmp.eq.s32.totalorder %s31, 0
    %p394 = por %p392, %p393
    %s395 = ssub.s32 %s25, %s32
    %p396 = scmp.eq.s32.totalorder %s395, 0
    %s398 = sadd.s32 %s397, 1
    %s399 = scalar_select %p396, %s397, %s398
    %p402 = pneg %p396
    %p403 = scmp.eq.s32.totalorder %s25, 1
    %p404 = por %p402, %p403
    %p405 = scmp.ne.s32.totalorder %s397, %s400
    %p406 = scmp.eq.s32.totalorder %s25, 0
    %p407 = por %p405, %p406
    %p408 = scmp.ne.s32.totalorder %s397, %s400
    %p409 = scmp.eq.s32.totalorder %s30, 1
    %p410 = por %p408, %p409
    %p411 = scmp.ne.s32.totalorder %s400, %s401
    %p412 = scmp.eq.s32.totalorder %s30, 0
    %p413 = por %p411, %p412
    %p414 = scmp.ne.s32.totalorder %s400, %s401
    %p415 = scmp.eq.s32.totalorder %s31, 1
    %p416 = por %p414, %p415
    %p418 = scmp.ne.s32.totalorder %s401, %s417
    %p419 = scmp.eq.s32.totalorder %s31, 0
    %p420 = por %p418, %p419
    %s421 = ssub.s32 %s25, %s32
    %p422 = scmp.eq.s32.totalorder %s421, 0
    %s424 = sadd.s32 %s423, 1
    %s425 = scalar_select %p422, %s423, %s424
    %p428 = pneg %p422
    %p429 = scmp.eq.s32.totalorder %s25, 1
    %p430 = por %p428, %p429
    %p431 = scmp.ne.s32.totalorder %s423, %s426
    %p432 = scmp.eq.s32.totalorder %s25, 0
    %p433 = por %p431, %p432
    %p434 = scmp.ne.s32.totalorder %s423, %s426
    %p435 = scmp.eq.s32.totalorder %s30, 1
    %p436 = por %p434, %p435
    %p437 = scmp.ne.s32.totalorder %s426, %s427
    %p438 = scmp.eq.s32.totalorder %s30, 0
    %p439 = por %p437, %p438
    %p440 = scmp.ne.s32.totalorder %s426, %s427
    %p441 = scmp.eq.s32.totalorder %s31, 1
    %p442 = por %p440, %p441
    %p444 = scmp.ne.s32.totalorder %s427, %s443
    %p445 = scmp.eq.s32.totalorder %s31, 0
    %p446 = por %p444, %p445
    %p447 = scmp.le.s32.totalorder 1, %s25
    %p448 = scmp.lt.s32.totalorder %s25, 3
    %p449 = pnand %p447, %p448
    %p450 = pneg %p449
    // Predicated region
    $region9: #{autoencoder_forward.1} parent=5 // pred_check
      _
    $region10: #{autoencoder_forward.1} parent=5 // pred_check_branch
      %452 = sbr.rel (%p449) target = $region12
    $region11: #{autoencoder_forward.1} parent=5 // pred_region
      %s453 = ssub.s32 %s25, 1
      // Predicated region
      $region13: #{autoencoder_forward.1} parent=11 // pred_check
        %p454 = pneg %p72
      $region14: #{autoencoder_forward.1} parent=11 // pred_check_branch
        %456 = sbr.rel (%p454) target = $region16
      $region15: #{autoencoder_forward.1} parent=11 // pred_region
        _
      $region16: #{autoencoder_forward.1} parent=11 // pred_fallthru
        _
      // Predicated region
      $region17: #{autoencoder_forward.1} parent=11 // pred_check
        %p457 = pneg %p93
      $region18: #{autoencoder_forward.1} parent=11 // pred_check_branch
        %459 = sbr.rel (%p457) target = $region20
      $region19: #{autoencoder_forward.1} parent=11 // pred_region
        _
      $region20: #{autoencoder_forward.1} parent=11 // pred_fallthru
        _
      // Predicated region
      $region21: #{autoencoder_forward.1} parent=11 // pred_check
        %p460 = pneg %p114
      $region22: #{autoencoder_forward.1} parent=11 // pred_check_branch
        %462 = sbr.rel (%p460) target = $region24
      $region23: #{autoencoder_forward.1} parent=11 // pred_region
        _
      $region24: #{autoencoder_forward.1} parent=11 // pred_fallthru
        _
      // Predicated region
      $region25: #{autoencoder_forward.1} parent=11 // pred_check
        %p463 = pneg %p135
      $region26: #{autoencoder_forward.1} parent=11 // pred_check_branch
        %465 = sbr.rel (%p463) target = $region28
      $region27: #{autoencoder_forward.1} parent=11 // pred_region
        _
      $region28: #{autoencoder_forward.1} parent=11 // pred_fallthru
        _
      // Predicated region
      $region29: #{autoencoder_forward.1} parent=11 // pred_check
        %p466 = pneg %p156
      $region30: #{autoencoder_forward.1} parent=11 // pred_check_branch
        %468 = sbr.rel (%p466) target = $region32
      $region31: #{autoencoder_forward.1} parent=11 // pred_region
        _
      $region32: #{autoencoder_forward.1} parent=11 // pred_fallthru
        _
      // Predicated region
      $region33: #{autoencoder_forward.1} parent=11 // pred_check
        %p469 = pneg %p177
      $region34: #{autoencoder_forward.1} parent=11 // pred_check_branch
        %471 = sbr.rel (%p469) target = $region36
      $region35: #{autoencoder_forward.1} parent=11 // pred_region
        _
      $region36: #{autoencoder_forward.1} parent=11 // pred_fallthru
        _
      // Predicated region
      $region37: #{autoencoder_forward.1} parent=11 // pred_check
        %p472 = pneg %p198
      $region38: #{autoencoder_forward.1} parent=11 // pred_check_branch
        %474 = sbr.rel (%p472) target = $region40
      $region39: #{autoencoder_forward.1} parent=11 // pred_region
        _
      $region40: #{autoencoder_forward.1} parent=11 // pred_fallthru
        _
      // Predicated region
      $region41: #{autoencoder_forward.1} parent=11 // pred_check
        %p475 = pneg %p219
      $region42: #{autoencoder_forward.1} parent=11 // pred_check_branch
        %477 = sbr.rel (%p475) target = $region44
      $region43: #{autoencoder_forward.1} parent=11 // pred_region
        _
      $region44: #{autoencoder_forward.1} parent=11 // pred_fallthru
        _
      // Predicated region
      $region45: #{autoencoder_forward.1} parent=11 // pred_check
        %p478 = pneg %p240
      $region46: #{autoencoder_forward.1} parent=11 // pred_check_branch
        %480 = sbr.rel (%p478) target = $region48
      $region47: #{autoencoder_forward.1} parent=11 // pred_region
        _
      $region48: #{autoencoder_forward.1} parent=11 // pred_fallthru
        _
      // Predicated region
      $region49: #{autoencoder_forward.1} parent=11 // pred_check
        %p481 = pneg %p261
      $region50: #{autoencoder_forward.1} parent=11 // pred_check_branch
        %483 = sbr.rel (%p481) target = $region52
      $region51: #{autoencoder_forward.1} parent=11 // pred_region
        _
      $region52: #{autoencoder_forward.1} parent=11 // pred_fallthru
        _
      // Predicated region
      $region53: #{autoencoder_forward.1} parent=11 // pred_check
        %p484 = pneg %p282
      $region54: #{autoencoder_forward.1} parent=11 // pred_check_branch
        %486 = sbr.rel (%p484) target = $region56
      $region55: #{autoencoder_forward.1} parent=11 // pred_region
        _
      $region56: #{autoencoder_forward.1} parent=11 // pred_fallthru
        _
      // Predicated region
      $region57: #{autoencoder_forward.1} parent=11 // pred_check
        %p487 = pneg %p303
      $region58: #{autoencoder_forward.1} parent=11 // pred_check_branch
        %489 = sbr.rel (%p487) target = $region60
      $region59: #{autoencoder_forward.1} parent=11 // pred_region
        _
      $region60: #{autoencoder_forward.1} parent=11 // pred_fallthru
        _
      // Predicated region
      $region61: #{autoencoder_forward.1} parent=11 // pred_check
        %p490 = pneg %p324
      $region62: #{autoencoder_forward.1} parent=11 // pred_check_branch
        %492 = sbr.rel (%p490) target = $region64
      $region63: #{autoencoder_forward.1} parent=11 // pred_region
        _
      $region64: #{autoencoder_forward.1} parent=11 // pred_fallthru
        _
      // Predicated region
      $region65: #{autoencoder_forward.1} parent=11 // pred_check
        %p493 = pneg %p345
      $region66: #{autoencoder_forward.1} parent=11 // pred_check_branch
        %495 = sbr.rel (%p493) target = $region68
      $region67: #{autoencoder_forward.1} parent=11 // pred_region
        _
      $region68: #{autoencoder_forward.1} parent=11 // pred_fallthru
        _
      // Predicated region
      $region69: #{autoencoder_forward.1} parent=11 // pred_check
        %p496 = pneg %p366
      $region70: #{autoencoder_forward.1} parent=11 // pred_check_branch
        %498 = sbr.rel (%p496) target = $region72
      $region71: #{autoencoder_forward.1} parent=11 // pred_region
        _
      $region72: #{autoencoder_forward.1} parent=11 // pred_fallthru
        _
      // Predicated region
      $region73: #{autoencoder_forward.1} parent=11 // pred_check
        %p499 = pneg %p387
      $region74: #{autoencoder_forward.1} parent=11 // pred_check_branch
        %501 = sbr.rel (%p499) target = $region76
      $region75: #{autoencoder_forward.1} parent=11 // pred_region
        _
      $region76: #{autoencoder_forward.1} parent=11 // pred_fallthru
        _
    $region12: #{autoencoder_forward.1} parent=5 // pred_fallthru
      _
    %p502 = scmp.lt.s32.totalorder %s25, 2
    // Predicated region
    $region77: #{autoencoder_forward.1} parent=5 // pred_check
      %p503 = pneg %p502
    $region78: #{autoencoder_forward.1} parent=5 // pred_check_branch
      %505 = sbr.rel (%p503) target = $region80
    $region79: #{autoencoder_forward.1} parent=5 // pred_region
      // Predicated region
      $region81: #{autoencoder_forward.1} parent=79 // pred_check
        %p506 = pneg %p45
      $region82: #{autoencoder_forward.1} parent=79 // pred_check_branch
        %508 = sbr.rel (%p506) target = $region84
      $region83: #{autoencoder_forward.1} parent=79 // pred_region
        %s509 = smul.u32 20, %s25
        %p510 = scmp.lt.s32.totalorder %s509, 39
        %s511 = scalar_select %p510, %s509, 39
        %s512 = smul.addr %s511, 7
        %s513 = smul.addr %s512, 4
        %s514 = scalar_lea.vmem %s0, %s513
        %s515 = smul.u32 20, %s25
      $region84: #{autoencoder_forward.1} parent=79 // pred_fallthru
        _
    $region80: #{autoencoder_forward.1} parent=5 // pred_fallthru
      _
    %p516 = scmp.le.s32.totalorder 1, %s25
    %p517 = scmp.lt.s32.totalorder %s25, 3
    %p518 = pnand %p516, %p517
    %p519 = pneg %p518
    // Predicated region
    $region85: #{autoencoder_forward.1} parent=5 // pred_check
      _
    $region86: #{autoencoder_forward.1} parent=5 // pred_check_branch
      %521 = sbr.rel (%p518) target = $region88
    $region87: #{autoencoder_forward.1} parent=5 // pred_region
      %s522 = ssub.s32 %s25, 1
      %s523 = smul.u32 20, %s30
      %p524 = scmp.lt.s32.totalorder %s523, 39
      %s525 = scalar_select %p524, %s523, 39
      %s526 = smul.addr %s525, 7
      %s527 = smul.addr %s526, 4
      %s528 = scalar_lea.vmem %s0, %s527
      %p529 = pneg %p51
      %p530 = pneg %p48
      %p531 = pneg %p72
      %p532 = pneg %p69
      %p533 = pneg %p93
      %p534 = pneg %p90
      %p535 = pneg %p114
      %p536 = pneg %p111
      %p537 = pneg %p135
      %p538 = pneg %p132
      %p539 = pneg %p156
      %p540 = pneg %p153
      %p541 = pneg %p177
      %p542 = pneg %p174
      %p543 = pneg %p198
      %p544 = pneg %p195
      %p545 = pneg %p219
      %p546 = pneg %p216
      %p547 = pneg %p240
      %p548 = pneg %p237
      %p549 = pneg %p261
      %p550 = pneg %p258
      %p551 = pneg %p282
      %p552 = pneg %p279
      %p553 = pneg %p303
      %p554 = pneg %p300
      %p555 = pneg %p324
      %p556 = pneg %p321
      %p557 = pneg %p345
      %p558 = pneg %p342
      %p559 = pneg %p366
      %p560 = pneg %p363
      %p561 = pneg %p387
      %p562 = pneg %p384
      %p563 = pneg %p413
      %p564 = pneg %p410
      %s565 = smul.u32 20, %s30
      %p566 = scmp.lt.s32.totalorder %s565, 39
      %s567 = scalar_select %p566, %s565, 39
      %s568 = smul.addr %s567, 8
      %s569 = scalar_lea.vmem %s17, %s568
      %p570 = pneg %p439
      %p571 = pneg %p436
      %s572 = smul.u32 20, %s30
      %p573 = scmp.lt.s32.totalorder %s572, 39
      %s574 = scalar_select %p573, %s572, 39
      %s575 = smul.addr %s574, 7
      %s576 = smul.addr %s575, 4
      %s577 = scalar_lea.vmem %s18, %s576
      %s578 = smul.u32 20, %s30
      %p579 = scmp.lt.s32.totalorder %s578, 39
      %s580 = scalar_select %p579, %s578, 39
      %s581 = smul.addr %s580, 7
      %s582 = smul.addr %s581, 4
      %s583 = scalar_lea.vmem %s0, %s582
      %s584 = smul.u32 20, %s30
      %s585 = smul.u32 20, %s30
      %p586 = scmp.lt.s32.totalorder %s585, 39
      %s587 = scalar_select %p586, %s585, 39
      %s588 = smul.addr %s587, 8
      %s589 = scalar_lea.vmem %s17, %s588
      %s590 = smul.u32 20, %s30
      %s591 = smul.u32 20, %s30
      %p592 = scmp.lt.s32.totalorder %s591, 39
      %s593 = scalar_select %p592, %s591, 39
      %s594 = smul.addr %s593, 7
      %s595 = smul.addr %s594, 4
      %s596 = scalar_lea.vmem %s18, %s595
      %s597 = smul.u32 20, %s30
      %v599 = vld [vmem:[%s583] sm:$0xff]
      %v600 = vld [vmem:[%s583 + $0x8] sm:$0xff]
      %v601 = vld [vmem:[%s583 + $0x10] sm:$0xff]
      %v602 = vld [vmem:[%s583 + $0x18] sm:$0xf]
      %v603 = vld [vmem:[%s583 + $0x1c] sm:$0xff]
      %v604 = vld [vmem:[%s583 + $0x24] sm:$0xff]
      %v605 = vld [vmem:[%s583 + $0x2c] sm:$0xff]
      %v606 = vld [vmem:[%s583 + $0x34] sm:$0xf]
      %v607 = vld [vmem:[%s583 + $0x38] sm:$0xff]
      %v608 = vld [vmem:[%s583 + $0x40] sm:$0xff]
      %v609 = vld [vmem:[%s583 + $0x48] sm:$0xff]
      %v610 = vld [vmem:[%s583 + $0x50] sm:$0xf]
      %v611 = vld [vmem:[%s583 + $0x54] sm:$0xff]
      %v612 = vld [vmem:[%s583 + $0x5c] sm:$0xff]
      %v613 = vld [vmem:[%s583 + $0x64] sm:$0xff]
      %v614 = vld [vmem:[%s583 + $0x6c] sm:$0xf]
      %v615 = vld [vmem:[%s583 + $0x70] sm:$0xff]
      %v616 = vld [vmem:[%s583 + $0x78] sm:$0xff]
      %v617 = vld [vmem:[%s583 + $0x80] sm:$0xff]
      %v618 = vld [vmem:[%s583 + $0x88] sm:$0xf]
      %v619 = vld [vmem:[%s583 + $0x8c] sm:$0xff]
      %v620 = vld [vmem:[%s583 + $0x94] sm:$0xff]
      %v621 = vld [vmem:[%s583 + $0x9c] sm:$0xff]
      %v622 = vld [vmem:[%s583 + $0xa4] sm:$0xf]
      %v623 = vld [vmem:[%s583 + $0xa8] sm:$0xff]
      %v624 = vld [vmem:[%s583 + $0xb0] sm:$0xff]
      %v625 = vld [vmem:[%s583 + $0xb8] sm:$0xff]
      %v626 = vld [vmem:[%s583 + $0xc0] sm:$0xf]
      %v627 = vld [vmem:[%s583 + $0xc4] sm:$0xff]
      %v628 = vld [vmem:[%s583 + $0xcc] sm:$0xff]
      %v629 = vld [vmem:[%s583 + $0xd4] sm:$0xff]
      %v630 = vld [vmem:[%s583 + $0xdc] sm:$0xf]
      %v631 = vld [vmem:[%s583 + $0xe0] sm:$0xff]
      %v632 = vld [vmem:[%s583 + $0xe8] sm:$0xff]
      %v633 = vld [vmem:[%s583 + $0xf0] sm:$0xff]
      %v634 = vld [vmem:[%s583 + $0xf8] sm:$0xf]
      %v635 = vld [vmem:[%s583 + $0xfc] sm:$0xff]
      %v636 = vld [vmem:[%s583 + $0x104] sm:$0xff]
      %v637 = vld [vmem:[%s583 + $0x10c] sm:$0xff]
      %v638 = vld [vmem:[%s583 + $0x114] sm:$0xf]
      %v639 = vld [vmem:[%s583 + $0x118] sm:$0xff]
      %v640 = vld [vmem:[%s583 + $0x120] sm:$0xff]
      %v641 = vld [vmem:[%s583 + $0x128] sm:$0xff]
      %v642 = vld [vmem:[%s583 + $0x130] sm:$0xf]
      %v643 = vld [vmem:[%s583 + $0x134] sm:$0xff]
      %v644 = vld [vmem:[%s583 + $0x13c] sm:$0xff]
      %v645 = vld [vmem:[%s583 + $0x144] sm:$0xff]
      %v646 = vld [vmem:[%s583 + $0x14c] sm:$0xf]
      %v647 = vld [vmem:[%s583 + $0x150] sm:$0xff]
      %v648 = vld [vmem:[%s583 + $0x158] sm:$0xff]
      %v649 = vld [vmem:[%s583 + $0x160] sm:$0xff]
      %v650 = vld [vmem:[%s583 + $0x168] sm:$0xf]
      %v651 = vld [vmem:[%s583 + $0x16c] sm:$0xff]
      %v652 = vld [vmem:[%s583 + $0x174] sm:$0xff]
      %v653 = vld [vmem:[%s583 + $0x17c] sm:$0xff]
      %v654 = vld [vmem:[%s583 + $0x184] sm:$0xf]
      %v655 = vld [vmem:[%s583 + $0x188] sm:$0xff]
      %v656 = vld [vmem:[%s583 + $0x190] sm:$0xff]
      %v657 = vld [vmem:[%s583 + $0x198] sm:$0xff]
      %v658 = vld [vmem:[%s583 + $0x1a0] sm:$0xf]
      %v659 = vld [vmem:[%s583 + $0x1a4] sm:$0xff]
      %v660 = vld [vmem:[%s583 + $0x1ac] sm:$0xff]
      %v661 = vld [vmem:[%s583 + $0x1b4] sm:$0xff]
      %v662 = vld [vmem:[%s583 + $0x1bc] sm:$0xf]
      %v663 = vld [vmem:[%s583 + $0x1c0] sm:$0xff]
      %v664 = vld [vmem:[%s583 + $0x1c8] sm:$0xff]
      %v665 = vld [vmem:[%s583 + $0x1d0] sm:$0xff]
      %v666 = vld [vmem:[%s583 + $0x1d8] sm:$0xf]
      %v667 = vld [vmem:[%s583 + $0x1dc] sm:$0xff]
      %v668 = vld [vmem:[%s583 + $0x1e4] sm:$0xff]
      %v669 = vld [vmem:[%s583 + $0x1ec] sm:$0xff]
      %v670 = vld [vmem:[%s583 + $0x1f4] sm:$0xf]
      %v671 = vld [vmem:[%s583 + $0x1f8] sm:$0xff]
      %v672 = vld [vmem:[%s583 + $0x200] sm:$0xff]
      %v673 = vld [vmem:[%s583 + $0x208] sm:$0xff]
      %v674 = vld [vmem:[%s583 + $0x210] sm:$0xf]
      %v675 = vld [vmem:[%s583 + $0x214] sm:$0xff]
      %v676 = vld [vmem:[%s583 + $0x21c] sm:$0xff]
      %v677 = vld [vmem:[%s583 + $0x224] sm:$0xff]
      %v678 = vld [vmem:[%s583 + $0x22c] sm:$0xf]
      %v679 = vld [vmem:[%s1] sm:$0xf]
      %v680 = vld [vmem:[%s1 + $0x4] sm:$0xf]
      %v681 = vld [vmem:[%s1 + $0x8] sm:$0xf]
      %v682 = vld [vmem:[%s1 + $0xc] sm:$0xf]
      %v683 = vld [vmem:[%s1 + $0x10] sm:$0xf]
      %v684 = vld [vmem:[%s1 + $0x14] sm:$0xf]
      %v685 = vld [vmem:[%s1 + $0x18] sm:$0xf]
      %v686 = vld [vmem:[%s1 + $0x1c] sm:$0xf]
      %v687 = vld [vmem:[%s1 + $0x20] sm:$0xf]
      %v688 = vld [vmem:[%s1 + $0x24] sm:$0xf]
      %v689 = vld [vmem:[%s1 + $0x28] sm:$0xf]
      %v690 = vld [vmem:[%s1 + $0x2c] sm:$0xf]
      %v691 = vld [vmem:[%s1 + $0x30] sm:$0xf]
      %v692 = vld [vmem:[%s1 + $0x34] sm:$0xf]
      %v693 = vld [vmem:[%s1 + $0x38] sm:$0xf]
      %v694 = vld [vmem:[%s1 + $0x3c] sm:$0xf]
      %v695 = vld [vmem:[%s1 + $0x40] sm:$0xf]
      %v696 = vld [vmem:[%s1 + $0x44] sm:$0xf]
      %v697 = vld [vmem:[%s1 + $0x48] sm:$0xf]
      %v698 = vld [vmem:[%s1 + $0x4c] sm:$0xf]
      %v699 = vld [vmem:[%s1 + $0x50] sm:$0xf]
      %v700 = vld [vmem:[%s1 + $0x54] sm:$0xf]
      %v701 = vld [vmem:[%s1 + $0x58] sm:$0xf]
      %v702 = vld [vmem:[%s1 + $0x5c] sm:$0xf]
      %v703 = vld [vmem:[%s1 + $0x60] sm:$0xf]
      %v704 = vld [vmem:[%s1 + $0x64] sm:$0xf]
      %v705 = vld [vmem:[%s1 + $0x68] sm:$0xf]
      %v706 = vld [vmem:[%s1 + $0x6c] sm:$0xf]
      %v707 = vld [vmem:[%s1 + $0x70] sm:$0xf]
      %v708 = vld [vmem:[%s1 + $0x74] sm:$0xf]
      %v709 = vld [vmem:[%s1 + $0x78] sm:$0xf]
      %v710 = vld [vmem:[%s1 + $0x7c] sm:$0xf]
      %v711 = vld [vmem:[%s1 + $0x80] sm:$0xf]
      %v712 = vld [vmem:[%s1 + $0x84] sm:$0xf]
      %v713 = vld [vmem:[%s1 + $0x88] sm:$0xf]
      %v714 = vld [vmem:[%s1 + $0x8c] sm:$0xf]
      %v715 = vld [vmem:[%s1 + $0x90] sm:$0xf]
      %v716 = vld [vmem:[%s1 + $0x94] sm:$0xf]
      %v717 = vld [vmem:[%s1 + $0x98] sm:$0xf]
      %v718 = vld [vmem:[%s1 + $0x9c] sm:$0xf]
      %v719 = vld [vmem:[%s1 + $0xa0] sm:$0xf]
      %v720 = vld [vmem:[%s1 + $0xa4] sm:$0xf]
      %v721 = vld [vmem:[%s1 + $0xa8] sm:$0xf]
      %v722 = vld [vmem:[%s1 + $0xac] sm:$0xf]
      %v723 = vld [vmem:[%s1 + $0xb0] sm:$0xf]
      %v724 = vld [vmem:[%s1 + $0xb4] sm:$0xf]
      %v725 = vld [vmem:[%s1 + $0xb8] sm:$0xf]
      %v726 = vld [vmem:[%s1 + $0xbc] sm:$0xf]
      %v727 = vld [vmem:[%s1 + $0xc0] sm:$0xf]
      %v728 = vld [vmem:[%s1 + $0xc4] sm:$0xf]
      %v729 = vld [vmem:[%s1 + $0xc8] sm:$0xf]
      %v730 = vld [vmem:[%s1 + $0xcc] sm:$0xf]
      %v731 = vld [vmem:[%s1 + $0xd0] sm:$0xf]
      %v732 = vld [vmem:[%s1 + $0xd4] sm:$0xf]
      %v733 = vld [vmem:[%s1 + $0xd8] sm:$0xf]
      %v734 = vld [vmem:[%s1 + $0xdc] sm:$0xf]
      %v735 = vld [vmem:[%s1 + $0xe0] sm:$0xf]
      %v736 = vld [vmem:[%s1 + $0xe4] sm:$0xf]
      %v737 = vld [vmem:[%s1 + $0xe8] sm:$0xf]
      %v738 = vld [vmem:[%s1 + $0xec] sm:$0xf]
      %v739 = vld [vmem:[%s1 + $0xf0] sm:$0xf]
      %v740 = vld [vmem:[%s1 + $0xf4] sm:$0xf]
      %v741 = vld [vmem:[%s1 + $0xf8] sm:$0xf]
      %v742 = vld [vmem:[%s1 + $0xfc] sm:$0xf]
      %v743 = vld [vmem:[%s1 + $0x100] sm:$0xf]
      %v744 = vld [vmem:[%s1 + $0x104] sm:$0xf]
      %v745 = vld [vmem:[%s1 + $0x108] sm:$0xf]
      %v746 = vld [vmem:[%s1 + $0x10c] sm:$0xf]
      %v747 = vld [vmem:[%s1 + $0x110] sm:$0xf]
      %v748 = vld [vmem:[%s1 + $0x114] sm:$0xf]
      %v749 = vld [vmem:[%s1 + $0x118] sm:$0xf]
      %v750 = vld [vmem:[%s1 + $0x11c] sm:$0xf]
      %v751 = vld [vmem:[%s1 + $0x120] sm:$0xf]
      %v752 = vld [vmem:[%s1 + $0x124] sm:$0xf]
      %v753 = vld [vmem:[%s1 + $0x128] sm:$0xf]
      %v754 = vld [vmem:[%s1 + $0x12c] sm:$0xf]
      %v755 = vld [vmem:[%s1 + $0x130] sm:$0xf]
      %v756 = vld [vmem:[%s1 + $0x134] sm:$0xf]
      %v757 = vld [vmem:[%s1 + $0x138] sm:$0xf]
      %v758 = vld [vmem:[%s1 + $0x13c] sm:$0xf]
      %v759 = vld [vmem:[%s1 + $0x140] sm:$0xf]
      %v760 = vld [vmem:[%s1 + $0x144] sm:$0xf]
      %v761 = vld [vmem:[%s1 + $0x148] sm:$0xf]
      %v762 = vld [vmem:[%s1 + $0x14c] sm:$0xf]
      %v763 = vld [vmem:[%s1 + $0x150] sm:$0xf]
      %v764 = vld [vmem:[%s1 + $0x154] sm:$0xf]
      %v765 = vld [vmem:[%s1 + $0x158] sm:$0xf]
      %v766 = vld [vmem:[%s1 + $0x15c] sm:$0xf]
      %v767 = vld [vmem:[%s1 + $0x160] sm:$0xf]
      %v768 = vld [vmem:[%s1 + $0x164] sm:$0xf]
      %v769 = vld [vmem:[%s1 + $0x168] sm:$0xf]
      %v770 = vld [vmem:[%s1 + $0x16c] sm:$0xf]
      %v771 = vld [vmem:[%s1 + $0x170] sm:$0xf]
      %v772 = vld [vmem:[%s1 + $0x174] sm:$0xf]
      %v773 = vld [vmem:[%s1 + $0x178] sm:$0xf]
      %v774 = vld [vmem:[%s1 + $0x17c] sm:$0xf]
      %v775 = vld [vmem:[%s1 + $0x180] sm:$0xf]
      %v776 = vld [vmem:[%s1 + $0x184] sm:$0xf]
      %v777 = vld [vmem:[%s2] sm:$0x1]
      %v779 = vlaneseq
      %v780 = vshrl.u32 %v779, 7
      %v781 = vsub.s32 0, %v780
      %v782 = vrot.slane %v777, %v781
      %v864 = vunpack.c.l.b16 %v599
      %v865 = vunpack.c.h.b16 %v599
      %v866 = vunpack.c.l.b16 %v600
      %v867 = vunpack.c.h.b16 %v600
      %v868 = vunpack.c.l.b16 %v601
      %v869 = vunpack.c.h.b16 %v601
      %v870 = vunpack.c.l.b16 %v602
      %v871 = vunpack.c.l.b16 %v603
      %v872 = vunpack.c.h.b16 %v603
      %v873 = vunpack.c.l.b16 %v604
      %v874 = vunpack.c.h.b16 %v604
      %v875 = vunpack.c.l.b16 %v605
      %v876 = vunpack.c.h.b16 %v605
      %v877 = vunpack.c.l.b16 %v606
      %v878 = vunpack.c.l.b16 %v607
      %v879 = vunpack.c.h.b16 %v607
      %v880 = vunpack.c.l.b16 %v608
      %v881 = vunpack.c.h.b16 %v608
      %v882 = vunpack.c.l.b16 %v609
      %v883 = vunpack.c.h.b16 %v609
      %v884 = vunpack.c.l.b16 %v610
      %v885 = vunpack.c.l.b16 %v611
      %v886 = vunpack.c.h.b16 %v611
      %v887 = vunpack.c.l.b16 %v612
      %v888 = vunpack.c.h.b16 %v612
      %v889 = vunpack.c.l.b16 %v613
      %v890 = vunpack.c.h.b16 %v613
      %v891 = vunpack.c.l.b16 %v614
      %v892 = vunpack.c.l.b16 %v615
      %v893 = vunpack.c.h.b16 %v615
      %v894 = vunpack.c.l.b16 %v616
      %v895 = vunpack.c.h.b16 %v616
      %v896 = vunpack.c.l.b16 %v617
      %v897 = vunpack.c.h.b16 %v617
      %v898 = vunpack.c.l.b16 %v618
      %v899 = vunpack.c.l.b16 %v619
      %v900 = vunpack.c.h.b16 %v619
      %v901 = vunpack.c.l.b16 %v620
      %v902 = vunpack.c.h.b16 %v620
      %v903 = vunpack.c.l.b16 %v621
      %v904 = vunpack.c.h.b16 %v621
      %v905 = vunpack.c.l.b16 %v622
      %v906 = vunpack.c.l.b16 %v623
      %v907 = vunpack.c.h.b16 %v623
      %v908 = vunpack.c.l.b16 %v624
      %v909 = vunpack.c.h.b16 %v624
      %v910 = vunpack.c.l.b16 %v625
      %v911 = vunpack.c.h.b16 %v625
      %v912 = vunpack.c.l.b16 %v626
      %v913 = vunpack.c.l.b16 %v627
      %v914 = vunpack.c.h.b16 %v627
      %v915 = vunpack.c.l.b16 %v628
      %v916 = vunpack.c.h.b16 %v628
      %v917 = vunpack.c.l.b16 %v629
      %v918 = vunpack.c.h.b16 %v629
      %v919 = vunpack.c.l.b16 %v630
      %v920 = vunpack.c.l.b16 %v631
      %v921 = vunpack.c.h.b16 %v631
      %v922 = vunpack.c.l.b16 %v632
      %v923 = vunpack.c.h.b16 %v632
      %v924 = vunpack.c.l.b16 %v633
      %v925 = vunpack.c.h.b16 %v633
      %v926 = vunpack.c.l.b16 %v634
      %v927 = vunpack.c.l.b16 %v635
      %v928 = vunpack.c.h.b16 %v635
      %v929 = vunpack.c.l.b16 %v636
      %v930 = vunpack.c.h.b16 %v636
      %v931 = vunpack.c.l.b16 %v637
      %v932 = vunpack.c.h.b16 %v637
      %v933 = vunpack.c.l.b16 %v638
      %v934 = vunpack.c.l.b16 %v639
      %v935 = vunpack.c.h.b16 %v639
      %v936 = vunpack.c.l.b16 %v640
      %v937 = vunpack.c.h.b16 %v640
      %v938 = vunpack.c.l.b16 %v641
      %v939 = vunpack.c.h.b16 %v641
      %v940 = vunpack.c.l.b16 %v642
      %v941 = vunpack.c.l.b16 %v643
      %v942 = vunpack.c.h.b16 %v643
      %v943 = vunpack.c.l.b16 %v644
      %v944 = vunpack.c.h.b16 %v644
      %v945 = vunpack.c.l.b16 %v645
      %v946 = vunpack.c.h.b16 %v645
      %v947 = vunpack.c.l.b16 %v646
      %v948 = vunpack.c.l.b16 %v647
      %v949 = vunpack.c.h.b16 %v647
      %v950 = vunpack.c.l.b16 %v648
      %v951 = vunpack.c.h.b16 %v648
      %v952 = vunpack.c.l.b16 %v649
      %v953 = vunpack.c.h.b16 %v649
      %v954 = vunpack.c.l.b16 %v650
      %v955 = vunpack.c.l.b16 %v651
      %v956 = vunpack.c.h.b16 %v651
      %v957 = vunpack.c.l.b16 %v652
      %v958 = vunpack.c.h.b16 %v652
      %v959 = vunpack.c.l.b16 %v653
      %v960 = vunpack.c.h.b16 %v653
      %v961 = vunpack.c.l.b16 %v654
      %v962 = vunpack.c.l.b16 %v655
      %v963 = vunpack.c.h.b16 %v655
      %v964 = vunpack.c.l.b16 %v656
      %v965 = vunpack.c.h.b16 %v656
      %v966 = vunpack.c.l.b16 %v657
      %v967 = vunpack.c.h.b16 %v657
      %v968 = vunpack.c.l.b16 %v658
      %v969 = vunpack.c.l.b16 %v659
      %v970 = vunpack.c.h.b16 %v659
      %v971 = vunpack.c.l.b16 %v660
      %v972 = vunpack.c.h.b16 %v660
      %v973 = vunpack.c.l.b16 %v661
      %v974 = vunpack.c.h.b16 %v661
      %v975 = vunpack.c.l.b16 %v662
      %v976 = vunpack.c.l.b16 %v663
      %v977 = vunpack.c.h.b16 %v663
      %v978 = vunpack.c.l.b16 %v664
      %v979 = vunpack.c.h.b16 %v664
      %v980 = vunpack.c.l.b16 %v665
      %v981 = vunpack.c.h.b16 %v665
      %v982 = vunpack.c.l.b16 %v666
      %v983 = vunpack.c.l.b16 %v667
      %v984 = vunpack.c.h.b16 %v667
      %v985 = vunpack.c.l.b16 %v668
      %v986 = vunpack.c.h.b16 %v668
      %v987 = vunpack.c.l.b16 %v669
      %v988 = vunpack.c.h.b16 %v669
      %v989 = vunpack.c.l.b16 %v670
      %v990 = vunpack.c.l.b16 %v671
      %v991 = vunpack.c.h.b16 %v671
      %v992 = vunpack.c.l.b16 %v672
      %v993 = vunpack.c.h.b16 %v672
      %v994 = vunpack.c.l.b16 %v673
      %v995 = vunpack.c.h.b16 %v673
      %v996 = vunpack.c.l.b16 %v674
      %v997 = vunpack.c.l.b16 %v675
      %v998 = vunpack.c.h.b16 %v675
      %v999 = vunpack.c.l.b16 %v676
      %v1000 = vunpack.c.h.b16 %v676
      %v1001 = vunpack.c.l.b16 %v677
      %v1002 = vunpack.c.h.b16 %v677
      %v1003 = vunpack.c.l.b16 %v678
      %v1004 = vpack.c.b16 %v871, %v864
      %v1005 = vpack.c.b16 %v872, %v865
      %v1006 = vpack.c.b16 %v873, %v866
      %v1007 = vpack.c.b16 %v874, %v867
      %v1008 = vpack.c.b16 %v875, %v868
      %v1009 = vpack.c.b16 %v876, %v869
      %v1010 = vpack.c.b16 %v877, %v870
      %v1011 = vpack.c.b16 %v885, %v878
      %v1012 = vpack.c.b16 %v886, %v879
      %v1013 = vpack.c.b16 %v887, %v880
      %v1014 = vpack.c.b16 %v888, %v881
      %v1015 = vpack.c.b16 %v889, %v882
      %v1016 = vpack.c.b16 %v890, %v883
      %v1017 = vpack.c.b16 %v891, %v884
      %v1018 = vpack.c.b16 %v899, %v892
      %v1019 = vpack.c.b16 %v900, %v893
      %v1020 = vpack.c.b16 %v901, %v894
      %v1021 = vpack.c.b16 %v902, %v895
      %v1022 = vpack.c.b16 %v903, %v896
      %v1023 = vpack.c.b16 %v904, %v897
      %v1024 = vpack.c.b16 %v905, %v898
      %v1025 = vpack.c.b16 %v913, %v906
      %v1026 = vpack.c.b16 %v914, %v907
      %v1027 = vpack.c.b16 %v915, %v908
      %v1028 = vpack.c.b16 %v916, %v909
      %v1029 = vpack.c.b16 %v917, %v910
      %v1030 = vpack.c.b16 %v918, %v911
      %v1031 = vpack.c.b16 %v919, %v912
      %v1032 = vpack.c.b16 %v927, %v920
      %v1033 = vpack.c.b16 %v928, %v921
      %v1034 = vpack.c.b16 %v929, %v922
      %v1035 = vpack.c.b16 %v930, %v923
      %v1036 = vpack.c.b16 %v931, %v924
      %v1037 = vpack.c.b16 %v932, %v925
      %v1038 = vpack.c.b16 %v933, %v926
      %v1039 = vpack.c.b16 %v941, %v934
      %v1040 = vpack.c.b16 %v942, %v935
      %v1041 = vpack.c.b16 %v943, %v936
      %v1042 = vpack.c.b16 %v944, %v937
      %v1043 = vpack.c.b16 %v945, %v938
      %v1044 = vpack.c.b16 %v946, %v939
      %v1045 = vpack.c.b16 %v947, %v940
      %v1046 = vpack.c.b16 %v955, %v948
      %v1047 = vpack.c.b16 %v956, %v949
      %v1048 = vpack.c.b16 %v957, %v950
      %v1049 = vpack.c.b16 %v958, %v951
      %v1050 = vpack.c.b16 %v959, %v952
      %v1051 = vpack.c.b16 %v960, %v953
      %v1052 = vpack.c.b16 %v961, %v954
      %v1053 = vpack.c.b16 %v969, %v962
      %v1054 = vpack.c.b16 %v970, %v963
      %v1055 = vpack.c.b16 %v971, %v964
      %v1056 = vpack.c.b16 %v972, %v965
      %v1057 = vpack.c.b16 %v973, %v966
      %v1058 = vpack.c.b16 %v974, %v967
      %v1059 = vpack.c.b16 %v975, %v968
      %v1060 = vpack.c.b16 %v983, %v976
      %v1061 = vpack.c.b16 %v984, %v977
      %v1062 = vpack.c.b16 %v985, %v978
      %v1063 = vpack.c.b16 %v986, %v979
      %v1064 = vpack.c.b16 %v987, %v980
      %v1065 = vpack.c.b16 %v988, %v981
      %v1066 = vpack.c.b16 %v989, %v982
      %v1067 = vpack.c.b16 %v997, %v990
      %v1068 = vpack.c.b16 %v998, %v991
      %v1069 = vpack.c.b16 %v999, %v992
      %v1070 = vpack.c.b16 %v1000, %v993
      %v1071 = vpack.c.b16 %v1001, %v994
      %v1072 = vpack.c.b16 %v1002, %v995
      %v1073 = vpack.c.b16 %v1003, %v996
      %v1232 = vunpack.c.l.b16 %v679
      %v1233 = vunpack.c.l.b16 %v680
      %v1234 = vunpack.c.l.b16 %v681
      %v1235 = vunpack.c.l.b16 %v682
      %v1236 = vunpack.c.l.b16 %v683
      %v1237 = vunpack.c.l.b16 %v684
      %v1238 = vunpack.c.l.b16 %v685
      %v1239 = vunpack.c.l.b16 %v686
      %v1240 = vunpack.c.l.b16 %v687
      %v1241 = vunpack.c.l.b16 %v688
      %v1242 = vunpack.c.l.b16 %v689
      %v1243 = vunpack.c.l.b16 %v690
      %v1244 = vunpack.c.l.b16 %v691
      %v1245 = vunpack.c.l.b16 %v692
      %v1246 = vunpack.c.l.b16 %v693
      %v1247 = vunpack.c.l.b16 %v694
      %v1248 = vunpack.c.l.b16 %v695
      %v1249 = vunpack.c.l.b16 %v696
      %v1250 = vunpack.c.l.b16 %v697
      %v1251 = vunpack.c.l.b16 %v698
      %v1252 = vunpack.c.l.b16 %v699
      %v1253 = vunpack.c.l.b16 %v700
      %v1254 = vunpack.c.l.b16 %v701
      %v1255 = vunpack.c.l.b16 %v702
      %v1256 = vunpack.c.l.b16 %v703
      %v1257 = vunpack.c.l.b16 %v704
      %v1258 = vunpack.c.l.b16 %v705
      %v1259 = vunpack.c.l.b16 %v706
      %v1260 = vunpack.c.l.b16 %v707
      %v1261 = vunpack.c.l.b16 %v708
      %v1262 = vunpack.c.l.b16 %v709
      %v1263 = vunpack.c.l.b16 %v710
      %v1264 = vunpack.c.l.b16 %v711
      %v1265 = vunpack.c.l.b16 %v712
      %v1266 = vunpack.c.l.b16 %v713
      %v1267 = vunpack.c.l.b16 %v714
      %v1268 = vunpack.c.l.b16 %v715
      %v1269 = vunpack.c.l.b16 %v716
      %v1270 = vunpack.c.l.b16 %v717
      %v1271 = vunpack.c.l.b16 %v718
      %v1272 = vunpack.c.l.b16 %v719
      %v1273 = vunpack.c.l.b16 %v720
      %v1274 = vunpack.c.l.b16 %v721
      %v1275 = vunpack.c.l.b16 %v722
      %v1276 = vunpack.c.l.b16 %v723
      %v1277 = vunpack.c.l.b16 %v724
      %v1278 = vunpack.c.l.b16 %v725
      %v1279 = vunpack.c.l.b16 %v726
      %v1280 = vunpack.c.l.b16 %v727
      %v1281 = vunpack.c.l.b16 %v728
      %v1282 = vunpack.c.l.b16 %v729
      %v1283 = vunpack.c.l.b16 %v730
      %v1284 = vunpack.c.l.b16 %v731
      %v1285 = vunpack.c.l.b16 %v732
      %v1286 = vunpack.c.l.b16 %v733
      %v1287 = vunpack.c.l.b16 %v734
      %v1288 = vunpack.c.l.b16 %v735
      %v1289 = vunpack.c.l.b16 %v736
      %v1290 = vunpack.c.l.b16 %v737
      %v1291 = vunpack.c.l.b16 %v738
      %v1292 = vunpack.c.l.b16 %v739
      %v1293 = vunpack.c.l.b16 %v740
      %v1294 = vunpack.c.l.b16 %v741
      %v1295 = vunpack.c.l.b16 %v742
      %v1296 = vunpack.c.l.b16 %v743
      %v1297 = vunpack.c.l.b16 %v744
      %v1298 = vunpack.c.l.b16 %v745
      %v1299 = vunpack.c.l.b16 %v746
      %v1300 = vunpack.c.l.b16 %v747
      %v1301 = vunpack.c.l.b16 %v748
      %v1302 = vunpack.c.l.b16 %v749
      %v1303 = vunpack.c.l.b16 %v750
      %v1304 = vunpack.c.l.b16 %v751
      %v1305 = vunpack.c.l.b16 %v752
      %v1306 = vunpack.c.l.b16 %v753
      %v1307 = vunpack.c.l.b16 %v754
      %v1308 = vunpack.c.l.b16 %v755
      %v1309 = vunpack.c.l.b16 %v756
      %v1310 = vunpack.c.l.b16 %v757
      %v1311 = vunpack.c.l.b16 %v758
      %v1312 = vunpack.c.l.b16 %v759
      %v1313 = vunpack.c.l.b16 %v760
      %v1314 = vunpack.c.l.b16 %v761
      %v1315 = vunpack.c.l.b16 %v762
      %v1316 = vunpack.c.l.b16 %v763
      %v1317 = vunpack.c.l.b16 %v764
      %v1318 = vunpack.c.l.b16 %v765
      %v1319 = vunpack.c.l.b16 %v766
      %v1320 = vunpack.c.l.b16 %v767
      %v1321 = vunpack.c.l.b16 %v768
      %v1322 = vunpack.c.l.b16 %v769
      %v1323 = vunpack.c.l.b16 %v770
      %v1324 = vunpack.c.l.b16 %v771
      %v1325 = vunpack.c.l.b16 %v772
      %v1326 = vunpack.c.l.b16 %v773
      %v1327 = vunpack.c.l.b16 %v774
      %v1328 = vunpack.c.l.b16 %v775
      %v1329 = vunpack.c.l.b16 %v776
      %v1330 = vpack.c.b16 %v1233, %v1232
      %v1331 = vpack.c.b16 %v1235, %v1234
      %v1332 = vpack.c.b16 %v1237, %v1236
      %v1333 = vpack.c.b16 %v1239, %v1238
      %v1334 = vpack.c.b16 %v1241, %v1240
      %v1335 = vpack.c.b16 %v1243, %v1242
      %v1336 = vpack.c.b16 %v1245, %v1244
      %v1337 = vpack.c.b16 %v1247, %v1246
      %v1338 = vpack.c.b16 %v1249, %v1248
      %v1339 = vpack.c.b16 %v1251, %v1250
      %v1340 = vpack.c.b16 %v1253, %v1252
      %v1341 = vpack.c.b16 %v1255, %v1254
      %v1342 = vpack.c.b16 %v1257, %v1256
      %v1343 = vpack.c.b16 %v1259, %v1258
      %v1344 = vpack.c.b16 %v1261, %v1260
      %v1345 = vpack.c.b16 %v1263, %v1262
      %v1346 = vpack.c.b16 %v1265, %v1264
      %v1347 = vpack.c.b16 %v1267, %v1266
      %v1348 = vpack.c.b16 %v1269, %v1268
      %v1349 = vpack.c.b16 %v1271, %v1270
      %v1350 = vpack.c.b16 %v1273, %v1272
      %v1351 = vpack.c.b16 %v1275, %v1274
      %v1352 = vpack.c.b16 %v1277, %v1276
      %v1353 = vpack.c.b16 %v1279, %v1278
      %v1354 = vpack.c.b16 %v1281, %v1280
      %v1355 = vpack.c.b16 %v1283, %v1282
      %v1356 = vpack.c.b16 %v1285, %v1284
      %v1357 = vpack.c.b16 %v1287, %v1286
      %v1358 = vpack.c.b16 %v1289, %v1288
      %v1359 = vpack.c.b16 %v1291, %v1290
      %v1360 = vpack.c.b16 %v1293, %v1292
      %v1361 = vpack.c.b16 %v1295, %v1294
      %v1362 = vpack.c.b16 %v1297, %v1296
      %v1363 = vpack.c.b16 %v1299, %v1298
      %v1364 = vpack.c.b16 %v1301, %v1300
      %v1365 = vpack.c.b16 %v1303, %v1302
      %v1366 = vpack.c.b16 %v1305, %v1304
      %v1367 = vpack.c.b16 %v1307, %v1306
      %v1368 = vpack.c.b16 %v1309, %v1308
      %v1369 = vpack.c.b16 %v1311, %v1310
      %v1370 = vpack.c.b16 %v1313, %v1312
      %v1371 = vpack.c.b16 %v1315, %v1314
      %v1372 = vpack.c.b16 %v1317, %v1316
      %v1373 = vpack.c.b16 %v1319, %v1318
      %v1374 = vpack.c.b16 %v1321, %v1320
      %v1375 = vpack.c.b16 %v1323, %v1322
      %v1376 = vpack.c.b16 %v1325, %v1324
      %v1377 = vpack.c.b16 %v1327, %v1326
      %v1378 = vpack.c.b16 %v1329, %v1328
      %vm1428 = vcmask 130048
      %v1430 = vsel %vm1428, %v1010, 0
      %v1433 = vsel %vm1428, %v1017, 0
      %v1436 = vsel %vm1428, %v1024, 0
      %v1439 = vsel %vm1428, %v1031, 0
      %v1442 = vsel %vm1428, %v1038, 0
      %v1445 = vsel %vm1428, %v1045, 0
      %v1448 = vsel %vm1428, %v1052, 0
      %v1451 = vsel %vm1428, %v1059, 0
      %v1454 = vsel %vm1428, %v1066, 0
      %v1457 = vsel %vm1428, %v1073, 0
      %1459 = vmatprep.subr.bf16.mxu0 0
      %1460 = vmatpush1.bf16.msra.mxu0 %v1330
      %1461 = vmatprep.subr.bf16.mxu0 0
      %1462 = vmatpush1.bf16.msra.mxu0 %v1331
      %1463 = vmatprep.subr.bf16.mxu0 0
      %1464 = vmatpush1.bf16.msra.mxu0 %v1332
      %1465 = vmatprep.subr.bf16.mxu0 0
      %1466 = vmatpush1.bf16.msra.mxu0 %v1333
      %1467 = vmatprep.subr.bf16.mxu0 0
      %1468 = vmatpush1.bf16.msra.mxu0 %v1334
      %1469 = vmatprep.subr.bf16.mxu0 0
      %1470 = vmatpush1.bf16.msra.mxu0 %v1335
      %1471 = vmatprep.subr.bf16.mxu0 0
      %1472 = vmatpush1.bf16.msra.mxu0 %v1336
      %1473 = vmatprep.subr.bf16.mxu0 0
      %1474 = vmatpush1.bf16.msra.mxu0 %v1337
      %1475 = vmatprep.subr.bf16.mxu0 0
      %1476 = vmatpush1.bf16.msra.mxu0 %v1338
      %1477 = vmatprep.subr.bf16.mxu0 0
      %1478 = vmatpush1.bf16.msra.mxu0 %v1339
      %1479 = vmatprep.subr.bf16.mxu0 0
      %1480 = vmatpush1.bf16.msra.mxu0 %v1340
      %1481 = vmatprep.subr.bf16.mxu0 0
      %1482 = vmatpush1.bf16.msra.mxu0 %v1341
      %1483 = vmatprep.subr.bf16.mxu0 0
      %1484 = vmatpush1.bf16.msra.mxu0 %v1342
      %1485 = vmatprep.subr.bf16.mxu0 0
      %1486 = vmatpush1.bf16.msra.mxu0 %v1343
      %1487 = vmatprep.subr.bf16.mxu0 0
      %1488 = vmatpush1.bf16.msra.mxu0 %v1344
      %1489 = vmatprep.subr.bf16.mxu0 0
      %1490 = vmatpush1.bf16.msra.mxu0 %v1345
      %1491 = vmatprep.mubr.bf16.mxu0 %v1005
      %1492 = vmatmul.mubr.bf16.gmra.mrb[0].mxu0 %v1004
      %v1493 = vpop.f32.mrb[0].mxu0
      %v1494 = vadd.f32 %v782, %v1493
      %v1495 = vpop.f32.mrb[0].mxu0
      %v1496 = vpop.f32.mrb[0].mxu0
      %v1497 = vadd.f32 %v782, %v1496
      %v1498 = vpop.f32.mrb[0].mxu0
      %1499 = vmatprep.mubr.bf16.mxu0 %v1012
      %1500 = vmatmul.mubr.bf16.gmra.mrb[0].mxu0 %v1011
      %v1501 = vpop.f32.mrb[0].mxu0
      %v1502 = vadd.f32 %v782, %v1501
      %v1503 = vpop.f32.mrb[0].mxu0
      %v1504 = vpop.f32.mrb[0].mxu0
      %v1505 = vadd.f32 %v782, %v1504
      %v1506 = vpop.f32.mrb[0].mxu0
      %1507 = vmatprep.mubr.bf16.mxu0 %v1019
      %1508 = vmatmul.mubr.bf16.gmra.mrb[0].mxu0 %v1018
      %v1509 = vpop.f32.mrb[0].mxu0
      %v1510 = vadd.f32 %v782, %v1509
      %v1511 = vpop.f32.mrb[0].mxu0
      %v1512 = vpop.f32.mrb[0].mxu0
      %v1513 = vadd.f32 %v782, %v1512
      %v1514 = vpop.f32.mrb[0].mxu0
      %1515 = vmatprep.mubr.bf16.mxu0 %v1026
      %1516 = vmatmul.mubr.bf16.gmra.mrb[0].mxu0 %v1025
      %v1517 = vpop.f32.mrb[0].mxu0
      %v1518 = vadd.f32 %v782, %v1517
      %v1519 = vpop.f32.mrb[0].mxu0
      %v1520 = vpop.f32.mrb[0].mxu0
      %v1521 = vadd.f32 %v782, %v1520
      %v1522 = vpop.f32.mrb[0].mxu0
      %1523 = vmatprep.mubr.bf16.mxu0 %v1033
      %1524 = vmatmul.mubr.bf16.gmra.mrb[0].mxu0 %v1032
      %v1525 = vpop.f32.mrb[0].mxu0
      %v1526 = vadd.f32 %v782, %v1525
      %v1527 = vpop.f32.mrb[0].mxu0
      %v1528 = vpop.f32.mrb[0].mxu0
      %v1529 = vadd.f32 %v782, %v1528
      %v1530 = vpop.f32.mrb[0].mxu0
      %1531 = vmatprep.mubr.bf16.mxu0 %v1040
      %1532 = vmatmul.mubr.bf16.gmra.mrb[0].mxu0 %v1039
      %v1533 = vpop.f32.mrb[0].mxu0
      %v1534 = vadd.f32 %v782, %v1533
      %v1535 = vpop.f32.mrb[0].mxu0
      %v1536 = vpop.f32.mrb[0].mxu0
      %v1537 = vadd.f32 %v782, %v1536
      %v1538 = vpop.f32.mrb[0].mxu0
      %1539 = vmatprep.mubr.bf16.mxu0 %v1047
      %1540 = vmatmul.mubr.bf16.gmra.mrb[0].mxu0 %v1046
      %v1541 = vpop.f32.mrb[0].mxu0
      %v1542 = vadd.f32 %v782, %v1541
      %v1543 = vpop.f32.mrb[0].mxu0
      %v1544 = vpop.f32.mrb[0].mxu0
      %v1545 = vadd.f32 %v782, %v1544
      %v1546 = vpop.f32.mrb[0].mxu0
      %1547 = vmatprep.mubr.bf16.mxu0 %v1054
      %1548 = vmatmul.mubr.bf16.gmra.mrb[0].mxu0 %v1053
      %v1549 = vpop.f32.mrb[0].mxu0
      %v1550 = vadd.f32 %v782, %v1549
      %v1551 = vpop.f32.mrb[0].mxu0
      %v1552 = vpop.f32.mrb[0].mxu0
      %v1553 = vadd.f32 %v782, %v1552
      %v1554 = vpop.f32.mrb[0].mxu0
      %1555 = vmatprep.mubr.bf16.mxu0 %v1061
      %1556 = vmatmul.mubr.bf16.gmra.mrb[0].mxu0 %v1060
      %v1557 = vpop.f32.mrb[0].mxu0
      %v1558 = vadd.f32 %v782, %v1557
      %v1559 = vpop.f32.mrb[0].mxu0
      %v1560 = vpop.f32.mrb[0].mxu0
      %v1561 = vadd.f32 %v782, %v1560
      %v1562 = vpop.f32.mrb[0].mxu0
      %1563 = vmatprep.mubr.bf16.mxu0 %v1068
      %1564 = vmatmul.mubr.bf16.gmra.mrb[0].mxu0 %v1067
      %v1565 = vpop.f32.mrb[0].mxu0
      %v1566 = vadd.f32 %v782, %v1565
      %v1567 = vpop.f32.mrb[0].mxu0
      %v1568 = vpop.f32.mrb[0].mxu0
      %v1569 = vadd.f32 %v782, %v1568
      %v1570 = vpop.f32.mrb[0].mxu0
      %1571 = vdwg.mxu0
      %1572 = vmatprep.subr.bf16.mxu0 0
      %1573 = vmatpush1.bf16.msra.mxu0 %v1346
      %1574 = vmatprep.subr.bf16.mxu0 0
      %1575 = vmatpush1.bf16.msra.mxu0 %v1347
      %1576 = vmatprep.subr.bf16.mxu0 0
      %1577 = vmatpush1.bf16.msra.mxu0 %v1348
      %1578 = vmatprep.subr.bf16.mxu0 0
      %1579 = vmatpush1.bf16.msra.mxu0 %v1349
      %1580 = vmatprep.subr.bf16.mxu0 0
      %1581 = vmatpush1.bf16.msra.mxu0 %v1350
      %1582 = vmatprep.subr.bf16.mxu0 0
      %1583 = vmatpush1.bf16.msra.mxu0 %v1351
      %1584 = vmatprep.subr.bf16.mxu0 0
      %1585 = vmatpush1.bf16.msra.mxu0 %v1352
      %1586 = vmatprep.subr.bf16.mxu0 0
      %1587 = vmatpush1.bf16.msra.mxu0 %v1353
      %1588 = vmatprep.subr.bf16.mxu0 0
      %1589 = vmatpush1.bf16.msra.mxu0 %v1354
      %1590 = vmatprep.subr.bf16.mxu0 0
      %1591 = vmatpush1.bf16.msra.mxu0 %v1355
      %1592 = vmatprep.subr.bf16.mxu0 0
      %1593 = vmatpush1.bf16.msra.mxu0 %v1356
      %1594 = vmatprep.subr.bf16.mxu0 0
      %1595 = vmatpush1.bf16.msra.mxu0 %v1357
      %1596 = vmatprep.subr.bf16.mxu0 0
      %1597 = vmatpush1.bf16.msra.mxu0 %v1358
      %1598 = vmatprep.subr.bf16.mxu0 0
      %1599 = vmatpush1.bf16.msra.mxu0 %v1359
      %1600 = vmatprep.subr.bf16.mxu0 0
      %1601 = vmatpush1.bf16.msra.mxu0 %v1360
      %1602 = vmatprep.subr.bf16.mxu0 0
      %1603 = vmatpush1.bf16.msra.mxu0 %v1361
      %1604 = vmatprep.mubr.bf16.mxu0 %v1007
      %1605 = vmatmul.mubr.bf16.gmra.mrb[0].mxu0 %v1006
      %v1606 = vpop.f32.mrb[0].mxu0
      %v1607 = vadd.f32 %v1494, %v1606
      %v1608 = vpop.f32.mrb[0].mxu0
      %v1609 = vpop.f32.mrb[0].mxu0
      %v1610 = vadd.f32 %v1497, %v1609
      %v1611 = vpop.f32.mrb[0].mxu0
      %1612 = vmatprep.mubr.bf16.mxu0 %v1014
      %1613 = vmatmul.mubr.bf16.gmra.mrb[0].mxu0 %v1013
      %v1614 = vpop.f32.mrb[0].mxu0
      %v1615 = vadd.f32 %v1502, %v1614
      %v1616 = vpop.f32.mrb[0].mxu0
      %v1617 = vpop.f32.mrb[0].mxu0
      %v1618 = vadd.f32 %v1505, %v1617
      %v1619 = vpop.f32.mrb[0].mxu0
      %1620 = vmatprep.mubr.bf16.mxu0 %v1021
      %1621 = vmatmul.mubr.bf16.gmra.mrb[0].mxu0 %v1020
      %v1622 = vpop.f32.mrb[0].mxu0
      %v1623 = vadd.f32 %v1510, %v1622
      %v1624 = vpop.f32.mrb[0].mxu0
      %v1625 = vpop.f32.mrb[0].mxu0
      %v1626 = vadd.f32 %v1513, %v1625
      %v1627 = vpop.f32.mrb[0].mxu0
      %1628 = vmatprep.mubr.bf16.mxu0 %v1028
      %1629 = vmatmul.mubr.bf16.gmra.mrb[0].mxu0 %v1027
      %v1630 = vpop.f32.mrb[0].mxu0
      %v1631 = vadd.f32 %v1518, %v1630
      %v1632 = vpop.f32.mrb[0].mxu0
      %v1633 = vpop.f32.mrb[0].mxu0
      %v1634 = vadd.f32 %v1521, %v1633
      %v1635 = vpop.f32.mrb[0].mxu0
      %1636 = vmatprep.mubr.bf16.mxu0 %v1035
      %1637 = vmatmul.mubr.bf16.gmra.mrb[0].mxu0 %v1034
      %v1638 = vpop.f32.mrb[0].mxu0
      %v1639 = vadd.f32 %v1526, %v1638
      %v1640 = vpop.f32.mrb[0].mxu0
      %v1641 = vpop.f32.mrb[0].mxu0
      %v1642 = vadd.f32 %v1529, %v1641
      %v1643 = vpop.f32.mrb[0].mxu0
      %1644 = vmatprep.mubr.bf16.mxu0 %v1042
      %1645 = vmatmul.mubr.bf16.gmra.mrb[0].mxu0 %v1041
      %v1646 = vpop.f32.mrb[0].mxu0
      %v1647 = vadd.f32 %v1534, %v1646
      %v1648 = vpop.f32.mrb[0].mxu0
      %v1649 = vpop.f32.mrb[0].mxu0
      %v1650 = vadd.f32 %v1537, %v1649
      %v1651 = vpop.f32.mrb[0].mxu0
      %1652 = vmatprep.mubr.bf16.mxu0 %v1049
      %1653 = vmatmul.mubr.bf16.gmra.mrb[0].mxu0 %v1048
      %v1654 = vpop.f32.mrb[0].mxu0
      %v1655 = vadd.f32 %v1542, %v1654
      %v1656 = vpop.f32.mrb[0].mxu0
      %v1657 = vpop.f32.mrb[0].mxu0
      %v1658 = vadd.f32 %v1545, %v1657
      %v1659 = vpop.f32.mrb[0].mxu0
      %1660 = vmatprep.mubr.bf16.mxu0 %v1056
      %1661 = vmatmul.mubr.bf16.gmra.mrb[0].mxu0 %v1055
      %v1662 = vpop.f32.mrb[0].mxu0
      %v1663 = vadd.f32 %v1550, %v1662
      %v1664 = vpop.f32.mrb[0].mxu0
      %v1665 = vpop.f32.mrb[0].mxu0
      %v1666 = vadd.f32 %v1553, %v1665
      %v1667 = vpop.f32.mrb[0].mxu0
      %1668 = vmatprep.mubr.bf16.mxu0 %v1063
      %1669 = vmatmul.mubr.bf16.gmra.mrb[0].mxu0 %v1062
      %v1670 = vpop.f32.mrb[0].mxu0
      %v1671 = vadd.f32 %v1558, %v1670
      %v1672 = vpop.f32.mrb[0].mxu0
      %v1673 = vpop.f32.mrb[0].mxu0
      %v1674 = vadd.f32 %v1561, %v1673
      %v1675 = vpop.f32.mrb[0].mxu0
      %1676 = vmatprep.mubr.bf16.mxu0 %v1070
      %1677 = vmatmul.mubr.bf16.gmra.mrb[0].mxu0 %v1069
      %v1678 = vpop.f32.mrb[0].mxu0
      %v1679 = vadd.f32 %v1566, %v1678
      %v1680 = vpop.f32.mrb[0].mxu0
      %v1681 = vpop.f32.mrb[0].mxu0
      %v1682 = vadd.f32 %v1569, %v1681
      %v1683 = vpop.f32.mrb[0].mxu0
      %1684 = vdwg.mxu0
      %1685 = vmatprep.subr.bf16.mxu0 0
      %1686 = vmatpush1.bf16.msra.mxu0 %v1362
      %1687 = vmatprep.subr.bf16.mxu0 0
      %1688 = vmatpush1.bf16.msra.mxu0 %v1363
      %1689 = vmatprep.subr.bf16.mxu0 0
      %1690 = vmatpush1.bf16.msra.mxu0 %v1364
      %1691 = vmatprep.subr.bf16.mxu0 0
      %1692 = vmatpush1.bf16.msra.mxu0 %v1365
      %1693 = vmatprep.subr.bf16.mxu0 0
      %1694 = vmatpush1.bf16.msra.mxu0 %v1366
      %1695 = vmatprep.subr.bf16.mxu0 0
      %1696 = vmatpush1.bf16.msra.mxu0 %v1367
      %1697 = vmatprep.subr.bf16.mxu0 0
      %1698 = vmatpush1.bf16.msra.mxu0 %v1368
      %1699 = vmatprep.subr.bf16.mxu0 0
      %1700 = vmatpush1.bf16.msra.mxu0 %v1369
      %1701 = vmatprep.subr.bf16.mxu0 0
      %1702 = vmatpush1.bf16.msra.mxu0 %v1370
      %1703 = vmatprep.subr.bf16.mxu0 0
      %1704 = vmatpush1.bf16.msra.mxu0 %v1371
      %1705 = vmatprep.subr.bf16.mxu0 0
      %1706 = vmatpush1.bf16.msra.mxu0 %v1372
      %1707 = vmatprep.subr.bf16.mxu0 0
      %1708 = vmatpush1.bf16.msra.mxu0 %v1373
      %1709 = vmatprep.subr.bf16.mxu0 0
      %1710 = vmatpush1.bf16.msra.mxu0 %v1374
      %1711 = vmatprep.subr.bf16.mxu0 0
      %1712 = vmatpush1.bf16.msra.mxu0 %v1375
      %1713 = vmatprep.subr.bf16.mxu0 0
      %1714 = vmatpush1.bf16.msra.mxu0 %v1376
      %1715 = vmatprep.subr.bf16.mxu0 0
      %1716 = vmatpush1.bf16.msra.mxu0 %v1377
      %1717 = vmatprep.mubr.bf16.mxu0 %v1009
      %1718 = vmatmul.mubr.bf16.gmra.mrb[0].mxu0 %v1008
      %v1719 = vpop.f32.mrb[0].mxu0
      %v1720 = vadd.f32 %v1607, %v1719
      %v1721 = vpop.f32.mrb[0].mxu0
      %v1722 = vpop.f32.mrb[0].mxu0
      %v1723 = vadd.f32 %v1610, %v1722
      %v1724 = vpop.f32.mrb[0].mxu0
      %1725 = vmatprep.mubr.bf16.mxu0 %v1016
      %1726 = vmatmul.mubr.bf16.gmra.mrb[0].mxu0 %v1015
      %v1727 = vpop.f32.mrb[0].mxu0
      %v1728 = vadd.f32 %v1615, %v1727
      %v1729 = vpop.f32.mrb[0].mxu0
      %v1730 = vpop.f32.mrb[0].mxu0
      %v1731 = vadd.f32 %v1618, %v1730
      %v1732 = vpop.f32.mrb[0].mxu0
      %1733 = vmatprep.mubr.bf16.mxu0 %v1023
      %1734 = vmatmul.mubr.bf16.gmra.mrb[0].mxu0 %v1022
      %v1735 = vpop.f32.mrb[0].mxu0
      %v1736 = vadd.f32 %v1623, %v1735
      %v1737 = vpop.f32.mrb[0].mxu0
      %v1738 = vpop.f32.mrb[0].mxu0
      %v1739 = vadd.f32 %v1626, %v1738
      %v1740 = vpop.f32.mrb[0].mxu0
      %1741 = vmatprep.mubr.bf16.mxu0 %v1030
      %1742 = vmatmul.mubr.bf16.gmra.mrb[0].mxu0 %v1029
      %v1743 = vpop.f32.mrb[0].mxu0
      %v1744 = vadd.f32 %v1631, %v1743
      %v1745 = vpop.f32.mrb[0].mxu0
      %v1746 = vpop.f32.mrb[0].mxu0
      %v1747 = vadd.f32 %v1634, %v1746
      %v1748 = vpop.f32.mrb[0].mxu0
      %1749 = vmatprep.mubr.bf16.mxu0 %v1037
      %1750 = vmatmul.mubr.bf16.gmra.mrb[0].mxu0 %v1036
      %v1751 = vpop.f32.mrb[0].mxu0
      %v1752 = vadd.f32 %v1639, %v1751
      %v1753 = vpop.f32.mrb[0].mxu0
      %v1754 = vpop.f32.mrb[0].mxu0
      %v1755 = vadd.f32 %v1642, %v1754
      %v1756 = vpop.f32.mrb[0].mxu0
      %1757 = vmatprep.mubr.bf16.mxu0 %v1044
      %1758 = vmatmul.mubr.bf16.gmra.mrb[0].mxu0 %v1043
      %v1759 = vpop.f32.mrb[0].mxu0
      %v1760 = vadd.f32 %v1647, %v1759
      %v1761 = vpop.f32.mrb[0].mxu0
      %v1762 = vpop.f32.mrb[0].mxu0
      %v1763 = vadd.f32 %v1650, %v1762
      %v1764 = vpop.f32.mrb[0].mxu0
      %1765 = vmatprep.mubr.bf16.mxu0 %v1051
      %1766 = vmatmul.mubr.bf16.gmra.mrb[0].mxu0 %v1050
      %v1767 = vpop.f32.mrb[0].mxu0
      %v1768 = vadd.f32 %v1655, %v1767
      %v1769 = vpop.f32.mrb[0].mxu0
      %v1770 = vpop.f32.mrb[0].mxu0
      %v1771 = vadd.f32 %v1658, %v1770
      %v1772 = vpop.f32.mrb[0].mxu0
      %1773 = vmatprep.mubr.bf16.mxu0 %v1058
      %1774 = vmatmul.mubr.bf16.gmra.mrb[0].mxu0 %v1057
      %v1775 = vpop.f32.mrb[0].mxu0
      %v1776 = vadd.f32 %v1663, %v1775
      %v1777 = vpop.f32.mrb[0].mxu0
      %v1778 = vpop.f32.mrb[0].mxu0
      %v1779 = vadd.f32 %v1666, %v1778
      %v1780 = vpop.f32.mrb[0].mxu0
      %1781 = vmatprep.mubr.bf16.mxu0 %v1065
      %1782 = vmatmul.mubr.bf16.gmra.mrb[0].mxu0 %v1064
      %v1783 = vpop.f32.mrb[0].mxu0
      %v1784 = vadd.f32 %v1671, %v1783
      %v1785 = vpop.f32.mrb[0].mxu0
      %v1786 = vpop.f32.mrb[0].mxu0
      %v1787 = vadd.f32 %v1674, %v1786
      %v1788 = vpop.f32.mrb[0].mxu0
      %1789 = vmatprep.mubr.bf16.mxu0 %v1072
      %1790 = vmatmul.mubr.bf16.gmra.mrb[0].mxu0 %v1071
      %v1791 = vpop.f32.mrb[0].mxu0
      %v1792 = vadd.f32 %v1679, %v1791
      %v1793 = vpop.f32.mrb[0].mxu0
      %v1794 = vpop.f32.mrb[0].mxu0
      %v1795 = vadd.f32 %v1682, %v1794
      %v1796 = vpop.f32.mrb[0].mxu0
      %1797 = vdwg.mxu0
      %1798 = vmatprep.subr.bf16.mxu0 0
      %1799 = vmatpush1.bf16.msra.mxu0 %v1378
      %1800 = vmatprep.subr.bf16.mxu0 0
      %1801 = vmatpush1.bf16.msra.mxu0 0
      %1802 = vmatprep.subr.bf16.mxu0 0
      %1803 = vmatpush1.bf16.msra.mxu0 0
      %1804 = vmatprep.subr.bf16.mxu0 0
      %1805 = vmatpush1.bf16.msra.mxu0 0
      %1806 = vmatprep.subr.bf16.mxu0 0
      %1807 = vmatpush1.bf16.msra.mxu0 0
      %1808 = vmatprep.subr.bf16.mxu0 0
      %1809 = vmatpush1.bf16.msra.mxu0 0
      %1810 = vmatprep.subr.bf16.mxu0 0
      %1811 = vmatpush1.bf16.msra.mxu0 0
      %1812 = vmatprep.subr.bf16.mxu0 0
      %1813 = vmatpush1.bf16.msra.mxu0 0
      %1814 = vmatprep.subr.bf16.mxu0 0
      %1815 = vmatpush1.bf16.msra.mxu0 0
      %1816 = vmatprep.subr.bf16.mxu0 0
      %1817 = vmatpush1.bf16.msra.mxu0 0
      %1818 = vmatprep.subr.bf16.mxu0 0
      %1819 = vmatpush1.bf16.msra.mxu0 0
      %1820 = vmatprep.subr.bf16.mxu0 0
      %1821 = vmatpush1.bf16.msra.mxu0 0
      %1822 = vmatprep.subr.bf16.mxu0 0
      %1823 = vmatpush1.bf16.msra.mxu0 0
      %1824 = vmatprep.subr.bf16.mxu0 0
      %1825 = vmatpush1.bf16.msra.mxu0 0
      %1826 = vmatprep.subr.bf16.mxu0 0
      %1827 = vmatpush1.bf16.msra.mxu0 0
      %1828 = vmatprep.subr.bf16.mxu0 0
      %1829 = vmatpush1.bf16.msra.mxu0 0
      %1830 = vmatprep.mubr.bf16.mxu0 0
      %1831 = vmatmul.mubr.bf16.gmra.mrb[0].mxu0 %v1430
      %v1832 = vpop.f32.mrb[0].mxu0
      %v1833 = vadd.f32 %v1720, %v1832
      %v1834 = vpop.f32.mrb[0].mxu0
      %v1835 = vpop.f32.mrb[0].mxu0
      %v1836 = vadd.f32 %v1723, %v1835
      %v1837 = vpop.f32.mrb[0].mxu0
      %1838 = vmatprep.mubr.bf16.mxu0 0
      %1839 = vmatmul.mubr.bf16.gmra.mrb[0].mxu0 %v1433
      %v1840 = vpop.f32.mrb[0].mxu0
      %v1841 = vadd.f32 %v1728, %v1840
      %v1842 = vpop.f32.mrb[0].mxu0
      %v1843 = vpop.f32.mrb[0].mxu0
      %v1844 = vadd.f32 %v1731, %v1843
      %v1845 = vpop.f32.mrb[0].mxu0
      %1846 = vmatprep.mubr.bf16.mxu0 0
      %1847 = vmatmul.mubr.bf16.gmra.mrb[0].mxu0 %v1436
      %v1848 = vpop.f32.mrb[0].mxu0
      %v1849 = vadd.f32 %v1736, %v1848
      %v1850 = vpop.f32.mrb[0].mxu0
      %v1851 = vpop.f32.mrb[0].mxu0
      %v1852 = vadd.f32 %v1739, %v1851
      %v1853 = vpop.f32.mrb[0].mxu0
      %1854 = vmatprep.mubr.bf16.mxu0 0
      %1855 = vmatmul.mubr.bf16.gmra.mrb[0].mxu0 %v1439
      %v1856 = vpop.f32.mrb[0].mxu0
      %v1857 = vadd.f32 %v1744, %v1856
      %v1858 = vpop.f32.mrb[0].mxu0
      %v1859 = vpop.f32.mrb[0].mxu0
      %v1860 = vadd.f32 %v1747, %v1859
      %v1861 = vpop.f32.mrb[0].mxu0
      %1862 = vmatprep.mubr.bf16.mxu0 0
      %1863 = vmatmul.mubr.bf16.gmra.mrb[0].mxu0 %v1442
      %v1864 = vpop.f32.mrb[0].mxu0
      %v1865 = vadd.f32 %v1752, %v1864
      %v1866 = vpop.f32.mrb[0].mxu0
      %v1867 = vpop.f32.mrb[0].mxu0
      %v1868 = vadd.f32 %v1755, %v1867
      %v1869 = vpop.f32.mrb[0].mxu0
      %1870 = vmatprep.mubr.bf16.mxu0 0
      %1871 = vmatmul.mubr.bf16.gmra.mrb[0].mxu0 %v1445
      %v1872 = vpop.f32.mrb[0].mxu0
      %v1873 = vadd.f32 %v1760, %v1872
      %v1874 = vpop.f32.mrb[0].mxu0
      %v1875 = vpop.f32.mrb[0].mxu0
      %v1876 = vadd.f32 %v1763, %v1875
      %v1877 = vpop.f32.mrb[0].mxu0
      %1878 = vmatprep.mubr.bf16.mxu0 0
      %1879 = vmatmul.mubr.bf16.gmra.mrb[0].mxu0 %v1448
      %v1880 = vpop.f32.mrb[0].mxu0
      %v1881 = vadd.f32 %v1768, %v1880
      %v1882 = vpop.f32.mrb[0].mxu0
      %v1883 = vpop.f32.mrb[0].mxu0
      %v1884 = vadd.f32 %v1771, %v1883
      %v1885 = vpop.f32.mrb[0].mxu0
      %1886 = vmatprep.mubr.bf16.mxu0 0
      %1887 = vmatmul.mubr.bf16.gmra.mrb[0].mxu0 %v1451
      %v1888 = vpop.f32.mrb[0].mxu0
      %v1889 = vadd.f32 %v1776, %v1888
      %v1890 = vpop.f32.mrb[0].mxu0
      %v1891 = vpop.f32.mrb[0].mxu0
      %v1892 = vadd.f32 %v1779, %v1891
      %v1893 = vpop.f32.mrb[0].mxu0
      %1894 = vmatprep.mubr.bf16.mxu0 0
      %1895 = vmatmul.mubr.bf16.gmra.mrb[0].mxu0 %v1454
      %v1896 = vpop.f32.mrb[0].mxu0
      %v1897 = vadd.f32 %v1784, %v1896
      %v1898 = vpop.f32.mrb[0].mxu0
      %v1899 = vpop.f32.mrb[0].mxu0
      %v1900 = vadd.f32 %v1787, %v1899
      %v1901 = vpop.f32.mrb[0].mxu0
      %1902 = vmatprep.mubr.bf16.mxu0 0
      %1903 = vmatmul.mubr.bf16.gmra.mrb[0].mxu0 %v1457
      %v1904 = vpop.f32.mrb[0].mxu0
      %v1905 = vadd.f32 %v1792, %v1904
      %v1906 = vpop.f32.mrb[0].mxu0
      %v1907 = vpop.f32.mrb[0].mxu0
      %v1908 = vadd.f32 %v1795, %v1907
      %v1909 = vpop.f32.mrb[0].mxu0
      %1910 = vdwg.mxu0
      %v1911 = vtanh.pop %v1833
      %v1912 = vtanh.pop %v1836
      %v1913 = vtanh.pop %v1841
      %v1914 = vtanh.pop %v1844
      %v1915 = vtanh.pop %v1849
      %v1916 = vtanh.pop %v1852
      %v1917 = vtanh.pop %v1857
      %v1918 = vtanh.pop %v1860
      %v1919 = vtanh.pop %v1865
      %v1920 = vtanh.pop %v1868
      %v1921 = vtanh.pop %v1873
      %v1922 = vtanh.pop %v1876
      %v1923 = vtanh.pop %v1881
      %v1924 = vtanh.pop %v1884
      %v1925 = vtanh.pop %v1889
      %v1926 = vtanh.pop %v1892
      %v1927 = vtanh.pop %v1897
      %v1928 = vtanh.pop %v1900
      %v1929 = vtanh.pop %v1905
      %v1930 = vtanh.pop %v1908
      %v1931 = vpack.c.bf16 %v1912, %v1911
      %v1932 = vpack.c.bf16 %v1914, %v1913
      %v1933 = vpack.c.bf16 %v1916, %v1915
      %v1934 = vpack.c.bf16 %v1918, %v1917
      %v1935 = vpack.c.bf16 %v1920, %v1919
      %v1936 = vpack.c.bf16 %v1922, %v1921
      %v1937 = vpack.c.bf16 %v1924, %v1923
      %v1938 = vpack.c.bf16 %v1926, %v1925
      %v1939 = vpack.c.bf16 %v1928, %v1927
      %v1940 = vpack.c.bf16 %v1930, %v1929
      %v1941 = vld [vmem:[%s3] sm:$0xf]
      %v1942 = vld [vmem:[%s3 + $0x4] sm:$0xf]
      %v1943 = vld [vmem:[%s3 + $0x8] sm:$0xf]
      %v1944 = vld [vmem:[%s3 + $0xc] sm:$0xf]
      %v1945 = vld [vmem:[%s3 + $0x10] sm:$0xf]
      %v1946 = vld [vmem:[%s3 + $0x14] sm:$0xf]
      %v1947 = vld [vmem:[%s3 + $0x18] sm:$0xf]
      %v1948 = vld [vmem:[%s3 + $0x1c] sm:$0xf]
      %v1949 = vld [vmem:[%s3 + $0x20] sm:$0xf]
      %v1950 = vld [vmem:[%s3 + $0x24] sm:$0xf]
      %v1951 = vld [vmem:[%s3 + $0x28] sm:$0xf]
      %v1952 = vld [vmem:[%s3 + $0x2c] sm:$0xf]
      %v1953 = vld [vmem:[%s3 + $0x30] sm:$0xf]
      %v1954 = vld [vmem:[%s3 + $0x34] sm:$0xf]
      %v1955 = vld [vmem:[%s3 + $0x38] sm:$0xf]
      %v1956 = vld [vmem:[%s3 + $0x3c] sm:$0xf]
      %v1957 = vld [vmem:[%s4] sm:$0x1]
      %v1959 = vlaneseq
      %v1960 = vshrl.u32 %v1959, 7
      %v1961 = vsub.s32 0, %v1960
      %v1962 = vrot.slane %v1957, %v1961
      %v1980 = vunpack.c.l.b16 %v1941
      %v1981 = vunpack.c.l.b16 %v1942
      %v1982 = vunpack.c.l.b16 %v1943
      %v1983 = vunpack.c.l.b16 %v1944
      %v1984 = vunpack.c.l.b16 %v1945
      %v1985 = vunpack.c.l.b16 %v1946
      %v1986 = vunpack.c.l.b16 %v1947
      %v1987 = vunpack.c.l.b16 %v1948
      %v1988 = vunpack.c.l.b16 %v1949
      %v1989 = vunpack.c.l.b16 %v1950
      %v1990 = vunpack.c.l.b16 %v1951
      %v1991 = vunpack.c.l.b16 %v1952
      %v1992 = vunpack.c.l.b16 %v1953
      %v1993 = vunpack.c.l.b16 %v1954
      %v1994 = vunpack.c.l.b16 %v1955
      %v1995 = vunpack.c.l.b16 %v1956
      %v1996 = vpack.c.b16 %v1981, %v1980
      %v1997 = vpack.c.b16 %v1983, %v1982
      %v1998 = vpack.c.b16 %v1985, %v1984
      %v1999 = vpack.c.b16 %v1987, %v1986
      %v2000 = vpack.c.b16 %v1989, %v1988
      %v2001 = vpack.c.b16 %v1991, %v1990
      %v2002 = vpack.c.b16 %v1993, %v1992
      %v2003 = vpack.c.b16 %v1995, %v1994
      %2012 = vmatprep.subr.bf16.mxu0 0
      %2013 = vmatpush1.bf16.msra.mxu0 %v1996
      %2014 = vmatprep.subr.bf16.mxu0 0
      %2015 = vmatpush1.bf16.msra.mxu0 %v1997
      %2016 = vmatprep.subr.bf16.mxu0 0
      %2017 = vmatpush1.bf16.msra.mxu0 %v1998
      %2018 = vmatprep.subr.bf16.mxu0 0
      %2019 = vmatpush1.bf16.msra.mxu0 %v1999
      %2020 = vmatprep.subr.bf16.mxu0 0
      %2021 = vmatpush1.bf16.msra.mxu0 %v2000
      %2022 = vmatprep.subr.bf16.mxu0 0
      %2023 = vmatpush1.bf16.msra.mxu0 %v2001
      %2024 = vmatprep.subr.bf16.mxu0 0
      %2025 = vmatpush1.bf16.msra.mxu0 %v2002
      %2026 = vmatprep.subr.bf16.mxu0 0
      %2027 = vmatpush1.bf16.msra.mxu0 %v2003
      %2028 = vmatprep.subr.bf16.mxu0 0
      %2029 = vmatpush1.bf16.msra.mxu0 0
      %2030 = vmatprep.subr.bf16.mxu0 0
      %2031 = vmatpush1.bf16.msra.mxu0 0
      %2032 = vmatprep.subr.bf16.mxu0 0
      %2033 = vmatpush1.bf16.msra.mxu0 0
      %2034 = vmatprep.subr.bf16.mxu0 0
      %2035 = vmatpush1.bf16.msra.mxu0 0
      %2036 = vmatprep.subr.bf16.mxu0 0
      %2037 = vmatpush1.bf16.msra.mxu0 0
      %2038 = vmatprep.subr.bf16.mxu0 0
      %2039 = vmatpush1.bf16.msra.mxu0 0
      %2040 = vmatprep.subr.bf16.mxu0 0
      %2041 = vmatpush1.bf16.msra.mxu0 0
      %2042 = vmatprep.subr.bf16.mxu0 0
      %2043 = vmatpush1.bf16.msra.mxu0 0
      %2044 = vmatprep.mubr.bf16.mxu0 0
      %2045 = vmatmul.mubr.bf16.gmra.mrb[0].mxu0 %v1931
      %v2046 = vpop.f32.mrb[0].mxu0
      %v2047 = vadd.f32 %v1962, %v2046
      %v2048 = vpop.f32.mrb[0].mxu0
      %v2049 = vpop.f32.mrb[0].mxu0
      %v2050 = vadd.f32 %v1962, %v2049
      %v2051 = vpop.f32.mrb[0].mxu0
      %2052 = vmatprep.mubr.bf16.mxu0 0
      %2053 = vmatmul.mubr.bf16.gmra.mrb[0].mxu0 %v1932
      %v2054 = vpop.f32.mrb[0].mxu0
      %v2055 = vadd.f32 %v1962, %v2054
      %v2056 = vpop.f32.mrb[0].mxu0
      %v2057 = vpop.f32.mrb[0].mxu0
      %v2058 = vadd.f32 %v1962, %v2057
      %v2059 = vpop.f32.mrb[0].mxu0
      %2060 = vmatprep.mubr.bf16.mxu0 0
      %2061 = vmatmul.mubr.bf16.gmra.mrb[0].mxu0 %v1933
      %v2062 = vpop.f32.mrb[0].mxu0
      %v2063 = vadd.f32 %v1962, %v2062
      %v2064 = vpop.f32.mrb[0].mxu0
      %v2065 = vpop.f32.mrb[0].mxu0
      %v2066 = vadd.f32 %v1962, %v2065
      %v2067 = vpop.f32.mrb[0].mxu0
      %2068 = vmatprep.mubr.bf16.mxu0 0
      %2069 = vmatmul.mubr.bf16.gmra.mrb[0].mxu0 %v1934
      %v2070 = vpop.f32.mrb[0].mxu0
      %v2071 = vadd.f32 %v1962, %v2070
      %v2072 = vpop.f32.mrb[0].mxu0
      %v2073 = vpop.f32.mrb[0].mxu0
      %v2074 = vadd.f32 %v1962, %v2073
      %v2075 = vpop.f32.mrb[0].mxu0
      %2076 = vmatprep.mubr.bf16.mxu0 0
      %2077 = vmatmul.mubr.bf16.gmra.mrb[0].mxu0 %v1935
      %v2078 = vpop.f32.mrb[0].mxu0
      %v2079 = vadd.f32 %v1962, %v2078
      %v2080 = vpop.f32.mrb[0].mxu0
      %v2081 = vpop.f32.mrb[0].mxu0
      %v2082 = vadd.f32 %v1962, %v2081
      %v2083 = vpop.f32.mrb[0].mxu0
      %2084 = vmatprep.mubr.bf16.mxu0 0
      %2085 = vmatmul.mubr.bf16.gmra.mrb[0].mxu0 %v1936
      %v2086 = vpop.f32.mrb[0].mxu0
      %v2087 = vadd.f32 %v1962, %v2086
      %v2088 = vpop.f32.mrb[0].mxu0
      %v2089 = vpop.f32.mrb[0].mxu0
      %v2090 = vadd.f32 %v1962, %v2089
      %v2091 = vpop.f32.mrb[0].mxu0
      %2092 = vmatprep.mubr.bf16.mxu0 0
      %2093 = vmatmul.mubr.bf16.gmra.mrb[0].mxu0 %v1937
      %v2094 = vpop.f32.mrb[0].mxu0
      %v2095 = vadd.f32 %v1962, %v2094
      %v2096 = vpop.f32.mrb[0].mxu0
      %v2097 = vpop.f32.mrb[0].mxu0
      %v2098 = vadd.f32 %v1962, %v2097
      %v2099 = vpop.f32.mrb[0].mxu0
      %2100 = vmatprep.mubr.bf16.mxu0 0
      %2101 = vmatmul.mubr.bf16.gmra.mrb[0].mxu0 %v1938
      %v2102 = vpop.f32.mrb[0].mxu0
      %v2103 = vadd.f32 %v1962, %v2102
      %v2104 = vpop.f32.mrb[0].mxu0
      %v2105 = vpop.f32.mrb[0].mxu0
      %v2106 = vadd.f32 %v1962, %v2105
      %v2107 = vpop.f32.mrb[0].mxu0
      %2108 = vmatprep.mubr.bf16.mxu0 0
      %2109 = vmatmul.mubr.bf16.gmra.mrb[0].mxu0 %v1939
      %v2110 = vpop.f32.mrb[0].mxu0
      %v2111 = vadd.f32 %v1962, %v2110
      %v2112 = vpop.f32.mrb[0].mxu0
      %v2113 = vpop.f32.mrb[0].mxu0
      %v2114 = vadd.f32 %v1962, %v2113
      %v2115 = vpop.f32.mrb[0].mxu0
      %2116 = vmatprep.mubr.bf16.mxu0 0
      %2117 = vmatmul.mubr.bf16.gmra.mrb[0].mxu0 %v1940
      %v2118 = vpop.f32.mrb[0].mxu0
      %v2119 = vadd.f32 %v1962, %v2118
      %v2120 = vpop.f32.mrb[0].mxu0
      %v2121 = vpop.f32.mrb[0].mxu0
      %v2122 = vadd.f32 %v1962, %v2121
      %v2123 = vpop.f32.mrb[0].mxu0
      %2124 = vdwg.mxu0
      %v2125 = vtanh.pop %v2047
      %v2126 = vtanh.pop %v2050
      %v2127 = vtanh.pop %v2055
      %v2128 = vtanh.pop %v2058
      %v2129 = vtanh.pop %v2063
      %v2130 = vtanh.pop %v2066
      %v2131 = vtanh.pop %v2071
      %v2132 = vtanh.pop %v2074
      %v2133 = vtanh.pop %v2079
      %v2134 = vtanh.pop %v2082
      %v2135 = vtanh.pop %v2087
      %v2136 = vtanh.pop %v2090
      %v2137 = vtanh.pop %v2095
      %v2138 = vtanh.pop %v2098
      %v2139 = vtanh.pop %v2103
      %v2140 = vtanh.pop %v2106
      %v2141 = vtanh.pop %v2111
      %v2142 = vtanh.pop %v2114
      %v2143 = vtanh.pop %v2119
      %v2144 = vtanh.pop %v2122
      %v2145 = vld [vmem:[%s5] sm:$0xff]
      %v2146 = vld [vmem:[%s5 + $0x8] sm:$0xff]
      %v2147 = vld [vmem:[%s5 + $0x10] sm:$0xff]
      %v2148 = vld [vmem:[%s5 + $0x18] sm:$0xff]
      %v2149 = vld [vmem:[%s5 + $0x20] sm:$0xff]
      %v2150 = vld [vmem:[%s5 + $0x28] sm:$0xff]
      %v2151 = vld [vmem:[%s5 + $0x30] sm:$0xff]
      %v2152 = vld [vmem:[%s5 + $0x38] sm:$0xff]
      %v2153 = vld [vmem:[%s6] sm:$0x1]
      %v2155 = vlaneseq
      %v2156 = vshrl.u32 %v2155, 7
      %v2157 = vsub.s32 0, %v2156
      %v2158 = vrot.slane %v2153, %v2157
      %vm2160 = vcmask 523264
      %v2162 = vsel %vm2160, %v2125, 0
      %v2165 = vsel %vm2160, %v2126, 0
      %v2168 = vsel %vm2160, %v2127, 0
      %v2171 = vsel %vm2160, %v2128, 0
      %v2174 = vsel %vm2160, %v2129, 0
      %v2177 = vsel %vm2160, %v2130, 0
      %v2180 = vsel %vm2160, %v2131, 0
      %v2183 = vsel %vm2160, %v2132, 0
      %v2186 = vsel %vm2160, %v2133, 0
      %v2189 = vsel %vm2160, %v2134, 0
      %v2192 = vsel %vm2160, %v2135, 0
      %v2195 = vsel %vm2160, %v2136, 0
      %v2198 = vsel %vm2160, %v2137, 0
      %v2201 = vsel %vm2160, %v2138, 0
      %v2204 = vsel %vm2160, %v2139, 0
      %v2207 = vsel %vm2160, %v2140, 0
      %v2210 = vsel %vm2160, %v2141, 0
      %v2213 = vsel %vm2160, %v2142, 0
      %v2216 = vsel %vm2160, %v2143, 0
      %v2219 = vsel %vm2160, %v2144, 0
      %2221 = vmatprep.subr.mxu0 0.0
      %2222 = vmatpush1.msra.mxu0 %v2145
      %2223 = vmatprep.subr.mxu0 0.0
      %2224 = vmatpush1.msra.mxu0 %v2146
      %2225 = vmatprep.subr.mxu0 0.0
      %2226 = vmatpush1.msra.mxu0 %v2147
      %2227 = vmatprep.subr.mxu0 0.0
      %2228 = vmatpush1.msra.mxu0 %v2148
      %2229 = vmatprep.subr.mxu0 0.0
      %2230 = vmatpush1.msra.mxu0 %v2149
      %2231 = vmatprep.subr.mxu0 0.0
      %2232 = vmatpush1.msra.mxu0 %v2150
      %2233 = vmatprep.subr.mxu0 0.0
      %2234 = vmatpush1.msra.mxu0 %v2151
      %2235 = vmatprep.subr.mxu0 0.0
      %2236 = vmatpush1.msra.mxu0 %v2152
      %2237 = vmatprep.subr.mxu0 0.0
      %2238 = vmatpush1.msra.mxu0 0.0
      %2239 = vmatprep.subr.mxu0 0.0
      %2240 = vmatpush1.msra.mxu0 0.0
      %2241 = vmatprep.subr.mxu0 0.0
      %2242 = vmatpush1.msra.mxu0 0.0
      %2243 = vmatprep.subr.mxu0 0.0
      %2244 = vmatpush1.msra.mxu0 0.0
      %2245 = vmatprep.subr.mxu0 0.0
      %2246 = vmatpush1.msra.mxu0 0.0
      %2247 = vmatprep.subr.mxu0 0.0
      %2248 = vmatpush1.msra.mxu0 0.0
      %2249 = vmatprep.subr.mxu0 0.0
      %2250 = vmatpush1.msra.mxu0 0.0
      %2251 = vmatprep.subr.mxu0 0.0
      %2252 = vmatpush1.msra.mxu0 0.0
      %2253 = vmatprep.subr.mxu0 0.0
      %2254 = vmatpush1.msra.mxu0 0.0
      %2255 = vmatprep.subr.mxu0 0.0
      %2256 = vmatpush1.msra.mxu0 0.0
      %2257 = vmatprep.subr.mxu0 0.0
      %2258 = vmatpush1.msra.mxu0 0.0
      %2259 = vmatprep.subr.mxu0 0.0
      %2260 = vmatpush1.msra.mxu0 0.0
      %2261 = vmatprep.subr.mxu0 0.0
      %2262 = vmatpush1.msra.mxu0 0.0
      %2263 = vmatprep.subr.mxu0 0.0
      %2264 = vmatpush1.msra.mxu0 0.0
      %2265 = vmatprep.subr.mxu0 0.0
      %2266 = vmatpush1.msra.mxu0 0.0
      %2267 = vmatprep.subr.mxu0 0.0
      %2268 = vmatpush1.msra.mxu0 0.0
      %2269 = vmatprep.subr.mxu0 0.0
      %2270 = vmatpush1.msra.mxu0 0.0
      %2271 = vmatprep.subr.mxu0 0.0
      %2272 = vmatpush1.msra.mxu0 0.0
      %2273 = vmatprep.subr.mxu0 0.0
      %2274 = vmatpush1.msra.mxu0 0.0
      %2275 = vmatprep.subr.mxu0 0.0
      %2276 = vmatpush1.msra.mxu0 0.0
      %2277 = vmatprep.subr.mxu0 0.0
      %2278 = vmatpush1.msra.mxu0 0.0
      %2279 = vmatprep.subr.mxu0 0.0
      %2280 = vmatpush1.msra.mxu0 0.0
      %2281 = vmatprep.subr.mxu0 0.0
      %2282 = vmatpush1.msra.mxu0 0.0
      %2283 = vmatprep.subr.mxu0 0.0
      %2284 = vmatpush1.msra.mxu0 0.0
      %2285 = vmatprep.mubr.f32.mxu0 0.0
      %2286 = vmatmul.mubr.f32.gmra.mrb[0].mxu0 %v2162
      %v2287 = vpop.f32.mrb[0].mxu0
      %v2288 = vadd.f32 %v2158, %v2287
      %v2289 = vpop.f32.mrb[0].mxu0
      %2290 = vmatprep.mubr.f32.mxu0 0.0
      %2291 = vmatmul.mubr.f32.gmra.mrb[0].mxu0 %v2165
      %v2292 = vpop.f32.mrb[0].mxu0
      %v2293 = vadd.f32 %v2158, %v2292
      %v2294 = vpop.f32.mrb[0].mxu0
      %2295 = vmatprep.mubr.f32.mxu0 0.0
      %2296 = vmatmul.mubr.f32.gmra.mrb[0].mxu0 %v2168
      %v2297 = vpop.f32.mrb[0].mxu0
      %v2298 = vadd.f32 %v2158, %v2297
      %v2299 = vpop.f32.mrb[0].mxu0
      %2300 = vmatprep.mubr.f32.mxu0 0.0
      %2301 = vmatmul.mubr.f32.gmra.mrb[0].mxu0 %v2171
      %v2302 = vpop.f32.mrb[0].mxu0
      %v2303 = vadd.f32 %v2158, %v2302
      %v2304 = vpop.f32.mrb[0].mxu0
      %2305 = vmatprep.mubr.f32.mxu0 0.0
      %2306 = vmatmul.mubr.f32.gmra.mrb[0].mxu0 %v2174
      %v2307 = vpop.f32.mrb[0].mxu0
      %v2308 = vadd.f32 %v2158, %v2307
      %v2309 = vpop.f32.mrb[0].mxu0
      %2310 = vmatprep.mubr.f32.mxu0 0.0
      %2311 = vmatmul.mubr.f32.gmra.mrb[0].mxu0 %v2177
      %v2312 = vpop.f32.mrb[0].mxu0
      %v2313 = vadd.f32 %v2158, %v2312
      %v2314 = vpop.f32.mrb[0].mxu0
      %2315 = vmatprep.mubr.f32.mxu0 0.0
      %2316 = vmatmul.mubr.f32.gmra.mrb[0].mxu0 %v2180
      %v2317 = vpop.f32.mrb[0].mxu0
      %v2318 = vadd.f32 %v2158, %v2317
      %v2319 = vpop.f32.mrb[0].mxu0
      %2320 = vmatprep.mubr.f32.mxu0 0.0
      %2321 = vmatmul.mubr.f32.gmra.mrb[0].mxu0 %v2183
      %v2322 = vpop.f32.mrb[0].mxu0
      %v2323 = vadd.f32 %v2158, %v2322
      %v2324 = vpop.f32.mrb[0].mxu0
      %2325 = vmatprep.mubr.f32.mxu0 0.0
      %2326 = vmatmul.mubr.f32.gmra.mrb[0].mxu0 %v2186
      %v2327 = vpop.f32.mrb[0].mxu0
      %v2328 = vadd.f32 %v2158, %v2327
      %v2329 = vpop.f32.mrb[0].mxu0
      %2330 = vmatprep.mubr.f32.mxu0 0.0
      %2331 = vmatmul.mubr.f32.gmra.mrb[0].mxu0 %v2189
      %v2332 = vpop.f32.mrb[0].mxu0
      %v2333 = vadd.f32 %v2158, %v2332
      %v2334 = vpop.f32.mrb[0].mxu0
      %2335 = vmatprep.mubr.f32.mxu0 0.0
      %2336 = vmatmul.mubr.f32.gmra.mrb[0].mxu0 %v2192
      %v2337 = vpop.f32.mrb[0].mxu0
      %v2338 = vadd.f32 %v2158, %v2337
      %v2339 = vpop.f32.mrb[0].mxu0
      %2340 = vmatprep.mubr.f32.mxu0 0.0
      %2341 = vmatmul.mubr.f32.gmra.mrb[0].mxu0 %v2195
      %v2342 = vpop.f32.mrb[0].mxu0
      %v2343 = vadd.f32 %v2158, %v2342
      %v2344 = vpop.f32.mrb[0].mxu0
      %2345 = vmatprep.mubr.f32.mxu0 0.0
      %2346 = vmatmul.mubr.f32.gmra.mrb[0].mxu0 %v2198
      %v2347 = vpop.f32.mrb[0].mxu0
      %v2348 = vadd.f32 %v2158, %v2347
      %v2349 = vpop.f32.mrb[0].mxu0
      %2350 = vmatprep.mubr.f32.mxu0 0.0
      %2351 = vmatmul.mubr.f32.gmra.mrb[0].mxu0 %v2201
      %v2352 = vpop.f32.mrb[0].mxu0
      %v2353 = vadd.f32 %v2158, %v2352
      %v2354 = vpop.f32.mrb[0].mxu0
      %2355 = vmatprep.mubr.f32.mxu0 0.0
      %2356 = vmatmul.mubr.f32.gmra.mrb[0].mxu0 %v2204
      %v2357 = vpop.f32.mrb[0].mxu0
      %v2358 = vadd.f32 %v2158, %v2357
      %v2359 = vpop.f32.mrb[0].mxu0
      %2360 = vmatprep.mubr.f32.mxu0 0.0
      %2361 = vmatmul.mubr.f32.gmra.mrb[0].mxu0 %v2207
      %v2362 = vpop.f32.mrb[0].mxu0
      %v2363 = vadd.f32 %v2158, %v2362
      %v2364 = vpop.f32.mrb[0].mxu0
      %2365 = vmatprep.mubr.f32.mxu0 0.0
      %2366 = vmatmul.mubr.f32.gmra.mrb[0].mxu0 %v2210
      %v2367 = vpop.f32.mrb[0].mxu0
      %v2368 = vadd.f32 %v2158, %v2367
      %v2369 = vpop.f32.mrb[0].mxu0
      %2370 = vmatprep.mubr.f32.mxu0 0.0
      %2371 = vmatmul.mubr.f32.gmra.mrb[0].mxu0 %v2213
      %v2372 = vpop.f32.mrb[0].mxu0
      %v2373 = vadd.f32 %v2158, %v2372
      %v2374 = vpop.f32.mrb[0].mxu0
      %2375 = vmatprep.mubr.f32.mxu0 0.0
      %2376 = vmatmul.mubr.f32.gmra.mrb[0].mxu0 %v2216
      %v2377 = vpop.f32.mrb[0].mxu0
      %v2378 = vadd.f32 %v2158, %v2377
      %v2379 = vpop.f32.mrb[0].mxu0
      %2380 = vmatprep.mubr.f32.mxu0 0.0
      %2381 = vmatmul.mubr.f32.gmra.mrb[0].mxu0 %v2219
      %v2382 = vpop.f32.mrb[0].mxu0
      %v2383 = vadd.f32 %v2158, %v2382
      %v2384 = vpop.f32.mrb[0].mxu0
      %2385 = vdwg.mxu0
      %v2386 = vtanh.pop %v2288
      %v2387 = vtanh.pop %v2293
      %v2388 = vtanh.pop %v2298
      %v2389 = vtanh.pop %v2303
      %v2390 = vtanh.pop %v2308
      %v2391 = vtanh.pop %v2313
      %v2392 = vtanh.pop %v2318
      %v2393 = vtanh.pop %v2323
      %v2394 = vtanh.pop %v2328
      %v2395 = vtanh.pop %v2333
      %v2396 = vtanh.pop %v2338
      %v2397 = vtanh.pop %v2343
      %v2398 = vtanh.pop %v2348
      %v2399 = vtanh.pop %v2353
      %v2400 = vtanh.pop %v2358
      %v2401 = vtanh.pop %v2363
      %v2402 = vtanh.pop %v2368
      %v2403 = vtanh.pop %v2373
      %v2404 = vtanh.pop %v2378
      %v2405 = vtanh.pop %v2383
      %v2406 = vld [vmem:[%s7] sm:$0xff]
      %v2407 = vld [vmem:[%s7 + $0x8] sm:$0xf]
      %v2408 = vld [vmem:[%s8] sm:$0x1]
      %v2410 = vlaneseq
      %v2411 = vshrl.u32 %v2410, 7
      %v2412 = vsub.s32 0, %v2411
      %v2413 = vrot.slane %v2408, %v2412
      %vm2415 = vcmask 97280
      %v2417 = vsel %vm2415, %v2386, 0
      %v2420 = vsel %vm2415, %v2387, 0
      %v2423 = vsel %vm2415, %v2388, 0
      %v2426 = vsel %vm2415, %v2389, 0
      %v2429 = vsel %vm2415, %v2390, 0
      %v2432 = vsel %vm2415, %v2391, 0
      %v2435 = vsel %vm2415, %v2392, 0
      %v2438 = vsel %vm2415, %v2393, 0
      %v2441 = vsel %vm2415, %v2394, 0
      %v2444 = vsel %vm2415, %v2395, 0
      %v2447 = vsel %vm2415, %v2396, 0
      %v2450 = vsel %vm2415, %v2397, 0
      %v2453 = vsel %vm2415, %v2398, 0
      %v2456 = vsel %vm2415, %v2399, 0
      %v2459 = vsel %vm2415, %v2400, 0
      %v2462 = vsel %vm2415, %v2401, 0
      %v2465 = vsel %vm2415, %v2402, 0
      %v2468 = vsel %vm2415, %v2403, 0
      %v2471 = vsel %vm2415, %v2404, 0
      %v2474 = vsel %vm2415, %v2405, 0
      %vm2476 = vcmask 1043456
      %v2478 = vsel %vm2476, %v2407, 0
      %2480 = vmatprep.subr.mxu0 0.0
      %2481 = vmatpush1.msra.mxu0 %v2406
      %2482 = vmatprep.subr.mxu0 0.0
      %2483 = vmatpush1.msra.mxu0 %v2478
      %2484 = vmatprep.subr.mxu0 0.0
      %2485 = vmatpush1.msra.mxu0 0.0
      %2486 = vmatprep.subr.mxu0 0.0
      %2487 = vmatpush1.msra.mxu0 0.0
      %2488 = vmatprep.subr.mxu0 0.0
      %2489 = vmatpush1.msra.mxu0 0.0
      %2490 = vmatprep.subr.mxu0 0.0
      %2491 = vmatpush1.msra.mxu0 0.0
      %2492 = vmatprep.subr.mxu0 0.0
      %2493 = vmatpush1.msra.mxu0 0.0
      %2494 = vmatprep.subr.mxu0 0.0
      %2495 = vmatpush1.msra.mxu0 0.0
      %2496 = vmatprep.subr.mxu0 0.0
      %2497 = vmatpush1.msra.mxu0 0.0
      %2498 = vmatprep.subr.mxu0 0.0
      %2499 = vmatpush1.msra.mxu0 0.0
      %2500 = vmatprep.subr.mxu0 0.0
      %2501 = vmatpush1.msra.mxu0 0.0
      %2502 = vmatprep.subr.mxu0 0.0
      %2503 = vmatpush1.msra.mxu0 0.0
      %2504 = vmatprep.subr.mxu0 0.0
      %2505 = vmatpush1.msra.mxu0 0.0
      %2506 = vmatprep.subr.mxu0 0.0
      %2507 = vmatpush1.msra.mxu0 0.0
      %2508 = vmatprep.subr.mxu0 0.0
      %2509 = vmatpush1.msra.mxu0 0.0
      %2510 = vmatprep.subr.mxu0 0.0
      %2511 = vmatpush1.msra.mxu0 0.0
      %2512 = vmatprep.subr.mxu0 0.0
      %2513 = vmatpush1.msra.mxu0 0.0
      %2514 = vmatprep.subr.mxu0 0.0
      %2515 = vmatpush1.msra.mxu0 0.0
      %2516 = vmatprep.subr.mxu0 0.0
      %2517 = vmatpush1.msra.mxu0 0.0
      %2518 = vmatprep.subr.mxu0 0.0
      %2519 = vmatpush1.msra.mxu0 0.0
      %2520 = vmatprep.subr.mxu0 0.0
      %2521 = vmatpush1.msra.mxu0 0.0
      %2522 = vmatprep.subr.mxu0 0.0
      %2523 = vmatpush1.msra.mxu0 0.0
      %2524 = vmatprep.subr.mxu0 0.0
      %2525 = vmatpush1.msra.mxu0 0.0
      %2526 = vmatprep.subr.mxu0 0.0
      %2527 = vmatpush1.msra.mxu0 0.0
      %2528 = vmatprep.subr.mxu0 0.0
      %2529 = vmatpush1.msra.mxu0 0.0
      %2530 = vmatprep.subr.mxu0 0.0
      %2531 = vmatpush1.msra.mxu0 0.0
      %2532 = vmatprep.subr.mxu0 0.0
      %2533 = vmatpush1.msra.mxu0 0.0
      %2534 = vmatprep.subr.mxu0 0.0
      %2535 = vmatpush1.msra.mxu0 0.0
      %2536 = vmatprep.subr.mxu0 0.0
      %2537 = vmatpush1.msra.mxu0 0.0
      %2538 = vmatprep.subr.mxu0 0.0
      %2539 = vmatpush1.msra.mxu0 0.0
      %2540 = vmatprep.subr.mxu0 0.0
      %2541 = vmatpush1.msra.mxu0 0.0
      %2542 = vmatprep.subr.mxu0 0.0
      %2543 = vmatpush1.msra.mxu0 0.0
      %2544 = vmatprep.mubr.f32.mxu0 0.0
      %2545 = vmatmul.mubr.f32.gmra.mrb[0].mxu0 %v2417
      %v2546 = vpop.f32.mrb[0].mxu0
      %v2547 = vadd.f32 %v2413, %v2546
      %v2548 = vpop.f32.mrb[0].mxu0
      %2549 = vmatprep.mubr.f32.mxu0 0.0
      %2550 = vmatmul.mubr.f32.gmra.mrb[0].mxu0 %v2420
      %v2551 = vpop.f32.mrb[0].mxu0
      %v2552 = vadd.f32 %v2413, %v2551
      %v2553 = vpop.f32.mrb[0].mxu0
      %2554 = vmatprep.mubr.f32.mxu0 0.0
      %2555 = vmatmul.mubr.f32.gmra.mrb[0].mxu0 %v2423
      %v2556 = vpop.f32.mrb[0].mxu0
      %v2557 = vadd.f32 %v2413, %v2556
      %v2558 = vpop.f32.mrb[0].mxu0
      %2559 = vmatprep.mubr.f32.mxu0 0.0
      %2560 = vmatmul.mubr.f32.gmra.mrb[0].mxu0 %v2426
      %v2561 = vpop.f32.mrb[0].mxu0
      %v2562 = vadd.f32 %v2413, %v2561
      %v2563 = vpop.f32.mrb[0].mxu0
      %2564 = vmatprep.mubr.f32.mxu0 0.0
      %2565 = vmatmul.mubr.f32.gmra.mrb[0].mxu0 %v2429
      %v2566 = vpop.f32.mrb[0].mxu0
      %v2567 = vadd.f32 %v2413, %v2566
      %v2568 = vpop.f32.mrb[0].mxu0
      %2569 = vmatprep.mubr.f32.mxu0 0.0
      %2570 = vmatmul.mubr.f32.gmra.mrb[0].mxu0 %v2432
      %v2571 = vpop.f32.mrb[0].mxu0
      %v2572 = vadd.f32 %v2413, %v2571
      %v2573 = vpop.f32.mrb[0].mxu0
      %2574 = vmatprep.mubr.f32.mxu0 0.0
      %2575 = vmatmul.mubr.f32.gmra.mrb[0].mxu0 %v2435
      %v2576 = vpop.f32.mrb[0].mxu0
      %v2577 = vadd.f32 %v2413, %v2576
      %v2578 = vpop.f32.mrb[0].mxu0
      %2579 = vmatprep.mubr.f32.mxu0 0.0
      %2580 = vmatmul.mubr.f32.gmra.mrb[0].mxu0 %v2438
      %v2581 = vpop.f32.mrb[0].mxu0
      %v2582 = vadd.f32 %v2413, %v2581
      %v2583 = vpop.f32.mrb[0].mxu0
      %2584 = vmatprep.mubr.f32.mxu0 0.0
      %2585 = vmatmul.mubr.f32.gmra.mrb[0].mxu0 %v2441
      %v2586 = vpop.f32.mrb[0].mxu0
      %v2587 = vadd.f32 %v2413, %v2586
      %v2588 = vpop.f32.mrb[0].mxu0
      %2589 = vmatprep.mubr.f32.mxu0 0.0
      %2590 = vmatmul.mubr.f32.gmra.mrb[0].mxu0 %v2444
      %v2591 = vpop.f32.mrb[0].mxu0
      %v2592 = vadd.f32 %v2413, %v2591
      %v2593 = vpop.f32.mrb[0].mxu0
      %2594 = vmatprep.mubr.f32.mxu0 0.0
      %2595 = vmatmul.mubr.f32.gmra.mrb[0].mxu0 %v2447
      %v2596 = vpop.f32.mrb[0].mxu0
      %v2597 = vadd.f32 %v2413, %v2596
      %v2598 = vpop.f32.mrb[0].mxu0
      %2599 = vmatprep.mubr.f32.mxu0 0.0
      %2600 = vmatmul.mubr.f32.gmra.mrb[0].mxu0 %v2450
      %v2601 = vpop.f32.mrb[0].mxu0
      %v2602 = vadd.f32 %v2413, %v2601
      %v2603 = vpop.f32.mrb[0].mxu0
      %2604 = vmatprep.mubr.f32.mxu0 0.0
      %2605 = vmatmul.mubr.f32.gmra.mrb[0].mxu0 %v2453
      %v2606 = vpop.f32.mrb[0].mxu0
      %v2607 = vadd.f32 %v2413, %v2606
      %v2608 = vpop.f32.mrb[0].mxu0
      %2609 = vmatprep.mubr.f32.mxu0 0.0
      %2610 = vmatmul.mubr.f32.gmra.mrb[0].mxu0 %v2456
      %v2611 = vpop.f32.mrb[0].mxu0
      %v2612 = vadd.f32 %v2413, %v2611
      %v2613 = vpop.f32.mrb[0].mxu0
      %2614 = vmatprep.mubr.f32.mxu0 0.0
      %2615 = vmatmul.mubr.f32.gmra.mrb[0].mxu0 %v2459
      %v2616 = vpop.f32.mrb[0].mxu0
      %v2617 = vadd.f32 %v2413, %v2616
      %v2618 = vpop.f32.mrb[0].mxu0
      %2619 = vmatprep.mubr.f32.mxu0 0.0
      %2620 = vmatmul.mubr.f32.gmra.mrb[0].mxu0 %v2462
      %v2621 = vpop.f32.mrb[0].mxu0
      %v2622 = vadd.f32 %v2413, %v2621
      %v2623 = vpop.f32.mrb[0].mxu0
      %2624 = vmatprep.mubr.f32.mxu0 0.0
      %2625 = vmatmul.mubr.f32.gmra.mrb[0].mxu0 %v2465
      %v2626 = vpop.f32.mrb[0].mxu0
      %v2627 = vadd.f32 %v2413, %v2626
      %v2628 = vpop.f32.mrb[0].mxu0
      %2629 = vmatprep.mubr.f32.mxu0 0.0
      %2630 = vmatmul.mubr.f32.gmra.mrb[0].mxu0 %v2468
      %v2631 = vpop.f32.mrb[0].mxu0
      %v2632 = vadd.f32 %v2413, %v2631
      %v2633 = vpop.f32.mrb[0].mxu0
      %2634 = vmatprep.mubr.f32.mxu0 0.0
      %2635 = vmatmul.mubr.f32.gmra.mrb[0].mxu0 %v2471
      %v2636 = vpop.f32.mrb[0].mxu0
      %v2637 = vadd.f32 %v2413, %v2636
      %v2638 = vpop.f32.mrb[0].mxu0
      %2639 = vmatprep.mubr.f32.mxu0 0.0
      %2640 = vmatmul.mubr.f32.gmra.mrb[0].mxu0 %v2474
      %v2641 = vpop.f32.mrb[0].mxu0
      %v2642 = vadd.f32 %v2413, %v2641
      %v2643 = vpop.f32.mrb[0].mxu0
      %2644 = vdwg.mxu0
      %vm2645 = vcmask 64512
      %2646 = vst.msk [vmem:[%s589] sm:$0xff] %vm2645, %v2547
      %2647 = vst.msk [vmem:[%s589 + $0x8] sm:$0xff] %vm2645, %v2552
      %2648 = vst.msk [vmem:[%s589 + $0x10] sm:$0xff] %vm2645, %v2557
      %2649 = vst.msk [vmem:[%s589 + $0x18] sm:$0xff] %vm2645, %v2562
      %2650 = vst.msk [vmem:[%s589 + $0x20] sm:$0xff] %vm2645, %v2567
      %2651 = vst.msk [vmem:[%s589 + $0x28] sm:$0xff] %vm2645, %v2572
      %2652 = vst.msk [vmem:[%s589 + $0x30] sm:$0xff] %vm2645, %v2577
      %2653 = vst.msk [vmem:[%s589 + $0x38] sm:$0xff] %vm2645, %v2582
      %2654 = vst.msk [vmem:[%s589 + $0x40] sm:$0xff] %vm2645, %v2587
      %2655 = vst.msk [vmem:[%s589 + $0x48] sm:$0xff] %vm2645, %v2592
      %2656 = vst.msk [vmem:[%s589 + $0x50] sm:$0xff] %vm2645, %v2597
      %2657 = vst.msk [vmem:[%s589 + $0x58] sm:$0xff] %vm2645, %v2602
      %2658 = vst.msk [vmem:[%s589 + $0x60] sm:$0xff] %vm2645, %v2607
      %2659 = vst.msk [vmem:[%s589 + $0x68] sm:$0xff] %vm2645, %v2612
      %2660 = vst.msk [vmem:[%s589 + $0x70] sm:$0xff] %vm2645, %v2617
      %2661 = vst.msk [vmem:[%s589 + $0x78] sm:$0xff] %vm2645, %v2622
      %2662 = vst.msk [vmem:[%s589 + $0x80] sm:$0xff] %vm2645, %v2627
      %2663 = vst.msk [vmem:[%s589 + $0x88] sm:$0xff] %vm2645, %v2632
      %2664 = vst.msk [vmem:[%s589 + $0x90] sm:$0xff] %vm2645, %v2637
      %2665 = vst.msk [vmem:[%s589 + $0x98] sm:$0xff] %vm2645, %v2642
      %v2666 = vld [vmem:[%s9] sm:$0xff]
      %v2667 = vld [vmem:[%s9 + $0x8] sm:$0xf]
      %v2668 = vld [vmem:[%s10] sm:$0x1]
      %v2670 = vlaneseq
      %v2671 = vshrl.u32 %v2670, 7
      %v2672 = vsub.s32 0, %v2671
      %v2673 = vrot.slane %v2668, %v2672
      %v2676 = vsel %vm2476, %v2667, 0
      %2678 = vmatprep.subr.mxu0 0.0
      %2679 = vmatpush1.msra.mxu0 %v2666
      %2680 = vmatprep.subr.mxu0 0.0
      %2681 = vmatpush1.msra.mxu0 %v2676
      %2682 = vmatprep.subr.mxu0 0.0
      %2683 = vmatpush1.msra.mxu0 0.0
      %2684 = vmatprep.subr.mxu0 0.0
      %2685 = vmatpush1.msra.mxu0 0.0
      %2686 = vmatprep.subr.mxu0 0.0
      %2687 = vmatpush1.msra.mxu0 0.0
      %2688 = vmatprep.subr.mxu0 0.0
      %2689 = vmatpush1.msra.mxu0 0.0
      %2690 = vmatprep.subr.mxu0 0.0
      %2691 = vmatpush1.msra.mxu0 0.0
      %2692 = vmatprep.subr.mxu0 0.0
      %2693 = vmatpush1.msra.mxu0 0.0
      %2694 = vmatprep.subr.mxu0 0.0
      %2695 = vmatpush1.msra.mxu0 0.0
      %2696 = vmatprep.subr.mxu0 0.0
      %2697 = vmatpush1.msra.mxu0 0.0
      %2698 = vmatprep.subr.mxu0 0.0
      %2699 = vmatpush1.msra.mxu0 0.0
      %2700 = vmatprep.subr.mxu0 0.0
      %2701 = vmatpush1.msra.mxu0 0.0
      %2702 = vmatprep.subr.mxu0 0.0
      %2703 = vmatpush1.msra.mxu0 0.0
      %2704 = vmatprep.subr.mxu0 0.0
      %2705 = vmatpush1.msra.mxu0 0.0
      %2706 = vmatprep.subr.mxu0 0.0
      %2707 = vmatpush1.msra.mxu0 0.0
      %2708 = vmatprep.subr.mxu0 0.0
      %2709 = vmatpush1.msra.mxu0 0.0
      %2710 = vmatprep.subr.mxu0 0.0
      %2711 = vmatpush1.msra.mxu0 0.0
      %2712 = vmatprep.subr.mxu0 0.0
      %2713 = vmatpush1.msra.mxu0 0.0
      %2714 = vmatprep.subr.mxu0 0.0
      %2715 = vmatpush1.msra.mxu0 0.0
      %2716 = vmatprep.subr.mxu0 0.0
      %2717 = vmatpush1.msra.mxu0 0.0
      %2718 = vmatprep.subr.mxu0 0.0
      %2719 = vmatpush1.msra.mxu0 0.0
      %2720 = vmatprep.subr.mxu0 0.0
      %2721 = vmatpush1.msra.mxu0 0.0
      %2722 = vmatprep.subr.mxu0 0.0
      %2723 = vmatpush1.msra.mxu0 0.0
      %2724 = vmatprep.subr.mxu0 0.0
      %2725 = vmatpush1.msra.mxu0 0.0
      %2726 = vmatprep.subr.mxu0 0.0
      %2727 = vmatpush1.msra.mxu0 0.0
      %2728 = vmatprep.subr.mxu0 0.0
      %2729 = vmatpush1.msra.mxu0 0.0
      %2730 = vmatprep.subr.mxu0 0.0
      %2731 = vmatpush1.msra.mxu0 0.0
      %2732 = vmatprep.subr.mxu0 0.0
      %2733 = vmatpush1.msra.mxu0 0.0
      %2734 = vmatprep.subr.mxu0 0.0
      %2735 = vmatpush1.msra.mxu0 0.0
      %2736 = vmatprep.subr.mxu0 0.0
      %2737 = vmatpush1.msra.mxu0 0.0
      %2738 = vmatprep.subr.mxu0 0.0
      %2739 = vmatpush1.msra.mxu0 0.0
      %2740 = vmatprep.subr.mxu0 0.0
      %2741 = vmatpush1.msra.mxu0 0.0
      %2742 = vmatprep.mubr.f32.mxu0 0.0
      %2743 = vmatmul.mubr.f32.gmra.mrb[0].mxu0 %v2417
      %v2744 = vpop.f32.mrb[0].mxu0
      %v2745 = vadd.f32 %v2673, %v2744
      %v2746 = vpop.f32.mrb[0].mxu0
      %2747 = vmatprep.mubr.f32.mxu0 0.0
      %2748 = vmatmul.mubr.f32.gmra.mrb[0].mxu0 %v2420
      %v2749 = vpop.f32.mrb[0].mxu0
      %v2750 = vadd.f32 %v2673, %v2749
      %v2751 = vpop.f32.mrb[0].mxu0
      %2752 = vmatprep.mubr.f32.mxu0 0.0
      %2753 = vmatmul.mubr.f32.gmra.mrb[0].mxu0 %v2423
      %v2754 = vpop.f32.mrb[0].mxu0
      %v2755 = vadd.f32 %v2673, %v2754
      %v2756 = vpop.f32.mrb[0].mxu0
      %2757 = vmatprep.mubr.f32.mxu0 0.0
      %2758 = vmatmul.mubr.f32.gmra.mrb[0].mxu0 %v2426
      %v2759 = vpop.f32.mrb[0].mxu0
      %v2760 = vadd.f32 %v2673, %v2759
      %v2761 = vpop.f32.mrb[0].mxu0
      %2762 = vmatprep.mubr.f32.mxu0 0.0
      %2763 = vmatmul.mubr.f32.gmra.mrb[0].mxu0 %v2429
      %v2764 = vpop.f32.mrb[0].mxu0
      %v2765 = vadd.f32 %v2673, %v2764
      %v2766 = vpop.f32.mrb[0].mxu0
      %2767 = vmatprep.mubr.f32.mxu0 0.0
      %2768 = vmatmul.mubr.f32.gmra.mrb[0].mxu0 %v2432
      %v2769 = vpop.f32.mrb[0].mxu0
      %v2770 = vadd.f32 %v2673, %v2769
      %v2771 = vpop.f32.mrb[0].mxu0
      %2772 = vmatprep.mubr.f32.mxu0 0.0
      %2773 = vmatmul.mubr.f32.gmra.mrb[0].mxu0 %v2435
      %v2774 = vpop.f32.mrb[0].mxu0
      %v2775 = vadd.f32 %v2673, %v2774
      %v2776 = vpop.f32.mrb[0].mxu0
      %2777 = vmatprep.mubr.f32.mxu0 0.0
      %2778 = vmatmul.mubr.f32.gmra.mrb[0].mxu0 %v2438
      %v2779 = vpop.f32.mrb[0].mxu0
      %v2780 = vadd.f32 %v2673, %v2779
      %v2781 = vpop.f32.mrb[0].mxu0
      %2782 = vmatprep.mubr.f32.mxu0 0.0
      %2783 = vmatmul.mubr.f32.gmra.mrb[0].mxu0 %v2441
      %v2784 = vpop.f32.mrb[0].mxu0
      %v2785 = vadd.f32 %v2673, %v2784
      %v2786 = vpop.f32.mrb[0].mxu0
      %2787 = vmatprep.mubr.f32.mxu0 0.0
      %2788 = vmatmul.mubr.f32.gmra.mrb[0].mxu0 %v2444
      %v2789 = vpop.f32.mrb[0].mxu0
      %v2790 = vadd.f32 %v2673, %v2789
      %v2791 = vpop.f32.mrb[0].mxu0
      %2792 = vmatprep.mubr.f32.mxu0 0.0
      %2793 = vmatmul.mubr.f32.gmra.mrb[0].mxu0 %v2447
      %v2794 = vpop.f32.mrb[0].mxu0
      %v2795 = vadd.f32 %v2673, %v2794
      %v2796 = vpop.f32.mrb[0].mxu0
      %2797 = vmatprep.mubr.f32.mxu0 0.0
      %2798 = vmatmul.mubr.f32.gmra.mrb[0].mxu0 %v2450
      %v2799 = vpop.f32.mrb[0].mxu0
      %v2800 = vadd.f32 %v2673, %v2799
      %v2801 = vpop.f32.mrb[0].mxu0
      %2802 = vmatprep.mubr.f32.mxu0 0.0
      %2803 = vmatmul.mubr.f32.gmra.mrb[0].mxu0 %v2453
      %v2804 = vpop.f32.mrb[0].mxu0
      %v2805 = vadd.f32 %v2673, %v2804
      %v2806 = vpop.f32.mrb[0].mxu0
      %2807 = vmatprep.mubr.f32.mxu0 0.0
      %2808 = vmatmul.mubr.f32.gmra.mrb[0].mxu0 %v2456
      %v2809 = vpop.f32.mrb[0].mxu0
      %v2810 = vadd.f32 %v2673, %v2809
      %v2811 = vpop.f32.mrb[0].mxu0
      %2812 = vmatprep.mubr.f32.mxu0 0.0
      %2813 = vmatmul.mubr.f32.gmra.mrb[0].mxu0 %v2459
      %v2814 = vpop.f32.mrb[0].mxu0
      %v2815 = vadd.f32 %v2673, %v2814
      %v2816 = vpop.f32.mrb[0].mxu0
      %2817 = vmatprep.mubr.f32.mxu0 0.0
      %2818 = vmatmul.mubr.f32.gmra.mrb[0].mxu0 %v2462
      %v2819 = vpop.f32.mrb[0].mxu0
      %v2820 = vadd.f32 %v2673, %v2819
      %v2821 = vpop.f32.mrb[0].mxu0
      %2822 = vmatprep.mubr.f32.mxu0 0.0
      %2823 = vmatmul.mubr.f32.gmra.mrb[0].mxu0 %v2465
      %v2824 = vpop.f32.mrb[0].mxu0
      %v2825 = vadd.f32 %v2673, %v2824
      %v2826 = vpop.f32.mrb[0].mxu0
      %2827 = vmatprep.mubr.f32.mxu0 0.0
      %2828 = vmatmul.mubr.f32.gmra.mrb[0].mxu0 %v2468
      %v2829 = vpop.f32.mrb[0].mxu0
      %v2830 = vadd.f32 %v2673, %v2829
      %v2831 = vpop.f32.mrb[0].mxu0
      %2832 = vmatprep.mubr.f32.mxu0 0.0
      %2833 = vmatmul.mubr.f32.gmra.mrb[0].mxu0 %v2471
      %v2834 = vpop.f32.mrb[0].mxu0
      %v2835 = vadd.f32 %v2673, %v2834
      %v2836 = vpop.f32.mrb[0].mxu0
      %2837 = vmatprep.mubr.f32.mxu0 0.0
      %2838 = vmatmul.mubr.f32.gmra.mrb[0].mxu0 %v2474
      %v2839 = vpop.f32.mrb[0].mxu0
      %v2840 = vadd.f32 %v2673, %v2839
      %v2841 = vpop.f32.mrb[0].mxu0
      %2842 = vdwg.mxu0
      %v2843 = vtanh.pop %v2745
      %v2844 = vtanh.pop %v2750
      %v2845 = vtanh.pop %v2755
      %v2846 = vtanh.pop %v2760
      %v2847 = vtanh.pop %v2765
      %v2848 = vtanh.pop %v2770
      %v2849 = vtanh.pop %v2775
      %v2850 = vtanh.pop %v2780
      %v2851 = vtanh.pop %v2785
      %v2852 = vtanh.pop %v2790
      %v2853 = vtanh.pop %v2795
      %v2854 = vtanh.pop %v2800
      %v2855 = vtanh.pop %v2805
      %v2856 = vtanh.pop %v2810
      %v2857 = vtanh.pop %v2815
      %v2858 = vtanh.pop %v2820
      %v2859 = vtanh.pop %v2825
      %v2860 = vtanh.pop %v2830
      %v2861 = vtanh.pop %v2835
      %v2862 = vtanh.pop %v2840
      %v2863 = vld [vmem:[%s11] sm:$0xff]
      %v2864 = vld [vmem:[%s11 + $0x8] sm:$0xf]
      %v2865 = vld [vmem:[%s12] sm:$0x1]
      %v2867 = vlaneseq
      %v2868 = vshrl.u32 %v2867, 7
      %v2869 = vsub.s32 0, %v2868
      %v2870 = vrot.slane %v2865, %v2869
      %v2873 = vsel %vm2415, %v2843, 0
      %v2876 = vsel %vm2415, %v2844, 0
      %v2879 = vsel %vm2415, %v2845, 0
      %v2882 = vsel %vm2415, %v2846, 0
      %v2885 = vsel %vm2415, %v2847, 0
      %v2888 = vsel %vm2415, %v2848, 0
      %v2891 = vsel %vm2415, %v2849, 0
      %v2894 = vsel %vm2415, %v2850, 0
      %v2897 = vsel %vm2415, %v2851, 0
      %v2900 = vsel %vm2415, %v2852, 0
      %v2903 = vsel %vm2415, %v2853, 0
      %v2906 = vsel %vm2415, %v2854, 0
      %v2909 = vsel %vm2415, %v2855, 0
      %v2912 = vsel %vm2415, %v2856, 0
      %v2915 = vsel %vm2415, %v2857, 0
      %v2918 = vsel %vm2415, %v2858, 0
      %v2921 = vsel %vm2415, %v2859, 0
      %v2924 = vsel %vm2415, %v2860, 0
      %v2927 = vsel %vm2415, %v2861, 0
      %v2930 = vsel %vm2415, %v2862, 0
      %v2933 = vsel %vm2476, %v2864, 0
      %2935 = vmatprep.subr.mxu0 0.0
      %2936 = vmatpush1.msra.mxu0 %v2863
      %2937 = vmatprep.subr.mxu0 0.0
      %2938 = vmatpush1.msra.mxu0 %v2933
      %2939 = vmatprep.subr.mxu0 0.0
      %2940 = vmatpush1.msra.mxu0 0.0
      %2941 = vmatprep.subr.mxu0 0.0
      %2942 = vmatpush1.msra.mxu0 0.0
      %2943 = vmatprep.subr.mxu0 0.0
      %2944 = vmatpush1.msra.mxu0 0.0
      %2945 = vmatprep.subr.mxu0 0.0
      %2946 = vmatpush1.msra.mxu0 0.0
      %2947 = vmatprep.subr.mxu0 0.0
      %2948 = vmatpush1.msra.mxu0 0.0
      %2949 = vmatprep.subr.mxu0 0.0
      %2950 = vmatpush1.msra.mxu0 0.0
      %2951 = vmatprep.subr.mxu0 0.0
      %2952 = vmatpush1.msra.mxu0 0.0
      %2953 = vmatprep.subr.mxu0 0.0
      %2954 = vmatpush1.msra.mxu0 0.0
      %2955 = vmatprep.subr.mxu0 0.0
      %2956 = vmatpush1.msra.mxu0 0.0
      %2957 = vmatprep.subr.mxu0 0.0
      %2958 = vmatpush1.msra.mxu0 0.0
      %2959 = vmatprep.subr.mxu0 0.0
      %2960 = vmatpush1.msra.mxu0 0.0
      %2961 = vmatprep.subr.mxu0 0.0
      %2962 = vmatpush1.msra.mxu0 0.0
      %2963 = vmatprep.subr.mxu0 0.0
      %2964 = vmatpush1.msra.mxu0 0.0
      %2965 = vmatprep.subr.mxu0 0.0
      %2966 = vmatpush1.msra.mxu0 0.0
      %2967 = vmatprep.subr.mxu0 0.0
      %2968 = vmatpush1.msra.mxu0 0.0
      %2969 = vmatprep.subr.mxu0 0.0
      %2970 = vmatpush1.msra.mxu0 0.0
      %2971 = vmatprep.subr.mxu0 0.0
      %2972 = vmatpush1.msra.mxu0 0.0
      %2973 = vmatprep.subr.mxu0 0.0
      %2974 = vmatpush1.msra.mxu0 0.0
      %2975 = vmatprep.subr.mxu0 0.0
      %2976 = vmatpush1.msra.mxu0 0.0
      %2977 = vmatprep.subr.mxu0 0.0
      %2978 = vmatpush1.msra.mxu0 0.0
      %2979 = vmatprep.subr.mxu0 0.0
      %2980 = vmatpush1.msra.mxu0 0.0
      %2981 = vmatprep.subr.mxu0 0.0
      %2982 = vmatpush1.msra.mxu0 0.0
      %2983 = vmatprep.subr.mxu0 0.0
      %2984 = vmatpush1.msra.mxu0 0.0
      %2985 = vmatprep.subr.mxu0 0.0
      %2986 = vmatpush1.msra.mxu0 0.0
      %2987 = vmatprep.subr.mxu0 0.0
      %2988 = vmatpush1.msra.mxu0 0.0
      %2989 = vmatprep.subr.mxu0 0.0
      %2990 = vmatpush1.msra.mxu0 0.0
      %2991 = vmatprep.subr.mxu0 0.0
      %2992 = vmatpush1.msra.mxu0 0.0
      %2993 = vmatprep.subr.mxu0 0.0
      %2994 = vmatpush1.msra.mxu0 0.0
      %2995 = vmatprep.subr.mxu0 0.0
      %2996 = vmatpush1.msra.mxu0 0.0
      %2997 = vmatprep.subr.mxu0 0.0
      %2998 = vmatpush1.msra.mxu0 0.0
      %2999 = vmatprep.mubr.f32.mxu0 0.0
      %3000 = vmatmul.mubr.f32.gmra.mrb[0].mxu0 %v2873
      %v3001 = vpop.f32.mrb[0].mxu0
      %v3002 = vadd.f32 %v2870, %v3001
      %v3003 = vpop.f32.mrb[0].mxu0
      %3004 = vmatprep.mubr.f32.mxu0 0.0
      %3005 = vmatmul.mubr.f32.gmra.mrb[0].mxu0 %v2876
      %v3006 = vpop.f32.mrb[0].mxu0
      %v3007 = vadd.f32 %v2870, %v3006
      %v3008 = vpop.f32.mrb[0].mxu0
      %3009 = vmatprep.mubr.f32.mxu0 0.0
      %3010 = vmatmul.mubr.f32.gmra.mrb[0].mxu0 %v2879
      %v3011 = vpop.f32.mrb[0].mxu0
      %v3012 = vadd.f32 %v2870, %v3011
      %v3013 = vpop.f32.mrb[0].mxu0
      %3014 = vmatprep.mubr.f32.mxu0 0.0
      %3015 = vmatmul.mubr.f32.gmra.mrb[0].mxu0 %v2882
      %v3016 = vpop.f32.mrb[0].mxu0
      %v3017 = vadd.f32 %v2870, %v3016
      %v3018 = vpop.f32.mrb[0].mxu0
      %3019 = vmatprep.mubr.f32.mxu0 0.0
      %3020 = vmatmul.mubr.f32.gmra.mrb[0].mxu0 %v2885
      %v3021 = vpop.f32.mrb[0].mxu0
      %v3022 = vadd.f32 %v2870, %v3021
      %v3023 = vpop.f32.mrb[0].mxu0
      %3024 = vmatprep.mubr.f32.mxu0 0.0
      %3025 = vmatmul.mubr.f32.gmra.mrb[0].mxu0 %v2888
      %v3026 = vpop.f32.mrb[0].mxu0
      %v3027 = vadd.f32 %v2870, %v3026
      %v3028 = vpop.f32.mrb[0].mxu0
      %3029 = vmatprep.mubr.f32.mxu0 0.0
      %3030 = vmatmul.mubr.f32.gmra.mrb[0].mxu0 %v2891
      %v3031 = vpop.f32.mrb[0].mxu0
      %v3032 = vadd.f32 %v2870, %v3031
      %v3033 = vpop.f32.mrb[0].mxu0
      %3034 = vmatprep.mubr.f32.mxu0 0.0
      %3035 = vmatmul.mubr.f32.gmra.mrb[0].mxu0 %v2894
      %v3036 = vpop.f32.mrb[0].mxu0
      %v3037 = vadd.f32 %v2870, %v3036
      %v3038 = vpop.f32.mrb[0].mxu0
      %3039 = vmatprep.mubr.f32.mxu0 0.0
      %3040 = vmatmul.mubr.f32.gmra.mrb[0].mxu0 %v2897
      %v3041 = vpop.f32.mrb[0].mxu0
      %v3042 = vadd.f32 %v2870, %v3041
      %v3043 = vpop.f32.mrb[0].mxu0
      %3044 = vmatprep.mubr.f32.mxu0 0.0
      %3045 = vmatmul.mubr.f32.gmra.mrb[0].mxu0 %v2900
      %v3046 = vpop.f32.mrb[0].mxu0
      %v3047 = vadd.f32 %v2870, %v3046
      %v3048 = vpop.f32.mrb[0].mxu0
      %3049 = vmatprep.mubr.f32.mxu0 0.0
      %3050 = vmatmul.mubr.f32.gmra.mrb[0].mxu0 %v2903
      %v3051 = vpop.f32.mrb[0].mxu0
      %v3052 = vadd.f32 %v2870, %v3051
      %v3053 = vpop.f32.mrb[0].mxu0
      %3054 = vmatprep.mubr.f32.mxu0 0.0
      %3055 = vmatmul.mubr.f32.gmra.mrb[0].mxu0 %v2906
      %v3056 = vpop.f32.mrb[0].mxu0
      %v3057 = vadd.f32 %v2870, %v3056
      %v3058 = vpop.f32.mrb[0].mxu0
      %3059 = vmatprep.mubr.f32.mxu0 0.0
      %3060 = vmatmul.mubr.f32.gmra.mrb[0].mxu0 %v2909
      %v3061 = vpop.f32.mrb[0].mxu0
      %v3062 = vadd.f32 %v2870, %v3061
      %v3063 = vpop.f32.mrb[0].mxu0
      %3064 = vmatprep.mubr.f32.mxu0 0.0
      %3065 = vmatmul.mubr.f32.gmra.mrb[0].mxu0 %v2912
      %v3066 = vpop.f32.mrb[0].mxu0
      %v3067 = vadd.f32 %v2870, %v3066
      %v3068 = vpop.f32.mrb[0].mxu0
      %3069 = vmatprep.mubr.f32.mxu0 0.0
      %3070 = vmatmul.mubr.f32.gmra.mrb[0].mxu0 %v2915
      %v3071 = vpop.f32.mrb[0].mxu0
      %v3072 = vadd.f32 %v2870, %v3071
      %v3073 = vpop.f32.mrb[0].mxu0
      %3074 = vmatprep.mubr.f32.mxu0 0.0
      %3075 = vmatmul.mubr.f32.gmra.mrb[0].mxu0 %v2918
      %v3076 = vpop.f32.mrb[0].mxu0
      %v3077 = vadd.f32 %v2870, %v3076
      %v3078 = vpop.f32.mrb[0].mxu0
      %3079 = vmatprep.mubr.f32.mxu0 0.0
      %3080 = vmatmul.mubr.f32.gmra.mrb[0].mxu0 %v2921
      %v3081 = vpop.f32.mrb[0].mxu0
      %v3082 = vadd.f32 %v2870, %v3081
      %v3083 = vpop.f32.mrb[0].mxu0
      %3084 = vmatprep.mubr.f32.mxu0 0.0
      %3085 = vmatmul.mubr.f32.gmra.mrb[0].mxu0 %v2924
      %v3086 = vpop.f32.mrb[0].mxu0
      %v3087 = vadd.f32 %v2870, %v3086
      %v3088 = vpop.f32.mrb[0].mxu0
      %3089 = vmatprep.mubr.f32.mxu0 0.0
      %3090 = vmatmul.mubr.f32.gmra.mrb[0].mxu0 %v2927
      %v3091 = vpop.f32.mrb[0].mxu0
      %v3092 = vadd.f32 %v2870, %v3091
      %v3093 = vpop.f32.mrb[0].mxu0
      %3094 = vmatprep.mubr.f32.mxu0 0.0
      %3095 = vmatmul.mubr.f32.gmra.mrb[0].mxu0 %v2930
      %v3096 = vpop.f32.mrb[0].mxu0
      %v3097 = vadd.f32 %v2870, %v3096
      %v3098 = vpop.f32.mrb[0].mxu0
      %3099 = vdwg.mxu0
      %v3100 = vtanh.pop %v3002
      %v3101 = vtanh.pop %v3007
      %v3102 = vtanh.pop %v3012
      %v3103 = vtanh.pop %v3017
      %v3104 = vtanh.pop %v3022
      %v3105 = vtanh.pop %v3027
      %v3106 = vtanh.pop %v3032
      %v3107 = vtanh.pop %v3037
      %v3108 = vtanh.pop %v3042
      %v3109 = vtanh.pop %v3047
      %v3110 = vtanh.pop %v3052
      %v3111 = vtanh.pop %v3057
      %v3112 = vtanh.pop %v3062
      %v3113 = vtanh.pop %v3067
      %v3114 = vtanh.pop %v3072
      %v3115 = vtanh.pop %v3077
      %v3116 = vtanh.pop %v3082
      %v3117 = vtanh.pop %v3087
      %v3118 = vtanh.pop %v3092
      %v3119 = vtanh.pop %v3097
      %v3120 = vpack.c.bf16 %v3101, %v3100
      %v3121 = vpack.c.bf16 %v3103, %v3102
      %v3122 = vpack.c.bf16 %v3105, %v3104
      %v3123 = vpack.c.bf16 %v3107, %v3106
      %v3124 = vpack.c.bf16 %v3109, %v3108
      %v3125 = vpack.c.bf16 %v3111, %v3110
      %v3126 = vpack.c.bf16 %v3113, %v3112
      %v3127 = vpack.c.bf16 %v3115, %v3114
      %v3128 = vpack.c.bf16 %v3117, %v3116
      %v3129 = vpack.c.bf16 %v3119, %v3118
      %v3130 = vld [vmem:[%s13] sm:$0xf]
      %v3131 = vld [vmem:[%s13 + $0x4] sm:$0xf]
      %v3132 = vld [vmem:[%s13 + $0x8] sm:$0xf]
      %v3133 = vld [vmem:[%s13 + $0xc] sm:$0xf]
      %v3134 = vld [vmem:[%s13 + $0x10] sm:$0xf]
      %v3135 = vld [vmem:[%s13 + $0x14] sm:$0xf]
      %v3136 = vld [vmem:[%s13 + $0x18] sm:$0xf]
      %v3137 = vld [vmem:[%s13 + $0x1c] sm:$0xf]
      %v3138 = vld [vmem:[%s14] sm:$0x1]
      %v3140 = vlaneseq
      %v3141 = vshrl.u32 %v3140, 7
      %v3142 = vsub.s32 0, %v3141
      %v3143 = vrot.slane %v3138, %v3142
      %v3153 = vunpack.c.l.b16 %v3130
      %v3154 = vunpack.c.l.b16 %v3131
      %v3155 = vunpack.c.l.b16 %v3132
      %v3156 = vunpack.c.l.b16 %v3133
      %v3157 = vunpack.c.l.b16 %v3134
      %v3158 = vunpack.c.l.b16 %v3135
      %v3159 = vunpack.c.l.b16 %v3136
      %v3160 = vunpack.c.l.b16 %v3137
      %v3161 = vpack.c.b16 %v3154, %v3153
      %v3162 = vpack.c.b16 %v3156, %v3155
      %v3163 = vpack.c.b16 %v3158, %v3157
      %v3164 = vpack.c.b16 %v3160, %v3159
      %v3170 = vsel %vm2160, %v3120, 0
      %v3173 = vsel %vm2160, %v3121, 0
      %v3176 = vsel %vm2160, %v3122, 0
      %v3179 = vsel %vm2160, %v3123, 0
      %v3182 = vsel %vm2160, %v3124, 0
      %v3185 = vsel %vm2160, %v3125, 0
      %v3188 = vsel %vm2160, %v3126, 0
      %v3191 = vsel %vm2160, %v3127, 0
      %v3194 = vsel %vm2160, %v3128, 0
      %v3197 = vsel %vm2160, %v3129, 0
      %3199 = vmatprep.subr.bf16.mxu0 0
      %3200 = vmatpush1.bf16.msra.mxu0 %v3161
      %3201 = vmatprep.subr.bf16.mxu0 0
      %3202 = vmatpush1.bf16.msra.mxu0 %v3162
      %3203 = vmatprep.subr.bf16.mxu0 0
      %3204 = vmatpush1.bf16.msra.mxu0 %v3163
      %3205 = vmatprep.subr.bf16.mxu0 0
      %3206 = vmatpush1.bf16.msra.mxu0 %v3164
      %3207 = vmatprep.subr.bf16.mxu0 0
      %3208 = vmatpush1.bf16.msra.mxu0 0
      %3209 = vmatprep.subr.bf16.mxu0 0
      %3210 = vmatpush1.bf16.msra.mxu0 0
      %3211 = vmatprep.subr.bf16.mxu0 0
      %3212 = vmatpush1.bf16.msra.mxu0 0
      %3213 = vmatprep.subr.bf16.mxu0 0
      %3214 = vmatpush1.bf16.msra.mxu0 0
      %3215 = vmatprep.subr.bf16.mxu0 0
      %3216 = vmatpush1.bf16.msra.mxu0 0
      %3217 = vmatprep.subr.bf16.mxu0 0
      %3218 = vmatpush1.bf16.msra.mxu0 0
      %3219 = vmatprep.subr.bf16.mxu0 0
      %3220 = vmatpush1.bf16.msra.mxu0 0
      %3221 = vmatprep.subr.bf16.mxu0 0
      %3222 = vmatpush1.bf16.msra.mxu0 0
      %3223 = vmatprep.subr.bf16.mxu0 0
      %3224 = vmatpush1.bf16.msra.mxu0 0
      %3225 = vmatprep.subr.bf16.mxu0 0
      %3226 = vmatpush1.bf16.msra.mxu0 0
      %3227 = vmatprep.subr.bf16.mxu0 0
      %3228 = vmatpush1.bf16.msra.mxu0 0
      %3229 = vmatprep.subr.bf16.mxu0 0
      %3230 = vmatpush1.bf16.msra.mxu0 0
      %3231 = vmatprep.mubr.bf16.mxu0 0
      %3232 = vmatmul.mubr.bf16.gmra.mrb[0].mxu0 %v3170
      %v3233 = vpop.f32.mrb[0].mxu0
      %v3234 = vadd.f32 %v3143, %v3233
      %v3235 = vpop.f32.mrb[0].mxu0
      %v3236 = vpop.f32.mrb[0].mxu0
      %v3237 = vadd.f32 %v3143, %v3236
      %v3238 = vpop.f32.mrb[0].mxu0
      %3239 = vmatprep.mubr.bf16.mxu0 0
      %3240 = vmatmul.mubr.bf16.gmra.mrb[0].mxu0 %v3173
      %v3241 = vpop.f32.mrb[0].mxu0
      %v3242 = vadd.f32 %v3143, %v3241
      %v3243 = vpop.f32.mrb[0].mxu0
      %v3244 = vpop.f32.mrb[0].mxu0
      %v3245 = vadd.f32 %v3143, %v3244
      %v3246 = vpop.f32.mrb[0].mxu0
      %3247 = vmatprep.mubr.bf16.mxu0 0
      %3248 = vmatmul.mubr.bf16.gmra.mrb[0].mxu0 %v3176
      %v3249 = vpop.f32.mrb[0].mxu0
      %v3250 = vadd.f32 %v3143, %v3249
      %v3251 = vpop.f32.mrb[0].mxu0
      %v3252 = vpop.f32.mrb[0].mxu0
      %v3253 = vadd.f32 %v3143, %v3252
      %v3254 = vpop.f32.mrb[0].mxu0
      %3255 = vmatprep.mubr.bf16.mxu0 0
      %3256 = vmatmul.mubr.bf16.gmra.mrb[0].mxu0 %v3179
      %v3257 = vpop.f32.mrb[0].mxu0
      %v3258 = vadd.f32 %v3143, %v3257
      %v3259 = vpop.f32.mrb[0].mxu0
      %v3260 = vpop.f32.mrb[0].mxu0
      %v3261 = vadd.f32 %v3143, %v3260
      %v3262 = vpop.f32.mrb[0].mxu0
      %3263 = vmatprep.mubr.bf16.mxu0 0
      %3264 = vmatmul.mubr.bf16.gmra.mrb[0].mxu0 %v3182
      %v3265 = vpop.f32.mrb[0].mxu0
      %v3266 = vadd.f32 %v3143, %v3265
      %v3267 = vpop.f32.mrb[0].mxu0
      %v3268 = vpop.f32.mrb[0].mxu0
      %v3269 = vadd.f32 %v3143, %v3268
      %v3270 = vpop.f32.mrb[0].mxu0
      %3271 = vmatprep.mubr.bf16.mxu0 0
      %3272 = vmatmul.mubr.bf16.gmra.mrb[0].mxu0 %v3185
      %v3273 = vpop.f32.mrb[0].mxu0
      %v3274 = vadd.f32 %v3143, %v3273
      %v3275 = vpop.f32.mrb[0].mxu0
      %v3276 = vpop.f32.mrb[0].mxu0
      %v3277 = vadd.f32 %v3143, %v3276
      %v3278 = vpop.f32.mrb[0].mxu0
      %3279 = vmatprep.mubr.bf16.mxu0 0
      %3280 = vmatmul.mubr.bf16.gmra.mrb[0].mxu0 %v3188
      %v3281 = vpop.f32.mrb[0].mxu0
      %v3282 = vadd.f32 %v3143, %v3281
      %v3283 = vpop.f32.mrb[0].mxu0
      %v3284 = vpop.f32.mrb[0].mxu0
      %v3285 = vadd.f32 %v3143, %v3284
      %v3286 = vpop.f32.mrb[0].mxu0
      %3287 = vmatprep.mubr.bf16.mxu0 0
      %3288 = vmatmul.mubr.bf16.gmra.mrb[0].mxu0 %v3191
      %v3289 = vpop.f32.mrb[0].mxu0
      %v3290 = vadd.f32 %v3143, %v3289
      %v3291 = vpop.f32.mrb[0].mxu0
      %v3292 = vpop.f32.mrb[0].mxu0
      %v3293 = vadd.f32 %v3143, %v3292
      %v3294 = vpop.f32.mrb[0].mxu0
      %3295 = vmatprep.mubr.bf16.mxu0 0
      %3296 = vmatmul.mubr.bf16.gmra.mrb[0].mxu0 %v3194
      %v3297 = vpop.f32.mrb[0].mxu0
      %v3298 = vadd.f32 %v3143, %v3297
      %v3299 = vpop.f32.mrb[0].mxu0
      %v3300 = vpop.f32.mrb[0].mxu0
      %v3301 = vadd.f32 %v3143, %v3300
      %v3302 = vpop.f32.mrb[0].mxu0
      %3303 = vmatprep.mubr.bf16.mxu0 0
      %3304 = vmatmul.mubr.bf16.gmra.mrb[0].mxu0 %v3197
      %v3305 = vpop.f32.mrb[0].mxu0
      %v3306 = vadd.f32 %v3143, %v3305
      %v3307 = vpop.f32.mrb[0].mxu0
      %v3308 = vpop.f32.mrb[0].mxu0
      %v3309 = vadd.f32 %v3143, %v3308
      %v3310 = vpop.f32.mrb[0].mxu0
      %3311 = vdwg.mxu0
      %v3312 = vtanh.pop %v3234
      %v3313 = vtanh.pop %v3237
      %v3314 = vtanh.pop %v3242
      %v3315 = vtanh.pop %v3245
      %v3316 = vtanh.pop %v3250
      %v3317 = vtanh.pop %v3253
      %v3318 = vtanh.pop %v3258
      %v3319 = vtanh.pop %v3261
      %v3320 = vtanh.pop %v3266
      %v3321 = vtanh.pop %v3269
      %v3322 = vtanh.pop %v3274
      %v3323 = vtanh.pop %v3277
      %v3324 = vtanh.pop %v3282
      %v3325 = vtanh.pop %v3285
      %v3326 = vtanh.pop %v3290
      %v3327 = vtanh.pop %v3293
      %v3328 = vtanh.pop %v3298
      %v3329 = vtanh.pop %v3301
      %v3330 = vtanh.pop %v3306
      %v3331 = vtanh.pop %v3309
      %v3332 = vpack.c.bf16 %v3313, %v3312
      %v3333 = vpack.c.bf16 %v3315, %v3314
      %v3334 = vpack.c.bf16 %v3317, %v3316
      %v3335 = vpack.c.bf16 %v3319, %v3318
      %v3336 = vpack.c.bf16 %v3321, %v3320
      %v3337 = vpack.c.bf16 %v3323, %v3322
      %v3338 = vpack.c.bf16 %v3325, %v3324
      %v3339 = vpack.c.bf16 %v3327, %v3326
      %v3340 = vpack.c.bf16 %v3329, %v3328
      %v3341 = vpack.c.bf16 %v3331, %v3330
      %v3342 = vld [vmem:[%s15] sm:$0xff]
      %v3343 = vld [vmem:[%s15 + $0x8] sm:$0xff]
      %v3344 = vld [vmem:[%s15 + $0x10] sm:$0xff]
      %v3345 = vld [vmem:[%s15 + $0x18] sm:$0xf]
      %v3346 = vld [vmem:[%s15 + $0x1c] sm:$0xff]
      %v3347 = vld [vmem:[%s15 + $0x24] sm:$0xff]
      %v3348 = vld [vmem:[%s15 + $0x2c] sm:$0xff]
      %v3349 = vld [vmem:[%s15 + $0x34] sm:$0xf]
      %v3350 = vld [vmem:[%s15 + $0x38] sm:$0xff]
      %v3351 = vld [vmem:[%s15 + $0x40] sm:$0xff]
      %v3352 = vld [vmem:[%s15 + $0x48] sm:$0xff]
      %v3353 = vld [vmem:[%s15 + $0x50] sm:$0xf]
      %v3354 = vld [vmem:[%s15 + $0x54] sm:$0xff]
      %v3355 = vld [vmem:[%s15 + $0x5c] sm:$0xff]
      %v3356 = vld [vmem:[%s15 + $0x64] sm:$0xff]
      %v3357 = vld [vmem:[%s15 + $0x6c] sm:$0xf]
      %v3358 = vld [vmem:[%s15 + $0x70] sm:$0xff]
      %v3359 = vld [vmem:[%s15 + $0x78] sm:$0xff]
      %v3360 = vld [vmem:[%s15 + $0x80] sm:$0xff]
      %v3361 = vld [vmem:[%s15 + $0x88] sm:$0xf]
      %v3362 = vld [vmem:[%s15 + $0x8c] sm:$0xff]
      %v3363 = vld [vmem:[%s15 + $0x94] sm:$0xff]
      %v3364 = vld [vmem:[%s15 + $0x9c] sm:$0xff]
      %v3365 = vld [vmem:[%s15 + $0xa4] sm:$0xf]
      %v3366 = vld [vmem:[%s15 + $0xa8] sm:$0xff]
      %v3367 = vld [vmem:[%s15 + $0xb0] sm:$0xff]
      %v3368 = vld [vmem:[%s15 + $0xb8] sm:$0xff]
      %v3369 = vld [vmem:[%s15 + $0xc0] sm:$0xf]
      %v3370 = vld [vmem:[%s15 + $0xc4] sm:$0xff]
      %v3371 = vld [vmem:[%s15 + $0xcc] sm:$0xff]
      %v3372 = vld [vmem:[%s15 + $0xd4] sm:$0xff]
      %v3373 = vld [vmem:[%s15 + $0xdc] sm:$0xf]
      %v3374 = vld [vmem:[%s15 + $0xe0] sm:$0xff]
      %v3375 = vld [vmem:[%s15 + $0xe8] sm:$0xff]
      %v3376 = vld [vmem:[%s15 + $0xf0] sm:$0xff]
      %v3377 = vld [vmem:[%s15 + $0xf8] sm:$0xf]
      %v3378 = vld [vmem:[%s15 + $0xfc] sm:$0xff]
      %v3379 = vld [vmem:[%s15 + $0x104] sm:$0xff]
      %v3380 = vld [vmem:[%s15 + $0x10c] sm:$0xff]
      %v3381 = vld [vmem:[%s15 + $0x114] sm:$0xf]
      %v3382 = vld [vmem:[%s15 + $0x118] sm:$0xff]
      %v3383 = vld [vmem:[%s15 + $0x120] sm:$0xff]
      %v3384 = vld [vmem:[%s15 + $0x128] sm:$0xff]
      %v3385 = vld [vmem:[%s15 + $0x130] sm:$0xf]
      %v3386 = vld [vmem:[%s15 + $0x134] sm:$0xff]
      %v3387 = vld [vmem:[%s15 + $0x13c] sm:$0xff]
      %v3388 = vld [vmem:[%s15 + $0x144] sm:$0xff]
      %v3389 = vld [vmem:[%s15 + $0x14c] sm:$0xf]
      %v3390 = vld [vmem:[%s15 + $0x150] sm:$0xff]
      %v3391 = vld [vmem:[%s15 + $0x158] sm:$0xff]
      %v3392 = vld [vmem:[%s15 + $0x160] sm:$0xff]
      %v3393 = vld [vmem:[%s15 + $0x168] sm:$0xf]
      %v3394 = vld [vmem:[%s15 + $0x16c] sm:$0xff]
      %v3395 = vld [vmem:[%s15 + $0x174] sm:$0xff]
      %v3396 = vld [vmem:[%s15 + $0x17c] sm:$0xff]
      %v3397 = vld [vmem:[%s15 + $0x184] sm:$0xf]
      %v3398 = vld [vmem:[%s15 + $0x188] sm:$0xff]
      %v3399 = vld [vmem:[%s15 + $0x190] sm:$0xff]
      %v3400 = vld [vmem:[%s15 + $0x198] sm:$0xff]
      %v3401 = vld [vmem:[%s15 + $0x1a0] sm:$0xf]
      %v3402 = vld [vmem:[%s15 + $0x1a4] sm:$0xff]
      %v3403 = vld [vmem:[%s15 + $0x1ac] sm:$0xff]
      %v3404 = vld [vmem:[%s15 + $0x1b4] sm:$0xff]
      %v3405 = vld [vmem:[%s15 + $0x1bc] sm:$0xf]
      %v3406 = vld [vmem:[%s16] sm:$0x7f]
      %v3408 = vlaneseq
      %v3409 = vshrl.u32 %v3408, 7
      %v3410 = vsub.s32 0, %v3409
      %v3411 = vrot.slane %v3406, %v3410
      %v3412 = vlaneseq
      %v3413 = vshrl.u32 %v3412, 7
      %v3414 = vsub.s32 1, %v3413
      %v3415 = vrot.slane %v3406, %v3414
      %v3416 = vlaneseq
      %v3417 = vshrl.u32 %v3416, 7
      %v3418 = vsub.s32 2, %v3417
      %v3419 = vrot.slane %v3406, %v3418
      %v3420 = vlaneseq
      %v3421 = vshrl.u32 %v3420, 7
      %v3422 = vsub.s32 3, %v3421
      %v3423 = vrot.slane %v3406, %v3422
      %v3424 = vlaneseq
      %v3425 = vshrl.u32 %v3424, 7
      %v3426 = vsub.s32 4, %v3425
      %v3427 = vrot.slane %v3406, %v3426
      %v3428 = vlaneseq
      %v3429 = vshrl.u32 %v3428, 7
      %v3430 = vsub.s32 5, %v3429
      %v3431 = vrot.slane %v3406, %v3430
      %v3432 = vlaneseq
      %v3433 = vshrl.u32 %v3432, 7
      %v3434 = vsub.s32 6, %v3433
      %v3435 = vrot.slane %v3406, %v3434
      %v3507 = vunpack.c.l.b16 %v3342
      %v3508 = vunpack.c.h.b16 %v3342
      %v3509 = vunpack.c.l.b16 %v3343
      %v3510 = vunpack.c.h.b16 %v3343
      %v3511 = vunpack.c.l.b16 %v3344
      %v3512 = vunpack.c.h.b16 %v3344
      %v3513 = vunpack.c.l.b16 %v3345
      %v3514 = vunpack.c.l.b16 %v3346
      %v3515 = vunpack.c.h.b16 %v3346
      %v3516 = vunpack.c.l.b16 %v3347
      %v3517 = vunpack.c.h.b16 %v3347
      %v3518 = vunpack.c.l.b16 %v3348
      %v3519 = vunpack.c.h.b16 %v3348
      %v3520 = vunpack.c.l.b16 %v3349
      %v3521 = vunpack.c.l.b16 %v3350
      %v3522 = vunpack.c.h.b16 %v3350
      %v3523 = vunpack.c.l.b16 %v3351
      %v3524 = vunpack.c.h.b16 %v3351
      %v3525 = vunpack.c.l.b16 %v3352
      %v3526 = vunpack.c.h.b16 %v3352
      %v3527 = vunpack.c.l.b16 %v3353
      %v3528 = vunpack.c.l.b16 %v3354
      %v3529 = vunpack.c.h.b16 %v3354
      %v3530 = vunpack.c.l.b16 %v3355
      %v3531 = vunpack.c.h.b16 %v3355
      %v3532 = vunpack.c.l.b16 %v3356
      %v3533 = vunpack.c.h.b16 %v3356
      %v3534 = vunpack.c.l.b16 %v3357
      %v3535 = vunpack.c.l.b16 %v3358
      %v3536 = vunpack.c.h.b16 %v3358
      %v3537 = vunpack.c.l.b16 %v3359
      %v3538 = vunpack.c.h.b16 %v3359
      %v3539 = vunpack.c.l.b16 %v3360
      %v3540 = vunpack.c.h.b16 %v3360
      %v3541 = vunpack.c.l.b16 %v3361
      %v3542 = vunpack.c.l.b16 %v3362
      %v3543 = vunpack.c.h.b16 %v3362
      %v3544 = vunpack.c.l.b16 %v3363
      %v3545 = vunpack.c.h.b16 %v3363
      %v3546 = vunpack.c.l.b16 %v3364
      %v3547 = vunpack.c.h.b16 %v3364
      %v3548 = vunpack.c.l.b16 %v3365
      %v3549 = vunpack.c.l.b16 %v3366
      %v3550 = vunpack.c.h.b16 %v3366
      %v3551 = vunpack.c.l.b16 %v3367
      %v3552 = vunpack.c.h.b16 %v3367
      %v3553 = vunpack.c.l.b16 %v3368
      %v3554 = vunpack.c.h.b16 %v3368
      %v3555 = vunpack.c.l.b16 %v3369
      %v3556 = vunpack.c.l.b16 %v3370
      %v3557 = vunpack.c.h.b16 %v3370
      %v3558 = vunpack.c.l.b16 %v3371
      %v3559 = vunpack.c.h.b16 %v3371
      %v3560 = vunpack.c.l.b16 %v3372
      %v3561 = vunpack.c.h.b16 %v3372
      %v3562 = vunpack.c.l.b16 %v3373
      %v3563 = vunpack.c.l.b16 %v3374
      %v3564 = vunpack.c.h.b16 %v3374
      %v3565 = vunpack.c.l.b16 %v3375
      %v3566 = vunpack.c.h.b16 %v3375
      %v3567 = vunpack.c.l.b16 %v3376
      %v3568 = vunpack.c.h.b16 %v3376
      %v3569 = vunpack.c.l.b16 %v3377
      %v3570 = vunpack.c.l.b16 %v3378
      %v3571 = vunpack.c.h.b16 %v3378
      %v3572 = vunpack.c.l.b16 %v3379
      %v3573 = vunpack.c.h.b16 %v3379
      %v3574 = vunpack.c.l.b16 %v3380
      %v3575 = vunpack.c.h.b16 %v3380
      %v3576 = vunpack.c.l.b16 %v3381
      %v3577 = vunpack.c.l.b16 %v3382
      %v3578 = vunpack.c.h.b16 %v3382
      %v3579 = vunpack.c.l.b16 %v3383
      %v3580 = vunpack.c.h.b16 %v3383
      %v3581 = vunpack.c.l.b16 %v3384
      %v3582 = vunpack.c.h.b16 %v3384
      %v3583 = vunpack.c.l.b16 %v3385
      %v3584 = vunpack.c.l.b16 %v3386
      %v3585 = vunpack.c.h.b16 %v3386
      %v3586 = vunpack.c.l.b16 %v3387
      %v3587 = vunpack.c.h.b16 %v3387
      %v3588 = vunpack.c.l.b16 %v3388
      %v3589 = vunpack.c.h.b16 %v3388
      %v3590 = vunpack.c.l.b16 %v3389
      %v3591 = vunpack.c.l.b16 %v3390
      %v3592 = vunpack.c.h.b16 %v3390
      %v3593 = vunpack.c.l.b16 %v3391
      %v3594 = vunpack.c.h.b16 %v3391
      %v3595 = vunpack.c.l.b16 %v3392
      %v3596 = vunpack.c.h.b16 %v3392
      %v3597 = vunpack.c.l.b16 %v3393
      %v3598 = vunpack.c.l.b16 %v3394
      %v3599 = vunpack.c.h.b16 %v3394
      %v3600 = vunpack.c.l.b16 %v3395
      %v3601 = vunpack.c.h.b16 %v3395
      %v3602 = vunpack.c.l.b16 %v3396
      %v3603 = vunpack.c.h.b16 %v3396
      %v3604 = vunpack.c.l.b16 %v3397
      %v3605 = vunpack.c.l.b16 %v3398
      %v3606 = vunpack.c.h.b16 %v3398
      %v3607 = vunpack.c.l.b16 %v3399
      %v3608 = vunpack.c.h.b16 %v3399
      %v3609 = vunpack.c.l.b16 %v3400
      %v3610 = vunpack.c.h.b16 %v3400
      %v3611 = vunpack.c.l.b16 %v3401
      %v3612 = vunpack.c.l.b16 %v3402
      %v3613 = vunpack.c.h.b16 %v3402
      %v3614 = vunpack.c.l.b16 %v3403
      %v3615 = vunpack.c.h.b16 %v3403
      %v3616 = vunpack.c.l.b16 %v3404
      %v3617 = vunpack.c.h.b16 %v3404
      %v3618 = vunpack.c.l.b16 %v3405
      %v3619 = vpack.c.b16 %v3514, %v3507
      %v3620 = vpack.c.b16 %v3515, %v3508
      %v3621 = vpack.c.b16 %v3516, %v3509
      %v3622 = vpack.c.b16 %v3517, %v3510
      %v3623 = vpack.c.b16 %v3518, %v3511
      %v3624 = vpack.c.b16 %v3519, %v3512
      %v3625 = vpack.c.b16 %v3520, %v3513
      %v3626 = vpack.c.b16 %v3528, %v3521
      %v3627 = vpack.c.b16 %v3529, %v3522
      %v3628 = vpack.c.b16 %v3530, %v3523
      %v3629 = vpack.c.b16 %v3531, %v3524
      %v3630 = vpack.c.b16 %v3532, %v3525
      %v3631 = vpack.c.b16 %v3533, %v3526
      %v3632 = vpack.c.b16 %v3534, %v3527
      %v3633 = vpack.c.b16 %v3542, %v3535
      %v3634 = vpack.c.b16 %v3543, %v3536
      %v3635 = vpack.c.b16 %v3544, %v3537
      %v3636 = vpack.c.b16 %v3545, %v3538
      %v3637 = vpack.c.b16 %v3546, %v3539
      %v3638 = vpack.c.b16 %v3547, %v3540
      %v3639 = vpack.c.b16 %v3548, %v3541
      %v3640 = vpack.c.b16 %v3556, %v3549
      %v3641 = vpack.c.b16 %v3557, %v3550
      %v3642 = vpack.c.b16 %v3558, %v3551
      %v3643 = vpack.c.b16 %v3559, %v3552
      %v3644 = vpack.c.b16 %v3560, %v3553
      %v3645 = vpack.c.b16 %v3561, %v3554
      %v3646 = vpack.c.b16 %v3562, %v3555
      %v3647 = vpack.c.b16 %v3570, %v3563
      %v3648 = vpack.c.b16 %v3571, %v3564
      %v3649 = vpack.c.b16 %v3572, %v3565
      %v3650 = vpack.c.b16 %v3573, %v3566
      %v3651 = vpack.c.b16 %v3574, %v3567
      %v3652 = vpack.c.b16 %v3575, %v3568
      %v3653 = vpack.c.b16 %v3576, %v3569
      %v3654 = vpack.c.b16 %v3584, %v3577
      %v3655 = vpack.c.b16 %v3585, %v3578
      %v3656 = vpack.c.b16 %v3586, %v3579
      %v3657 = vpack.c.b16 %v3587, %v3580
      %v3658 = vpack.c.b16 %v3588, %v3581
      %v3659 = vpack.c.b16 %v3589, %v3582
      %v3660 = vpack.c.b16 %v3590, %v3583
      %v3661 = vpack.c.b16 %v3598, %v3591
      %v3662 = vpack.c.b16 %v3599, %v3592
      %v3663 = vpack.c.b16 %v3600, %v3593
      %v3664 = vpack.c.b16 %v3601, %v3594
      %v3665 = vpack.c.b16 %v3602, %v3595
      %v3666 = vpack.c.b16 %v3603, %v3596
      %v3667 = vpack.c.b16 %v3604, %v3597
      %v3668 = vpack.c.b16 %v3612, %v3605
      %v3669 = vpack.c.b16 %v3613, %v3606
      %v3670 = vpack.c.b16 %v3614, %v3607
      %v3671 = vpack.c.b16 %v3615, %v3608
      %v3672 = vpack.c.b16 %v3616, %v3609
      %v3673 = vpack.c.b16 %v3617, %v3610
      %v3674 = vpack.c.b16 %v3618, %v3611
      %3731 = vmatprep.subr.bf16.mxu0 %v3620
      %3732 = vmatpush1.bf16.msra.mxu0 %v3619
      %3733 = vmatprep.subr.bf16.mxu0 %v3627
      %3734 = vmatpush1.bf16.msra.mxu0 %v3626
      %3735 = vmatprep.subr.bf16.mxu0 %v3634
      %3736 = vmatpush1.bf16.msra.mxu0 %v3633
      %3737 = vmatprep.subr.bf16.mxu0 %v3641
      %3738 = vmatpush1.bf16.msra.mxu0 %v3640
      %3739 = vmatprep.subr.bf16.mxu0 %v3648
      %3740 = vmatpush1.bf16.msra.mxu0 %v3647
      %3741 = vmatprep.subr.bf16.mxu0 %v3655
      %3742 = vmatpush1.bf16.msra.mxu0 %v3654
      %3743 = vmatprep.subr.bf16.mxu0 %v3662
      %3744 = vmatpush1.bf16.msra.mxu0 %v3661
      %3745 = vmatprep.subr.bf16.mxu0 %v3669
      %3746 = vmatpush1.bf16.msra.mxu0 %v3668
      %3747 = vmatprep.subr.bf16.mxu0 0
      %3748 = vmatpush1.bf16.msra.mxu0 0
      %3749 = vmatprep.subr.bf16.mxu0 0
      %3750 = vmatpush1.bf16.msra.mxu0 0
      %3751 = vmatprep.subr.bf16.mxu0 0
      %3752 = vmatpush1.bf16.msra.mxu0 0
      %3753 = vmatprep.subr.bf16.mxu0 0
      %3754 = vmatpush1.bf16.msra.mxu0 0
      %3755 = vmatprep.subr.bf16.mxu0 0
      %3756 = vmatpush1.bf16.msra.mxu0 0
      %3757 = vmatprep.subr.bf16.mxu0 0
      %3758 = vmatpush1.bf16.msra.mxu0 0
      %3759 = vmatprep.subr.bf16.mxu0 0
      %3760 = vmatpush1.bf16.msra.mxu0 0
      %3761 = vmatprep.subr.bf16.mxu0 0
      %3762 = vmatpush1.bf16.msra.mxu0 0
      %3763 = vmatprep.mubr.bf16.mxu0 0
      %3764 = vmatmul.mubr.bf16.gmra.mrb[0].mxu0 %v3332
      %v3765 = vpop.f32.mrb[0].mxu0
      %v3766 = vadd.f32 %v3411, %v3765
      %v3767 = vpop.f32.mrb[0].mxu0
      %v3768 = vadd.f32 %v3415, %v3767
      %v3769 = vpop.f32.mrb[0].mxu0
      %v3770 = vadd.f32 %v3411, %v3769
      %v3771 = vpop.f32.mrb[0].mxu0
      %v3772 = vadd.f32 %v3415, %v3771
      %3773 = vmatprep.mubr.bf16.mxu0 0
      %3774 = vmatmul.mubr.bf16.gmra.mrb[0].mxu0 %v3333
      %v3775 = vpop.f32.mrb[0].mxu0
      %v3776 = vadd.f32 %v3411, %v3775
      %v3777 = vpop.f32.mrb[0].mxu0
      %v3778 = vadd.f32 %v3415, %v3777
      %v3779 = vpop.f32.mrb[0].mxu0
      %v3780 = vadd.f32 %v3411, %v3779
      %v3781 = vpop.f32.mrb[0].mxu0
      %v3782 = vadd.f32 %v3415, %v3781
      %3783 = vmatprep.mubr.bf16.mxu0 0
      %3784 = vmatmul.mubr.bf16.gmra.mrb[0].mxu0 %v3334
      %v3785 = vpop.f32.mrb[0].mxu0
      %v3786 = vadd.f32 %v3411, %v3785
      %v3787 = vpop.f32.mrb[0].mxu0
      %v3788 = vadd.f32 %v3415, %v3787
      %v3789 = vpop.f32.mrb[0].mxu0
      %v3790 = vadd.f32 %v3411, %v3789
      %v3791 = vpop.f32.mrb[0].mxu0
      %v3792 = vadd.f32 %v3415, %v3791
      %3793 = vmatprep.mubr.bf16.mxu0 0
      %3794 = vmatmul.mubr.bf16.gmra.mrb[0].mxu0 %v3335
      %v3795 = vpop.f32.mrb[0].mxu0
      %v3796 = vadd.f32 %v3411, %v3795
      %v3797 = vpop.f32.mrb[0].mxu0
      %v3798 = vadd.f32 %v3415, %v3797
      %v3799 = vpop.f32.mrb[0].mxu0
      %v3800 = vadd.f32 %v3411, %v3799
      %v3801 = vpop.f32.mrb[0].mxu0
      %v3802 = vadd.f32 %v3415, %v3801
      %3803 = vmatprep.mubr.bf16.mxu0 0
      %3804 = vmatmul.mubr.bf16.gmra.mrb[0].mxu0 %v3336
      %v3805 = vpop.f32.mrb[0].mxu0
      %v3806 = vadd.f32 %v3411, %v3805
      %v3807 = vpop.f32.mrb[0].mxu0
      %v3808 = vadd.f32 %v3415, %v3807
      %v3809 = vpop.f32.mrb[0].mxu0
      %v3810 = vadd.f32 %v3411, %v3809
      %v3811 = vpop.f32.mrb[0].mxu0
      %v3812 = vadd.f32 %v3415, %v3811
      %3813 = vmatprep.mubr.bf16.mxu0 0
      %3814 = vmatmul.mubr.bf16.gmra.mrb[0].mxu0 %v3337
      %v3815 = vpop.f32.mrb[0].mxu0
      %v3816 = vadd.f32 %v3411, %v3815
      %v3817 = vpop.f32.mrb[0].mxu0
      %v3818 = vadd.f32 %v3415, %v3817
      %v3819 = vpop.f32.mrb[0].mxu0
      %v3820 = vadd.f32 %v3411, %v3819
      %v3821 = vpop.f32.mrb[0].mxu0
      %v3822 = vadd.f32 %v3415, %v3821
      %3823 = vmatprep.mubr.bf16.mxu0 0
      %3824 = vmatmul.mubr.bf16.gmra.mrb[0].mxu0 %v3338
      %v3825 = vpop.f32.mrb[0].mxu0
      %v3826 = vadd.f32 %v3411, %v3825
      %v3827 = vpop.f32.mrb[0].mxu0
      %v3828 = vadd.f32 %v3415, %v3827
      %v3829 = vpop.f32.mrb[0].mxu0
      %v3830 = vadd.f32 %v3411, %v3829
      %v3831 = vpop.f32.mrb[0].mxu0
      %v3832 = vadd.f32 %v3415, %v3831
      %3833 = vmatprep.mubr.bf16.mxu0 0
      %3834 = vmatmul.mubr.bf16.gmra.mrb[0].mxu0 %v3339
      %v3835 = vpop.f32.mrb[0].mxu0
      %v3836 = vadd.f32 %v3411, %v3835
      %v3837 = vpop.f32.mrb[0].mxu0
      %v3838 = vadd.f32 %v3415, %v3837
      %v3839 = vpop.f32.mrb[0].mxu0
      %v3840 = vadd.f32 %v3411, %v3839
      %v3841 = vpop.f32.mrb[0].mxu0
      %v3842 = vadd.f32 %v3415, %v3841
      %3843 = vmatprep.mubr.bf16.mxu0 0
      %3844 = vmatmul.mubr.bf16.gmra.mrb[0].mxu0 %v3340
      %v3845 = vpop.f32.mrb[0].mxu0
      %v3846 = vadd.f32 %v3411, %v3845
      %v3847 = vpop.f32.mrb[0].mxu0
      %v3848 = vadd.f32 %v3415, %v3847
      %v3849 = vpop.f32.mrb[0].mxu0
      %v3850 = vadd.f32 %v3411, %v3849
      %v3851 = vpop.f32.mrb[0].mxu0
      %v3852 = vadd.f32 %v3415, %v3851
      %3853 = vmatprep.mubr.bf16.mxu0 0
      %3854 = vmatmul.mubr.bf16.gmra.mrb[0].mxu0 %v3341
      %v3855 = vpop.f32.mrb[0].mxu0
      %v3856 = vadd.f32 %v3411, %v3855
      %v3857 = vpop.f32.mrb[0].mxu0
      %v3858 = vadd.f32 %v3415, %v3857
      %v3859 = vpop.f32.mrb[0].mxu0
      %v3860 = vadd.f32 %v3411, %v3859
      %v3861 = vpop.f32.mrb[0].mxu0
      %v3862 = vadd.f32 %v3415, %v3861
      %3863 = vdwg.mxu0
      %3864 = vmatprep.subr.bf16.mxu0 %v3622
      %3865 = vmatpush1.bf16.msra.mxu0 %v3621
      %3866 = vmatprep.subr.bf16.mxu0 %v3629
      %3867 = vmatpush1.bf16.msra.mxu0 %v3628
      %3868 = vmatprep.subr.bf16.mxu0 %v3636
      %3869 = vmatpush1.bf16.msra.mxu0 %v3635
      %3870 = vmatprep.subr.bf16.mxu0 %v3643
      %3871 = vmatpush1.bf16.msra.mxu0 %v3642
      %3872 = vmatprep.subr.bf16.mxu0 %v3650
      %3873 = vmatpush1.bf16.msra.mxu0 %v3649
      %3874 = vmatprep.subr.bf16.mxu0 %v3657
      %3875 = vmatpush1.bf16.msra.mxu0 %v3656
      %3876 = vmatprep.subr.bf16.mxu0 %v3664
      %3877 = vmatpush1.bf16.msra.mxu0 %v3663
      %3878 = vmatprep.subr.bf16.mxu0 %v3671
      %3879 = vmatpush1.bf16.msra.mxu0 %v3670
      %3880 = vmatprep.subr.bf16.mxu0 0
      %3881 = vmatpush1.bf16.msra.mxu0 0
      %3882 = vmatprep.subr.bf16.mxu0 0
      %3883 = vmatpush1.bf16.msra.mxu0 0
      %3884 = vmatprep.subr.bf16.mxu0 0
      %3885 = vmatpush1.bf16.msra.mxu0 0
      %3886 = vmatprep.subr.bf16.mxu0 0
      %3887 = vmatpush1.bf16.msra.mxu0 0
      %3888 = vmatprep.subr.bf16.mxu0 0
      %3889 = vmatpush1.bf16.msra.mxu0 0
      %3890 = vmatprep.subr.bf16.mxu0 0
      %3891 = vmatpush1.bf16.msra.mxu0 0
      %3892 = vmatprep.subr.bf16.mxu0 0
      %3893 = vmatpush1.bf16.msra.mxu0 0
      %3894 = vmatprep.subr.bf16.mxu0 0
      %3895 = vmatpush1.bf16.msra.mxu0 0
      %3896 = vmatprep.mubr.bf16.mxu0 0
      %3897 = vmatmul.mubr.bf16.gmra.mrb[0].mxu0 %v3332
      %v3898 = vpop.f32.mrb[0].mxu0
      %v3899 = vadd.f32 %v3419, %v3898
      %v3900 = vpop.f32.mrb[0].mxu0
      %v3901 = vadd.f32 %v3423, %v3900
      %v3902 = vpop.f32.mrb[0].mxu0
      %v3903 = vadd.f32 %v3419, %v3902
      %v3904 = vpop.f32.mrb[0].mxu0
      %v3905 = vadd.f32 %v3423, %v3904
      %3906 = vmatprep.mubr.bf16.mxu0 0
      %3907 = vmatmul.mubr.bf16.gmra.mrb[0].mxu0 %v3333
      %v3908 = vpop.f32.mrb[0].mxu0
      %v3909 = vadd.f32 %v3419, %v3908
      %v3910 = vpop.f32.mrb[0].mxu0
      %v3911 = vadd.f32 %v3423, %v3910
      %v3912 = vpop.f32.mrb[0].mxu0
      %v3913 = vadd.f32 %v3419, %v3912
      %v3914 = vpop.f32.mrb[0].mxu0
      %v3915 = vadd.f32 %v3423, %v3914
      %3916 = vmatprep.mubr.bf16.mxu0 0
      %3917 = vmatmul.mubr.bf16.gmra.mrb[0].mxu0 %v3334
      %v3918 = vpop.f32.mrb[0].mxu0
      %v3919 = vadd.f32 %v3419, %v3918
      %v3920 = vpop.f32.mrb[0].mxu0
      %v3921 = vadd.f32 %v3423, %v3920
      %v3922 = vpop.f32.mrb[0].mxu0
      %v3923 = vadd.f32 %v3419, %v3922
      %v3924 = vpop.f32.mrb[0].mxu0
      %v3925 = vadd.f32 %v3423, %v3924
      %3926 = vmatprep.mubr.bf16.mxu0 0
      %3927 = vmatmul.mubr.bf16.gmra.mrb[0].mxu0 %v3335
      %v3928 = vpop.f32.mrb[0].mxu0
      %v3929 = vadd.f32 %v3419, %v3928
      %v3930 = vpop.f32.mrb[0].mxu0
      %v3931 = vadd.f32 %v3423, %v3930
      %v3932 = vpop.f32.mrb[0].mxu0
      %v3933 = vadd.f32 %v3419, %v3932
      %v3934 = vpop.f32.mrb[0].mxu0
      %v3935 = vadd.f32 %v3423, %v3934
      %3936 = vmatprep.mubr.bf16.mxu0 0
      %3937 = vmatmul.mubr.bf16.gmra.mrb[0].mxu0 %v3336
      %v3938 = vpop.f32.mrb[0].mxu0
      %v3939 = vadd.f32 %v3419, %v3938
      %v3940 = vpop.f32.mrb[0].mxu0
      %v3941 = vadd.f32 %v3423, %v3940
      %v3942 = vpop.f32.mrb[0].mxu0
      %v3943 = vadd.f32 %v3419, %v3942
      %v3944 = vpop.f32.mrb[0].mxu0
      %v3945 = vadd.f32 %v3423, %v3944
      %3946 = vmatprep.mubr.bf16.mxu0 0
      %3947 = vmatmul.mubr.bf16.gmra.mrb[0].mxu0 %v3337
      %v3948 = vpop.f32.mrb[0].mxu0
      %v3949 = vadd.f32 %v3419, %v3948
      %v3950 = vpop.f32.mrb[0].mxu0
      %v3951 = vadd.f32 %v3423, %v3950
      %v3952 = vpop.f32.mrb[0].mxu0
      %v3953 = vadd.f32 %v3419, %v3952
      %v3954 = vpop.f32.mrb[0].mxu0
      %v3955 = vadd.f32 %v3423, %v3954
      %3956 = vmatprep.mubr.bf16.mxu0 0
      %3957 = vmatmul.mubr.bf16.gmra.mrb[0].mxu0 %v3338
      %v3958 = vpop.f32.mrb[0].mxu0
      %v3959 = vadd.f32 %v3419, %v3958
      %v3960 = vpop.f32.mrb[0].mxu0
      %v3961 = vadd.f32 %v3423, %v3960
      %v3962 = vpop.f32.mrb[0].mxu0
      %v3963 = vadd.f32 %v3419, %v3962
      %v3964 = vpop.f32.mrb[0].mxu0
      %v3965 = vadd.f32 %v3423, %v3964
      %3966 = vmatprep.mubr.bf16.mxu0 0
      %3967 = vmatmul.mubr.bf16.gmra.mrb[0].mxu0 %v3339
      %v3968 = vpop.f32.mrb[0].mxu0
      %v3969 = vadd.f32 %v3419, %v3968
      %v3970 = vpop.f32.mrb[0].mxu0
      %v3971 = vadd.f32 %v3423, %v3970
      %v3972 = vpop.f32.mrb[0].mxu0
      %v3973 = vadd.f32 %v3419, %v3972
      %v3974 = vpop.f32.mrb[0].mxu0
      %v3975 = vadd.f32 %v3423, %v3974
      %3976 = vmatprep.mubr.bf16.mxu0 0
      %3977 = vmatmul.mubr.bf16.gmra.mrb[0].mxu0 %v3340
      %v3978 = vpop.f32.mrb[0].mxu0
      %v3979 = vadd.f32 %v3419, %v3978
      %v3980 = vpop.f32.mrb[0].mxu0
      %v3981 = vadd.f32 %v3423, %v3980
      %v3982 = vpop.f32.mrb[0].mxu0
      %v3983 = vadd.f32 %v3419, %v3982
      %v3984 = vpop.f32.mrb[0].mxu0
      %v3985 = vadd.f32 %v3423, %v3984
      %3986 = vmatprep.mubr.bf16.mxu0 0
      %3987 = vmatmul.mubr.bf16.gmra.mrb[0].mxu0 %v3341
      %v3988 = vpop.f32.mrb[0].mxu0
      %v3989 = vadd.f32 %v3419, %v3988
      %v3990 = vpop.f32.mrb[0].mxu0
      %v3991 = vadd.f32 %v3423, %v3990
      %v3992 = vpop.f32.mrb[0].mxu0
      %v3993 = vadd.f32 %v3419, %v3992
      %v3994 = vpop.f32.mrb[0].mxu0
      %v3995 = vadd.f32 %v3423, %v3994
      %3996 = vdwg.mxu0
      %3997 = vmatprep.subr.bf16.mxu0 %v3624
      %3998 = vmatpush1.bf16.msra.mxu0 %v3623
      %3999 = vmatprep.subr.bf16.mxu0 %v3631
      %4000 = vmatpush1.bf16.msra.mxu0 %v3630
      %4001 = vmatprep.subr.bf16.mxu0 %v3638
      %4002 = vmatpush1.bf16.msra.mxu0 %v3637
      %4003 = vmatprep.subr.bf16.mxu0 %v3645
      %4004 = vmatpush1.bf16.msra.mxu0 %v3644
      %4005 = vmatprep.subr.bf16.mxu0 %v3652
      %4006 = vmatpush1.bf16.msra.mxu0 %v3651
      %4007 = vmatprep.subr.bf16.mxu0 %v3659
      %4008 = vmatpush1.bf16.msra.mxu0 %v3658
      %4009 = vmatprep.subr.bf16.mxu0 %v3666
      %4010 = vmatpush1.bf16.msra.mxu0 %v3665
      %4011 = vmatprep.subr.bf16.mxu0 %v3673
      %4012 = vmatpush1.bf16.msra.mxu0 %v3672
      %4013 = vmatprep.subr.bf16.mxu0 0
      %4014 = vmatpush1.bf16.msra.mxu0 0
      %4015 = vmatprep.subr.bf16.mxu0 0
      %4016 = vmatpush1.bf16.msra.mxu0 0
      %4017 = vmatprep.subr.bf16.mxu0 0
      %4018 = vmatpush1.bf16.msra.mxu0 0
      %4019 = vmatprep.subr.bf16.mxu0 0
      %4020 = vmatpush1.bf16.msra.mxu0 0
      %4021 = vmatprep.subr.bf16.mxu0 0
      %4022 = vmatpush1.bf16.msra.mxu0 0
      %4023 = vmatprep.subr.bf16.mxu0 0
      %4024 = vmatpush1.bf16.msra.mxu0 0
      %4025 = vmatprep.subr.bf16.mxu0 0
      %4026 = vmatpush1.bf16.msra.mxu0 0
      %4027 = vmatprep.subr.bf16.mxu0 0
      %4028 = vmatpush1.bf16.msra.mxu0 0
      %4029 = vmatprep.mubr.bf16.mxu0 0
      %4030 = vmatmul.mubr.bf16.gmra.mrb[0].mxu0 %v3332
      %v4031 = vpop.f32.mrb[0].mxu0
      %v4032 = vadd.f32 %v3427, %v4031
      %v4033 = vpop.f32.mrb[0].mxu0
      %v4034 = vadd.f32 %v3431, %v4033
      %v4035 = vpop.f32.mrb[0].mxu0
      %v4036 = vadd.f32 %v3427, %v4035
      %v4037 = vpop.f32.mrb[0].mxu0
      %v4038 = vadd.f32 %v3431, %v4037
      %4039 = vmatprep.mubr.bf16.mxu0 0
      %4040 = vmatmul.mubr.bf16.gmra.mrb[0].mxu0 %v3333
      %v4041 = vpop.f32.mrb[0].mxu0
      %v4042 = vadd.f32 %v3427, %v4041
      %v4043 = vpop.f32.mrb[0].mxu0
      %v4044 = vadd.f32 %v3431, %v4043
      %v4045 = vpop.f32.mrb[0].mxu0
      %v4046 = vadd.f32 %v3427, %v4045
      %v4047 = vpop.f32.mrb[0].mxu0
      %v4048 = vadd.f32 %v3431, %v4047
      %4049 = vmatprep.mubr.bf16.mxu0 0
      %4050 = vmatmul.mubr.bf16.gmra.mrb[0].mxu0 %v3334
      %v4051 = vpop.f32.mrb[0].mxu0
      %v4052 = vadd.f32 %v3427, %v4051
      %v4053 = vpop.f32.mrb[0].mxu0
      %v4054 = vadd.f32 %v3431, %v4053
      %v4055 = vpop.f32.mrb[0].mxu0
      %v4056 = vadd.f32 %v3427, %v4055
      %v4057 = vpop.f32.mrb[0].mxu0
      %v4058 = vadd.f32 %v3431, %v4057
      %4059 = vmatprep.mubr.bf16.mxu0 0
      %4060 = vmatmul.mubr.bf16.gmra.mrb[0].mxu0 %v3335
      %v4061 = vpop.f32.mrb[0].mxu0
      %v4062 = vadd.f32 %v3427, %v4061
      %v4063 = vpop.f32.mrb[0].mxu0
      %v4064 = vadd.f32 %v3431, %v4063
      %v4065 = vpop.f32.mrb[0].mxu0
      %v4066 = vadd.f32 %v3427, %v4065
      %v4067 = vpop.f32.mrb[0].mxu0
      %v4068 = vadd.f32 %v3431, %v4067
      %4069 = vmatprep.mubr.bf16.mxu0 0
      %4070 = vmatmul.mubr.bf16.gmra.mrb[0].mxu0 %v3336
      %v4071 = vpop.f32.mrb[0].mxu0
      %v4072 = vadd.f32 %v3427, %v4071
      %v4073 = vpop.f32.mrb[0].mxu0
      %v4074 = vadd.f32 %v3431, %v4073
      %v4075 = vpop.f32.mrb[0].mxu0
      %v4076 = vadd.f32 %v3427, %v4075
      %v4077 = vpop.f32.mrb[0].mxu0
      %v4078 = vadd.f32 %v3431, %v4077
      %4079 = vmatprep.mubr.bf16.mxu0 0
      %4080 = vmatmul.mubr.bf16.gmra.mrb[0].mxu0 %v3337
      %v4081 = vpop.f32.mrb[0].mxu0
      %v4082 = vadd.f32 %v3427, %v4081
      %v4083 = vpop.f32.mrb[0].mxu0
      %v4084 = vadd.f32 %v3431, %v4083
      %v4085 = vpop.f32.mrb[0].mxu0
      %v4086 = vadd.f32 %v3427, %v4085
      %v4087 = vpop.f32.mrb[0].mxu0
      %v4088 = vadd.f32 %v3431, %v4087
      %4089 = vmatprep.mubr.bf16.mxu0 0
      %4090 = vmatmul.mubr.bf16.gmra.mrb[0].mxu0 %v3338
      %v4091 = vpop.f32.mrb[0].mxu0
      %v4092 = vadd.f32 %v3427, %v4091
      %v4093 = vpop.f32.mrb[0].mxu0
      %v4094 = vadd.f32 %v3431, %v4093
      %v4095 = vpop.f32.mrb[0].mxu0
      %v4096 = vadd.f32 %v3427, %v4095
      %v4097 = vpop.f32.mrb[0].mxu0
      %v4098 = vadd.f32 %v3431, %v4097
      %4099 = vmatprep.mubr.bf16.mxu0 0
      %4100 = vmatmul.mubr.bf16.gmra.mrb[0].mxu0 %v3339
      %v4101 = vpop.f32.mrb[0].mxu0
      %v4102 = vadd.f32 %v3427, %v4101
      %v4103 = vpop.f32.mrb[0].mxu0
      %v4104 = vadd.f32 %v3431, %v4103
      %v4105 = vpop.f32.mrb[0].mxu0
      %v4106 = vadd.f32 %v3427, %v4105
      %v4107 = vpop.f32.mrb[0].mxu0
      %v4108 = vadd.f32 %v3431, %v4107
      %4109 = vmatprep.mubr.bf16.mxu0 0
      %4110 = vmatmul.mubr.bf16.gmra.mrb[0].mxu0 %v3340
      %v4111 = vpop.f32.mrb[0].mxu0
      %v4112 = vadd.f32 %v3427, %v4111
      %v4113 = vpop.f32.mrb[0].mxu0
      %v4114 = vadd.f32 %v3431, %v4113
      %v4115 = vpop.f32.mrb[0].mxu0
      %v4116 = vadd.f32 %v3427, %v4115
      %v4117 = vpop.f32.mrb[0].mxu0
      %v4118 = vadd.f32 %v3431, %v4117
      %4119 = vmatprep.mubr.bf16.mxu0 0
      %4120 = vmatmul.mubr.bf16.gmra.mrb[0].mxu0 %v3341
      %v4121 = vpop.f32.mrb[0].mxu0
      %v4122 = vadd.f32 %v3427, %v4121
      %v4123 = vpop.f32.mrb[0].mxu0
      %v4124 = vadd.f32 %v3431, %v4123
      %v4125 = vpop.f32.mrb[0].mxu0
      %v4126 = vadd.f32 %v3427, %v4125
      %v4127 = vpop.f32.mrb[0].mxu0
      %v4128 = vadd.f32 %v3431, %v4127
      %4129 = vdwg.mxu0
      %4130 = vmatprep.subr.bf16.mxu0 0
      %4131 = vmatpush1.bf16.msra.mxu0 %v3625
      %4132 = vmatprep.subr.bf16.mxu0 0
      %4133 = vmatpush1.bf16.msra.mxu0 %v3632
      %4134 = vmatprep.subr.bf16.mxu0 0
      %4135 = vmatpush1.bf16.msra.mxu0 %v3639
      %4136 = vmatprep.subr.bf16.mxu0 0
      %4137 = vmatpush1.bf16.msra.mxu0 %v3646
      %4138 = vmatprep.subr.bf16.mxu0 0
      %4139 = vmatpush1.bf16.msra.mxu0 %v3653
      %4140 = vmatprep.subr.bf16.mxu0 0
      %4141 = vmatpush1.bf16.msra.mxu0 %v3660
      %4142 = vmatprep.subr.bf16.mxu0 0
      %4143 = vmatpush1.bf16.msra.mxu0 %v3667
      %4144 = vmatprep.subr.bf16.mxu0 0
      %4145 = vmatpush1.bf16.msra.mxu0 %v3674
      %4146 = vmatprep.subr.bf16.mxu0 0
      %4147 = vmatpush1.bf16.msra.mxu0 0
      %4148 = vmatprep.subr.bf16.mxu0 0
      %4149 = vmatpush1.bf16.msra.mxu0 0
      %4150 = vmatprep.subr.bf16.mxu0 0
      %4151 = vmatpush1.bf16.msra.mxu0 0
      %4152 = vmatprep.subr.bf16.mxu0 0
      %4153 = vmatpush1.bf16.msra.mxu0 0
      %4154 = vmatprep.subr.bf16.mxu0 0
      %4155 = vmatpush1.bf16.msra.mxu0 0
      %4156 = vmatprep.subr.bf16.mxu0 0
      %4157 = vmatpush1.bf16.msra.mxu0 0
      %4158 = vmatprep.subr.bf16.mxu0 0
      %4159 = vmatpush1.bf16.msra.mxu0 0
      %4160 = vmatprep.subr.bf16.mxu0 0
      %4161 = vmatpush1.bf16.msra.mxu0 0
      %4162 = vmatprep.mubr.bf16.mxu0 0
      %4163 = vmatmul.mubr.bf16.gmra.mrb[0].mxu0 %v3332
      %v4164 = vpop.f32.mrb[0].mxu0
      %v4165 = vadd.f32 %v3435, %v4164
      %v4166 = vpop.f32.mrb[0].mxu0
      %v4167 = vpop.f32.mrb[0].mxu0
      %v4168 = vadd.f32 %v3435, %v4167
      %v4169 = vpop.f32.mrb[0].mxu0
      %4170 = vmatprep.mubr.bf16.mxu0 0
      %4171 = vmatmul.mubr.bf16.gmra.mrb[0].mxu0 %v3333
      %v4172 = vpop.f32.mrb[0].mxu0
      %v4173 = vadd.f32 %v3435, %v4172
      %v4174 = vpop.f32.mrb[0].mxu0
      %v4175 = vpop.f32.mrb[0].mxu0
      %v4176 = vadd.f32 %v3435, %v4175
      %v4177 = vpop.f32.mrb[0].mxu0
      %4178 = vmatprep.mubr.bf16.mxu0 0
      %4179 = vmatmul.mubr.bf16.gmra.mrb[0].mxu0 %v3334
      %v4180 = vpop.f32.mrb[0].mxu0
      %v4181 = vadd.f32 %v3435, %v4180
      %v4182 = vpop.f32.mrb[0].mxu0
      %v4183 = vpop.f32.mrb[0].mxu0
      %v4184 = vadd.f32 %v3435, %v4183
      %v4185 = vpop.f32.mrb[0].mxu0
      %4186 = vmatprep.mubr.bf16.mxu0 0
      %4187 = vmatmul.mubr.bf16.gmra.mrb[0].mxu0 %v3335
      %v4188 = vpop.f32.mrb[0].mxu0
      %v4189 = vadd.f32 %v3435, %v4188
      %v4190 = vpop.f32.mrb[0].mxu0
      %v4191 = vpop.f32.mrb[0].mxu0
      %v4192 = vadd.f32 %v3435, %v4191
      %v4193 = vpop.f32.mrb[0].mxu0
      %4194 = vmatprep.mubr.bf16.mxu0 0
      %4195 = vmatmul.mubr.bf16.gmra.mrb[0].mxu0 %v3336
      %v4196 = vpop.f32.mrb[0].mxu0
      %v4197 = vadd.f32 %v3435, %v4196
      %v4198 = vpop.f32.mrb[0].mxu0
      %v4199 = vpop.f32.mrb[0].mxu0
      %v4200 = vadd.f32 %v3435, %v4199
      %v4201 = vpop.f32.mrb[0].mxu0
      %4202 = vmatprep.mubr.bf16.mxu0 0
      %4203 = vmatmul.mubr.bf16.gmra.mrb[0].mxu0 %v3337
      %v4204 = vpop.f32.mrb[0].mxu0
      %v4205 = vadd.f32 %v3435, %v4204
      %v4206 = vpop.f32.mrb[0].mxu0
      %v4207 = vpop.f32.mrb[0].mxu0
      %v4208 = vadd.f32 %v3435, %v4207
      %v4209 = vpop.f32.mrb[0].mxu0
      %4210 = vmatprep.mubr.bf16.mxu0 0
      %4211 = vmatmul.mubr.bf16.gmra.mrb[0].mxu0 %v3338
      %v4212 = vpop.f32.mrb[0].mxu0
      %v4213 = vadd.f32 %v3435, %v4212
      %v4214 = vpop.f32.mrb[0].mxu0
      %v4215 = vpop.f32.mrb[0].mxu0
      %v4216 = vadd.f32 %v3435, %v4215
      %v4217 = vpop.f32.mrb[0].mxu0
      %4218 = vmatprep.mubr.bf16.mxu0 0
      %4219 = vmatmul.mubr.bf16.gmra.mrb[0].mxu0 %v3339
      %v4220 = vpop.f32.mrb[0].mxu0
      %v4221 = vadd.f32 %v3435, %v4220
      %v4222 = vpop.f32.mrb[0].mxu0
      %v4223 = vpop.f32.mrb[0].mxu0
      %v4224 = vadd.f32 %v3435, %v4223
      %v4225 = vpop.f32.mrb[0].mxu0
      %4226 = vmatprep.mubr.bf16.mxu0 0
      %4227 = vmatmul.mubr.bf16.gmra.mrb[0].mxu0 %v3340
      %v4228 = vpop.f32.mrb[0].mxu0
      %v4229 = vadd.f32 %v3435, %v4228
      %v4230 = vpop.f32.mrb[0].mxu0
      %v4231 = vpop.f32.mrb[0].mxu0
      %v4232 = vadd.f32 %v3435, %v4231
      %v4233 = vpop.f32.mrb[0].mxu0
      %4234 = vmatprep.mubr.bf16.mxu0 0
      %4235 = vmatmul.mubr.bf16.gmra.mrb[0].mxu0 %v3341
      %v4236 = vpop.f32.mrb[0].mxu0
      %v4237 = vadd.f32 %v3435, %v4236
      %v4238 = vpop.f32.mrb[0].mxu0
      %v4239 = vpop.f32.mrb[0].mxu0
      %v4240 = vadd.f32 %v3435, %v4239
      %v4241 = vpop.f32.mrb[0].mxu0
      %4242 = vdwg.mxu0
      %v4243 = vxor.u32 %v3766, 2147483648
      %v4244 = vxor.u32 %v3768, 2147483648
      %v4245 = vxor.u32 %v3899, 2147483648
      %v4246 = vxor.u32 %v3901, 2147483648
      %v4247 = vxor.u32 %v4032, 2147483648
      %v4248 = vxor.u32 %v4034, 2147483648
      %v4249 = vxor.u32 %v4165, 2147483648
      %v4250 = vxor.u32 %v3770, 2147483648
      %v4251 = vxor.u32 %v3772, 2147483648
      %v4252 = vxor.u32 %v3903, 2147483648
      %v4253 = vxor.u32 %v3905, 2147483648
      %v4254 = vxor.u32 %v4036, 2147483648
      %v4255 = vxor.u32 %v4038, 2147483648
      %v4256 = vxor.u32 %v4168, 2147483648
      %v4257 = vxor.u32 %v3776, 2147483648
      %v4258 = vxor.u32 %v3778, 2147483648
      %v4259 = vxor.u32 %v3909, 2147483648
      %v4260 = vxor.u32 %v3911, 2147483648
      %v4261 = vxor.u32 %v4042, 2147483648
      %v4262 = vxor.u32 %v4044, 2147483648
      %v4263 = vxor.u32 %v4173, 2147483648
      %v4264 = vxor.u32 %v3780, 2147483648
      %v4265 = vxor.u32 %v3782, 2147483648
      %v4266 = vxor.u32 %v3913, 2147483648
      %v4267 = vxor.u32 %v3915, 2147483648
      %v4268 = vxor.u32 %v4046, 2147483648
      %v4269 = vxor.u32 %v4048, 2147483648
      %v4270 = vxor.u32 %v4176, 2147483648
      %v4271 = vxor.u32 %v3786, 2147483648
      %v4272 = vxor.u32 %v3788, 2147483648
      %v4273 = vxor.u32 %v3919, 2147483648
      %v4274 = vxor.u32 %v3921, 2147483648
      %v4275 = vxor.u32 %v4052, 2147483648
      %v4276 = vxor.u32 %v4054, 2147483648
      %v4277 = vxor.u32 %v4181, 2147483648
      %v4278 = vxor.u32 %v3790, 2147483648
      %v4279 = vxor.u32 %v3792, 2147483648
      %v4280 = vxor.u32 %v3923, 2147483648
      %v4281 = vxor.u32 %v3925, 2147483648
      %v4282 = vxor.u32 %v4056, 2147483648
      %v4283 = vxor.u32 %v4058, 2147483648
      %v4284 = vxor.u32 %v4184, 2147483648
      %v4285 = vxor.u32 %v3796, 2147483648
      %v4286 = vxor.u32 %v3798, 2147483648
      %v4287 = vxor.u32 %v3929, 2147483648
      %v4288 = vxor.u32 %v3931, 2147483648
      %v4289 = vxor.u32 %v4062, 2147483648
      %v4290 = vxor.u32 %v4064, 2147483648
      %v4291 = vxor.u32 %v4189, 2147483648
      %v4292 = vxor.u32 %v3800, 2147483648
      %v4293 = vxor.u32 %v3802, 2147483648
      %v4294 = vxor.u32 %v3933, 2147483648
      %v4295 = vxor.u32 %v3935, 2147483648
      %v4296 = vxor.u32 %v4066, 2147483648
      %v4297 = vxor.u32 %v4068, 2147483648
      %v4298 = vxor.u32 %v4192, 2147483648
      %v4299 = vxor.u32 %v3806, 2147483648
      %v4300 = vxor.u32 %v3808, 2147483648
      %v4301 = vxor.u32 %v3939, 2147483648
      %v4302 = vxor.u32 %v3941, 2147483648
      %v4303 = vxor.u32 %v4072, 2147483648
      %v4304 = vxor.u32 %v4074, 2147483648
      %v4305 = vxor.u32 %v4197, 2147483648
      %v4306 = vxor.u32 %v3810, 2147483648
      %v4307 = vxor.u32 %v3812, 2147483648
      %v4308 = vxor.u32 %v3943, 2147483648
      %v4309 = vxor.u32 %v3945, 2147483648
      %v4310 = vxor.u32 %v4076, 2147483648
      %v4311 = vxor.u32 %v4078, 2147483648
      %v4312 = vxor.u32 %v4200, 2147483648
      %v4313 = vxor.u32 %v3816, 2147483648
      %v4314 = vxor.u32 %v3818, 2147483648
      %v4315 = vxor.u32 %v3949, 2147483648
      %v4316 = vxor.u32 %v3951, 2147483648
      %v4317 = vxor.u32 %v4082, 2147483648
      %v4318 = vxor.u32 %v4084, 2147483648
      %v4319 = vxor.u32 %v4205, 2147483648
      %v4320 = vxor.u32 %v3820, 2147483648
      %v4321 = vxor.u32 %v3822, 2147483648
      %v4322 = vxor.u32 %v3953, 2147483648
      %v4323 = vxor.u32 %v3955, 2147483648
      %v4324 = vxor.u32 %v4086, 2147483648
      %v4325 = vxor.u32 %v4088, 2147483648
      %v4326 = vxor.u32 %v4208, 2147483648
      %v4327 = vxor.u32 %v3826, 2147483648
      %v4328 = vxor.u32 %v3828, 2147483648
      %v4329 = vxor.u32 %v3959, 2147483648
      %v4330 = vxor.u32 %v3961, 2147483648
      %v4331 = vxor.u32 %v4092, 2147483648
      %v4332 = vxor.u32 %v4094, 2147483648
      %v4333 = vxor.u32 %v4213, 2147483648
      %v4334 = vxor.u32 %v3830, 2147483648
      %v4335 = vxor.u32 %v3832, 2147483648
      %v4336 = vxor.u32 %v3963, 2147483648
      %v4337 = vxor.u32 %v3965, 2147483648
      %v4338 = vxor.u32 %v4096, 2147483648
      %v4339 = vxor.u32 %v4098, 2147483648
      %v4340 = vxor.u32 %v4216, 2147483648
      %v4341 = vxor.u32 %v3836, 2147483648
      %v4342 = vxor.u32 %v3838, 2147483648
      %v4343 = vxor.u32 %v3969, 2147483648
      %v4344 = vxor.u32 %v3971, 2147483648
      %v4345 = vxor.u32 %v4102, 2147483648
      %v4346 = vxor.u32 %v4104, 2147483648
      %v4347 = vxor.u32 %v4221, 2147483648
      %v4348 = vxor.u32 %v3840, 2147483648
      %v4349 = vxor.u32 %v3842, 2147483648
      %v4350 = vxor.u32 %v3973, 2147483648
      %v4351 = vxor.u32 %v3975, 2147483648
      %v4352 = vxor.u32 %v4106, 2147483648
      %v4353 = vxor.u32 %v4108, 2147483648
      %v4354 = vxor.u32 %v4224, 2147483648
      %v4355 = vxor.u32 %v3846, 2147483648
      %v4356 = vxor.u32 %v3848, 2147483648
      %v4357 = vxor.u32 %v3979, 2147483648
      %v4358 = vxor.u32 %v3981, 2147483648
      %v4359 = vxor.u32 %v4112, 2147483648
      %v4360 = vxor.u32 %v4114, 2147483648
      %v4361 = vxor.u32 %v4229, 2147483648
      %v4362 = vxor.u32 %v3850, 2147483648
      %v4363 = vxor.u32 %v3852, 2147483648
      %v4364 = vxor.u32 %v3983, 2147483648
      %v4365 = vxor.u32 %v3985, 2147483648
      %v4366 = vxor.u32 %v4116, 2147483648
      %v4367 = vxor.u32 %v4118, 2147483648
      %v4368 = vxor.u32 %v4232, 2147483648
      %v4369 = vxor.u32 %v3856, 2147483648
      %v4370 = vxor.u32 %v3858, 2147483648
      %v4371 = vxor.u32 %v3989, 2147483648
      %v4372 = vxor.u32 %v3991, 2147483648
      %v4373 = vxor.u32 %v4122, 2147483648
      %v4374 = vxor.u32 %v4124, 2147483648
      %v4375 = vxor.u32 %v4237, 2147483648
      %v4376 = vxor.u32 %v3860, 2147483648
      %v4377 = vxor.u32 %v3862, 2147483648
      %v4378 = vxor.u32 %v3993, 2147483648
      %v4379 = vxor.u32 %v3995, 2147483648
      %v4380 = vxor.u32 %v4126, 2147483648
      %v4381 = vxor.u32 %v4128, 2147483648
      %v4382 = vxor.u32 %v4240, 2147483648
      %v4383 = vmul.f32 %v4243, 1.442695
      %v4384 = vpow.pop %v4383
      %v4385 = vmul.f32 %v4244, 1.442695
      %v4386 = vpow.pop %v4385
      %v4387 = vmul.f32 %v4245, 1.442695
      %v4388 = vpow.pop %v4387
      %v4389 = vmul.f32 %v4246, 1.442695
      %v4390 = vpow.pop %v4389
      %v4391 = vmul.f32 %v4247, 1.442695
      %v4392 = vpow.pop %v4391
      %v4393 = vmul.f32 %v4248, 1.442695
      %v4394 = vpow.pop %v4393
      %v4395 = vmul.f32 %v4249, 1.442695
      %v4396 = vpow.pop %v4395
      %v4397 = vmul.f32 %v4250, 1.442695
      %v4398 = vpow.pop %v4397
      %v4399 = vmul.f32 %v4251, 1.442695
      %v4400 = vpow.pop %v4399
      %v4401 = vmul.f32 %v4252, 1.442695
      %v4402 = vpow.pop %v4401
      %v4403 = vmul.f32 %v4253, 1.442695
      %v4404 = vpow.pop %v4403
      %v4405 = vmul.f32 %v4254, 1.442695
      %v4406 = vpow.pop %v4405
      %v4407 = vmul.f32 %v4255, 1.442695
      %v4408 = vpow.pop %v4407
      %v4409 = vmul.f32 %v4256, 1.442695
      %v4410 = vpow.pop %v4409
      %v4411 = vmul.f32 %v4257, 1.442695
      %v4412 = vpow.pop %v4411
      %v4413 = vmul.f32 %v4258, 1.442695
      %v4414 = vpow.pop %v4413
      %v4415 = vmul.f32 %v4259, 1.442695
      %v4416 = vpow.pop %v4415
      %v4417 = vmul.f32 %v4260, 1.442695
      %v4418 = vpow.pop %v4417
      %v4419 = vmul.f32 %v4261, 1.442695
      %v4420 = vpow.pop %v4419
      %v4421 = vmul.f32 %v4262, 1.442695
      %v4422 = vpow.pop %v4421
      %v4423 = vmul.f32 %v4263, 1.442695
      %v4424 = vpow.pop %v4423
      %v4425 = vmul.f32 %v4264, 1.442695
      %v4426 = vpow.pop %v4425
      %v4427 = vmul.f32 %v4265, 1.442695
      %v4428 = vpow.pop %v4427
      %v4429 = vmul.f32 %v4266, 1.442695
      %v4430 = vpow.pop %v4429
      %v4431 = vmul.f32 %v4267, 1.442695
      %v4432 = vpow.pop %v4431
      %v4433 = vmul.f32 %v4268, 1.442695
      %v4434 = vpow.pop %v4433
      %v4435 = vmul.f32 %v4269, 1.442695
      %v4436 = vpow.pop %v4435
      %v4437 = vmul.f32 %v4270, 1.442695
      %v4438 = vpow.pop %v4437
      %v4439 = vmul.f32 %v4271, 1.442695
      %v4440 = vpow.pop %v4439
      %v4441 = vmul.f32 %v4272, 1.442695
      %v4442 = vpow.pop %v4441
      %v4443 = vmul.f32 %v4273, 1.442695
      %v4444 = vpow.pop %v4443
      %v4445 = vmul.f32 %v4274, 1.442695
      %v4446 = vpow.pop %v4445
      %v4447 = vmul.f32 %v4275, 1.442695
      %v4448 = vpow.pop %v4447
      %v4449 = vmul.f32 %v4276, 1.442695
      %v4450 = vpow.pop %v4449
      %v4451 = vmul.f32 %v4277, 1.442695
      %v4452 = vpow.pop %v4451
      %v4453 = vmul.f32 %v4278, 1.442695
      %v4454 = vpow.pop %v4453
      %v4455 = vmul.f32 %v4279, 1.442695
      %v4456 = vpow.pop %v4455
      %v4457 = vmul.f32 %v4280, 1.442695
      %v4458 = vpow.pop %v4457
      %v4459 = vmul.f32 %v4281, 1.442695
      %v4460 = vpow.pop %v4459
      %v4461 = vmul.f32 %v4282, 1.442695
      %v4462 = vpow.pop %v4461
      %v4463 = vmul.f32 %v4283, 1.442695
      %v4464 = vpow.pop %v4463
      %v4465 = vmul.f32 %v4284, 1.442695
      %v4466 = vpow.pop %v4465
      %v4467 = vmul.f32 %v4285, 1.442695
      %v4468 = vpow.pop %v4467
      %v4469 = vmul.f32 %v4286, 1.442695
      %v4470 = vpow.pop %v4469
      %v4471 = vmul.f32 %v4287, 1.442695
      %v4472 = vpow.pop %v4471
      %v4473 = vmul.f32 %v4288, 1.442695
      %v4474 = vpow.pop %v4473
      %v4475 = vmul.f32 %v4289, 1.442695
      %v4476 = vpow.pop %v4475
      %v4477 = vmul.f32 %v4290, 1.442695
      %v4478 = vpow.pop %v4477
      %v4479 = vmul.f32 %v4291, 1.442695
      %v4480 = vpow.pop %v4479
      %v4481 = vmul.f32 %v4292, 1.442695
      %v4482 = vpow.pop %v4481
      %v4483 = vmul.f32 %v4293, 1.442695
      %v4484 = vpow.pop %v4483
      %v4485 = vmul.f32 %v4294, 1.442695
      %v4486 = vpow.pop %v4485
      %v4487 = vmul.f32 %v4295, 1.442695
      %v4488 = vpow.pop %v4487
      %v4489 = vmul.f32 %v4296, 1.442695
      %v4490 = vpow.pop %v4489
      %v4491 = vmul.f32 %v4297, 1.442695
      %v4492 = vpow.pop %v4491
      %v4493 = vmul.f32 %v4298, 1.442695
      %v4494 = vpow.pop %v4493
      %v4495 = vmul.f32 %v4299, 1.442695
      %v4496 = vpow.pop %v4495
      %v4497 = vmul.f32 %v4300, 1.442695
      %v4498 = vpow.pop %v4497
      %v4499 = vmul.f32 %v4301, 1.442695
      %v4500 = vpow.pop %v4499
      %v4501 = vmul.f32 %v4302, 1.442695
      %v4502 = vpow.pop %v4501
      %v4503 = vmul.f32 %v4303, 1.442695
      %v4504 = vpow.pop %v4503
      %v4505 = vmul.f32 %v4304, 1.442695
      %v4506 = vpow.pop %v4505
      %v4507 = vmul.f32 %v4305, 1.442695
      %v4508 = vpow.pop %v4507
      %v4509 = vmul.f32 %v4306, 1.442695
      %v4510 = vpow.pop %v4509
      %v4511 = vmul.f32 %v4307, 1.442695
      %v4512 = vpow.pop %v4511
      %v4513 = vmul.f32 %v4308, 1.442695
      %v4514 = vpow.pop %v4513
      %v4515 = vmul.f32 %v4309, 1.442695
      %v4516 = vpow.pop %v4515
      %v4517 = vmul.f32 %v4310, 1.442695
      %v4518 = vpow.pop %v4517
      %v4519 = vmul.f32 %v4311, 1.442695
      %v4520 = vpow.pop %v4519
      %v4521 = vmul.f32 %v4312, 1.442695
      %v4522 = vpow.pop %v4521
      %v4523 = vmul.f32 %v4313, 1.442695
      %v4524 = vpow.pop %v4523
      %v4525 = vmul.f32 %v4314, 1.442695
      %v4526 = vpow.pop %v4525
      %v4527 = vmul.f32 %v4315, 1.442695
      %v4528 = vpow.pop %v4527
      %v4529 = vmul.f32 %v4316, 1.442695
      %v4530 = vpow.pop %v4529
      %v4531 = vmul.f32 %v4317, 1.442695
      %v4532 = vpow.pop %v4531
      %v4533 = vmul.f32 %v4318, 1.442695
      %v4534 = vpow.pop %v4533
      %v4535 = vmul.f32 %v4319, 1.442695
      %v4536 = vpow.pop %v4535
      %v4537 = vmul.f32 %v4320, 1.442695
      %v4538 = vpow.pop %v4537
      %v4539 = vmul.f32 %v4321, 1.442695
      %v4540 = vpow.pop %v4539
      %v4541 = vmul.f32 %v4322, 1.442695
      %v4542 = vpow.pop %v4541
      %v4543 = vmul.f32 %v4323, 1.442695
      %v4544 = vpow.pop %v4543
      %v4545 = vmul.f32 %v4324, 1.442695
      %v4546 = vpow.pop %v4545
      %v4547 = vmul.f32 %v4325, 1.442695
      %v4548 = vpow.pop %v4547
      %v4549 = vmul.f32 %v4326, 1.442695
      %v4550 = vpow.pop %v4549
      %v4551 = vmul.f32 %v4327, 1.442695
      %v4552 = vpow.pop %v4551
      %v4553 = vmul.f32 %v4328, 1.442695
      %v4554 = vpow.pop %v4553
      %v4555 = vmul.f32 %v4329, 1.442695
      %v4556 = vpow.pop %v4555
      %v4557 = vmul.f32 %v4330, 1.442695
      %v4558 = vpow.pop %v4557
      %v4559 = vmul.f32 %v4331, 1.442695
      %v4560 = vpow.pop %v4559
      %v4561 = vmul.f32 %v4332, 1.442695
      %v4562 = vpow.pop %v4561
      %v4563 = vmul.f32 %v4333, 1.442695
      %v4564 = vpow.pop %v4563
      %v4565 = vmul.f32 %v4334, 1.442695
      %v4566 = vpow.pop %v4565
      %v4567 = vmul.f32 %v4335, 1.442695
      %v4568 = vpow.pop %v4567
      %v4569 = vmul.f32 %v4336, 1.442695
      %v4570 = vpow.pop %v4569
      %v4571 = vmul.f32 %v4337, 1.442695
      %v4572 = vpow.pop %v4571
      %v4573 = vmul.f32 %v4338, 1.442695
      %v4574 = vpow.pop %v4573
      %v4575 = vmul.f32 %v4339, 1.442695
      %v4576 = vpow.pop %v4575
      %v4577 = vmul.f32 %v4340, 1.442695
      %v4578 = vpow.pop %v4577
      %v4579 = vmul.f32 %v4341, 1.442695
      %v4580 = vpow.pop %v4579
      %v4581 = vmul.f32 %v4342, 1.442695
      %v4582 = vpow.pop %v4581
      %v4583 = vmul.f32 %v4343, 1.442695
      %v4584 = vpow.pop %v4583
      %v4585 = vmul.f32 %v4344, 1.442695
      %v4586 = vpow.pop %v4585
      %v4587 = vmul.f32 %v4345, 1.442695
      %v4588 = vpow.pop %v4587
      %v4589 = vmul.f32 %v4346, 1.442695
      %v4590 = vpow.pop %v4589
      %v4591 = vmul.f32 %v4347, 1.442695
      %v4592 = vpow.pop %v4591
      %v4593 = vmul.f32 %v4348, 1.442695
      %v4594 = vpow.pop %v4593
      %v4595 = vmul.f32 %v4349, 1.442695
      %v4596 = vpow.pop %v4595
      %v4597 = vmul.f32 %v4350, 1.442695
      %v4598 = vpow.pop %v4597
      %v4599 = vmul.f32 %v4351, 1.442695
      %v4600 = vpow.pop %v4599
      %v4601 = vmul.f32 %v4352, 1.442695
      %v4602 = vpow.pop %v4601
      %v4603 = vmul.f32 %v4353, 1.442695
      %v4604 = vpow.pop %v4603
      %v4605 = vmul.f32 %v4354, 1.442695
      %v4606 = vpow.pop %v4605
      %v4607 = vmul.f32 %v4355, 1.442695
      %v4608 = vpow.pop %v4607
      %v4609 = vmul.f32 %v4356, 1.442695
      %v4610 = vpow.pop %v4609
      %v4611 = vmul.f32 %v4357, 1.442695
      %v4612 = vpow.pop %v4611
      %v4613 = vmul.f32 %v4358, 1.442695
      %v4614 = vpow.pop %v4613
      %v4615 = vmul.f32 %v4359, 1.442695
      %v4616 = vpow.pop %v4615
      %v4617 = vmul.f32 %v4360, 1.442695
      %v4618 = vpow.pop %v4617
      %v4619 = vmul.f32 %v4361, 1.442695
      %v4620 = vpow.pop %v4619
      %v4621 = vmul.f32 %v4362, 1.442695
      %v4622 = vpow.pop %v4621
      %v4623 = vmul.f32 %v4363, 1.442695
      %v4624 = vpow.pop %v4623
      %v4625 = vmul.f32 %v4364, 1.442695
      %v4626 = vpow.pop %v4625
      %v4627 = vmul.f32 %v4365, 1.442695
      %v4628 = vpow.pop %v4627
      %v4629 = vmul.f32 %v4366, 1.442695
      %v4630 = vpow.pop %v4629
      %v4631 = vmul.f32 %v4367, 1.442695
      %v4632 = vpow.pop %v4631
      %v4633 = vmul.f32 %v4368, 1.442695
      %v4634 = vpow.pop %v4633
      %v4635 = vmul.f32 %v4369, 1.442695
      %v4636 = vpow.pop %v4635
      %v4637 = vmul.f32 %v4370, 1.442695
      %v4638 = vpow.pop %v4637
      %v4639 = vmul.f32 %v4371, 1.442695
      %v4640 = vpow.pop %v4639
      %v4641 = vmul.f32 %v4372, 1.442695
      %v4642 = vpow.pop %v4641
      %v4643 = vmul.f32 %v4373, 1.442695
      %v4644 = vpow.pop %v4643
      %v4645 = vmul.f32 %v4374, 1.442695
      %v4646 = vpow.pop %v4645
      %v4647 = vmul.f32 %v4375, 1.442695
      %v4648 = vpow.pop %v4647
      %v4649 = vmul.f32 %v4376, 1.442695
      %v4650 = vpow.pop %v4649
      %v4651 = vmul.f32 %v4377, 1.442695
      %v4652 = vpow.pop %v4651
      %v4653 = vmul.f32 %v4378, 1.442695
      %v4654 = vpow.pop %v4653
      %v4655 = vmul.f32 %v4379, 1.442695
      %v4656 = vpow.pop %v4655
      %v4657 = vmul.f32 %v4380, 1.442695
      %v4658 = vpow.pop %v4657
      %v4659 = vmul.f32 %v4381, 1.442695
      %v4660 = vpow.pop %v4659
      %v4661 = vmul.f32 %v4382, 1.442695
      %v4662 = vpow.pop %v4661
      %v4663 = vadd.f32 %v4384, 1.0
      %v4664 = vadd.f32 %v4386, 1.0
      %v4665 = vadd.f32 %v4388, 1.0
      %v4666 = vadd.f32 %v4390, 1.0
      %v4667 = vadd.f32 %v4392, 1.0
      %v4668 = vadd.f32 %v4394, 1.0
      %v4669 = vadd.f32 %v4396, 1.0
      %v4670 = vadd.f32 %v4398, 1.0
      %v4671 = vadd.f32 %v4400, 1.0
      %v4672 = vadd.f32 %v4402, 1.0
      %v4673 = vadd.f32 %v4404, 1.0
      %v4674 = vadd.f32 %v4406, 1.0
      %v4675 = vadd.f32 %v4408, 1.0
      %v4676 = vadd.f32 %v4410, 1.0
      %v4677 = vadd.f32 %v4412, 1.0
      %v4678 = vadd.f32 %v4414, 1.0
      %v4679 = vadd.f32 %v4416, 1.0
      %v4680 = vadd.f32 %v4418, 1.0
      %v4681 = vadd.f32 %v4420, 1.0
      %v4682 = vadd.f32 %v4422, 1.0
      %v4683 = vadd.f32 %v4424, 1.0
      %v4684 = vadd.f32 %v4426, 1.0
      %v4685 = vadd.f32 %v4428, 1.0
      %v4686 = vadd.f32 %v4430, 1.0
      %v4687 = vadd.f32 %v4432, 1.0
      %v4688 = vadd.f32 %v4434, 1.0
      %v4689 = vadd.f32 %v4436, 1.0
      %v4690 = vadd.f32 %v4438, 1.0
      %v4691 = vadd.f32 %v4440, 1.0
      %v4692 = vadd.f32 %v4442, 1.0
      %v4693 = vadd.f32 %v4444, 1.0
      %v4694 = vadd.f32 %v4446, 1.0
      %v4695 = vadd.f32 %v4448, 1.0
      %v4696 = vadd.f32 %v4450, 1.0
      %v4697 = vadd.f32 %v4452, 1.0
      %v4698 = vadd.f32 %v4454, 1.0
      %v4699 = vadd.f32 %v4456, 1.0
      %v4700 = vadd.f32 %v4458, 1.0
      %v4701 = vadd.f32 %v4460, 1.0
      %v4702 = vadd.f32 %v4462, 1.0
      %v4703 = vadd.f32 %v4464, 1.0
      %v4704 = vadd.f32 %v4466, 1.0
      %v4705 = vadd.f32 %v4468, 1.0
      %v4706 = vadd.f32 %v4470, 1.0
      %v4707 = vadd.f32 %v4472, 1.0
      %v4708 = vadd.f32 %v4474, 1.0
      %v4709 = vadd.f32 %v4476, 1.0
      %v4710 = vadd.f32 %v4478, 1.0
      %v4711 = vadd.f32 %v4480, 1.0
      %v4712 = vadd.f32 %v4482, 1.0
      %v4713 = vadd.f32 %v4484, 1.0
      %v4714 = vadd.f32 %v4486, 1.0
      %v4715 = vadd.f32 %v4488, 1.0
      %v4716 = vadd.f32 %v4490, 1.0
      %v4717 = vadd.f32 %v4492, 1.0
      %v4718 = vadd.f32 %v4494, 1.0
      %v4719 = vadd.f32 %v4496, 1.0
      %v4720 = vadd.f32 %v4498, 1.0
      %v4721 = vadd.f32 %v4500, 1.0
      %v4722 = vadd.f32 %v4502, 1.0
      %v4723 = vadd.f32 %v4504, 1.0
      %v4724 = vadd.f32 %v4506, 1.0
      %v4725 = vadd.f32 %v4508, 1.0
      %v4726 = vadd.f32 %v4510, 1.0
      %v4727 = vadd.f32 %v4512, 1.0
      %v4728 = vadd.f32 %v4514, 1.0
      %v4729 = vadd.f32 %v4516, 1.0
      %v4730 = vadd.f32 %v4518, 1.0
      %v4731 = vadd.f32 %v4520, 1.0
      %v4732 = vadd.f32 %v4522, 1.0
      %v4733 = vadd.f32 %v4524, 1.0
      %v4734 = vadd.f32 %v4526, 1.0
      %v4735 = vadd.f32 %v4528, 1.0
      %v4736 = vadd.f32 %v4530, 1.0
      %v4737 = vadd.f32 %v4532, 1.0
      %v4738 = vadd.f32 %v4534, 1.0
      %v4739 = vadd.f32 %v4536, 1.0
      %v4740 = vadd.f32 %v4538, 1.0
      %v4741 = vadd.f32 %v4540, 1.0
      %v4742 = vadd.f32 %v4542, 1.0
      %v4743 = vadd.f32 %v4544, 1.0
      %v4744 = vadd.f32 %v4546, 1.0
      %v4745 = vadd.f32 %v4548, 1.0
      %v4746 = vadd.f32 %v4550, 1.0
      %v4747 = vadd.f32 %v4552, 1.0
      %v4748 = vadd.f32 %v4554, 1.0
      %v4749 = vadd.f32 %v4556, 1.0
      %v4750 = vadd.f32 %v4558, 1.0
      %v4751 = vadd.f32 %v4560, 1.0
      %v4752 = vadd.f32 %v4562, 1.0
      %v4753 = vadd.f32 %v4564, 1.0
      %v4754 = vadd.f32 %v4566, 1.0
      %v4755 = vadd.f32 %v4568, 1.0
      %v4756 = vadd.f32 %v4570, 1.0
      %v4757 = vadd.f32 %v4572, 1.0
      %v4758 = vadd.f32 %v4574, 1.0
      %v4759 = vadd.f32 %v4576, 1.0
      %v4760 = vadd.f32 %v4578, 1.0
      %v4761 = vadd.f32 %v4580, 1.0
      %v4762 = vadd.f32 %v4582, 1.0
      %v4763 = vadd.f32 %v4584, 1.0
      %v4764 = vadd.f32 %v4586, 1.0
      %v4765 = vadd.f32 %v4588, 1.0
      %v4766 = vadd.f32 %v4590, 1.0
      %v4767 = vadd.f32 %v4592, 1.0
      %v4768 = vadd.f32 %v4594, 1.0
      %v4769 = vadd.f32 %v4596, 1.0
      %v4770 = vadd.f32 %v4598, 1.0
      %v4771 = vadd.f32 %v4600, 1.0
      %v4772 = vadd.f32 %v4602, 1.0
      %v4773 = vadd.f32 %v4604, 1.0
      %v4774 = vadd.f32 %v4606, 1.0
      %v4775 = vadd.f32 %v4608, 1.0
      %v4776 = vadd.f32 %v4610, 1.0
      %v4777 = vadd.f32 %v4612, 1.0
      %v4778 = vadd.f32 %v4614, 1.0
      %v4779 = vadd.f32 %v4616, 1.0
      %v4780 = vadd.f32 %v4618, 1.0
      %v4781 = vadd.f32 %v4620, 1.0
      %v4782 = vadd.f32 %v4622, 1.0
      %v4783 = vadd.f32 %v4624, 1.0
      %v4784 = vadd.f32 %v4626, 1.0
      %v4785 = vadd.f32 %v4628, 1.0
      %v4786 = vadd.f32 %v4630, 1.0
      %v4787 = vadd.f32 %v4632, 1.0
      %v4788 = vadd.f32 %v4634, 1.0
      %v4789 = vadd.f32 %v4636, 1.0
      %v4790 = vadd.f32 %v4638, 1.0
      %v4791 = vadd.f32 %v4640, 1.0
      %v4792 = vadd.f32 %v4642, 1.0
      %v4793 = vadd.f32 %v4644, 1.0
      %v4794 = vadd.f32 %v4646, 1.0
      %v4795 = vadd.f32 %v4648, 1.0
      %v4796 = vadd.f32 %v4650, 1.0
      %v4797 = vadd.f32 %v4652, 1.0
      %v4798 = vadd.f32 %v4654, 1.0
      %v4799 = vadd.f32 %v4656, 1.0
      %v4800 = vadd.f32 %v4658, 1.0
      %v4801 = vadd.f32 %v4660, 1.0
      %v4802 = vadd.f32 %v4662, 1.0
      %v4803 = vrcp.pop %v4663
      %v4804 = vmul.f32 1.0, %v4803
      %v4805 = vrcp.pop %v4664
      %v4806 = vmul.f32 1.0, %v4805
      %v4807 = vrcp.pop %v4665
      %v4808 = vmul.f32 1.0, %v4807
      %v4809 = vrcp.pop %v4666
      %v4810 = vmul.f32 1.0, %v4809
      %v4811 = vrcp.pop %v4667
      %v4812 = vmul.f32 1.0, %v4811
      %v4813 = vrcp.pop %v4668
      %v4814 = vmul.f32 1.0, %v4813
      %v4815 = vrcp.pop %v4669
      %v4816 = vmul.f32 1.0, %v4815
      %v4817 = vrcp.pop %v4670
      %v4818 = vmul.f32 1.0, %v4817
      %v4819 = vrcp.pop %v4671
      %v4820 = vmul.f32 1.0, %v4819
      %v4821 = vrcp.pop %v4672
      %v4822 = vmul.f32 1.0, %v4821
      %v4823 = vrcp.pop %v4673
      %v4824 = vmul.f32 1.0, %v4823
      %v4825 = vrcp.pop %v4674
      %v4826 = vmul.f32 1.0, %v4825
      %v4827 = vrcp.pop %v4675
      %v4828 = vmul.f32 1.0, %v4827
      %v4829 = vrcp.pop %v4676
      %v4830 = vmul.f32 1.0, %v4829
      %v4831 = vrcp.pop %v4677
      %v4832 = vmul.f32 1.0, %v4831
      %v4833 = vrcp.pop %v4678
      %v4834 = vmul.f32 1.0, %v4833
      %v4835 = vrcp.pop %v4679
      %v4836 = vmul.f32 1.0, %v4835
      %v4837 = vrcp.pop %v4680
      %v4838 = vmul.f32 1.0, %v4837
      %v4839 = vrcp.pop %v4681
      %v4840 = vmul.f32 1.0, %v4839
      %v4841 = vrcp.pop %v4682
      %v4842 = vmul.f32 1.0, %v4841
      %v4843 = vrcp.pop %v4683
      %v4844 = vmul.f32 1.0, %v4843
      %v4845 = vrcp.pop %v4684
      %v4846 = vmul.f32 1.0, %v4845
      %v4847 = vrcp.pop %v4685
      %v4848 = vmul.f32 1.0, %v4847
      %v4849 = vrcp.pop %v4686
      %v4850 = vmul.f32 1.0, %v4849
      %v4851 = vrcp.pop %v4687
      %v4852 = vmul.f32 1.0, %v4851
      %v4853 = vrcp.pop %v4688
      %v4854 = vmul.f32 1.0, %v4853
      %v4855 = vrcp.pop %v4689
      %v4856 = vmul.f32 1.0, %v4855
      %v4857 = vrcp.pop %v4690
      %v4858 = vmul.f32 1.0, %v4857
      %v4859 = vrcp.pop %v4691
      %v4860 = vmul.f32 1.0, %v4859
      %v4861 = vrcp.pop %v4692
      %v4862 = vmul.f32 1.0, %v4861
      %v4863 = vrcp.pop %v4693
      %v4864 = vmul.f32 1.0, %v4863
      %v4865 = vrcp.pop %v4694
      %v4866 = vmul.f32 1.0, %v4865
      %v4867 = vrcp.pop %v4695
      %v4868 = vmul.f32 1.0, %v4867
      %v4869 = vrcp.pop %v4696
      %v4870 = vmul.f32 1.0, %v4869
      %v4871 = vrcp.pop %v4697
      %v4872 = vmul.f32 1.0, %v4871
      %v4873 = vrcp.pop %v4698
      %v4874 = vmul.f32 1.0, %v4873
      %v4875 = vrcp.pop %v4699
      %v4876 = vmul.f32 1.0, %v4875
      %v4877 = vrcp.pop %v4700
      %v4878 = vmul.f32 1.0, %v4877
      %v4879 = vrcp.pop %v4701
      %v4880 = vmul.f32 1.0, %v4879
      %v4881 = vrcp.pop %v4702
      %v4882 = vmul.f32 1.0, %v4881
      %v4883 = vrcp.pop %v4703
      %v4884 = vmul.f32 1.0, %v4883
      %v4885 = vrcp.pop %v4704
      %v4886 = vmul.f32 1.0, %v4885
      %v4887 = vrcp.pop %v4705
      %v4888 = vmul.f32 1.0, %v4887
      %v4889 = vrcp.pop %v4706
      %v4890 = vmul.f32 1.0, %v4889
      %v4891 = vrcp.pop %v4707
      %v4892 = vmul.f32 1.0, %v4891
      %v4893 = vrcp.pop %v4708
      %v4894 = vmul.f32 1.0, %v4893
      %v4895 = vrcp.pop %v4709
      %v4896 = vmul.f32 1.0, %v4895
      %v4897 = vrcp.pop %v4710
      %v4898 = vmul.f32 1.0, %v4897
      %v4899 = vrcp.pop %v4711
      %v4900 = vmul.f32 1.0, %v4899
      %v4901 = vrcp.pop %v4712
      %v4902 = vmul.f32 1.0, %v4901
      %v4903 = vrcp.pop %v4713
      %v4904 = vmul.f32 1.0, %v4903
      %v4905 = vrcp.pop %v4714
      %v4906 = vmul.f32 1.0, %v4905
      %v4907 = vrcp.pop %v4715
      %v4908 = vmul.f32 1.0, %v4907
      %v4909 = vrcp.pop %v4716
      %v4910 = vmul.f32 1.0, %v4909
      %v4911 = vrcp.pop %v4717
      %v4912 = vmul.f32 1.0, %v4911
      %v4913 = vrcp.pop %v4718
      %v4914 = vmul.f32 1.0, %v4913
      %v4915 = vrcp.pop %v4719
      %v4916 = vmul.f32 1.0, %v4915
      %v4917 = vrcp.pop %v4720
      %v4918 = vmul.f32 1.0, %v4917
      %v4919 = vrcp.pop %v4721
      %v4920 = vmul.f32 1.0, %v4919
      %v4921 = vrcp.pop %v4722
      %v4922 = vmul.f32 1.0, %v4921
      %v4923 = vrcp.pop %v4723
      %v4924 = vmul.f32 1.0, %v4923
      %v4925 = vrcp.pop %v4724
      %v4926 = vmul.f32 1.0, %v4925
      %v4927 = vrcp.pop %v4725
      %v4928 = vmul.f32 1.0, %v4927
      %v4929 = vrcp.pop %v4726
      %v4930 = vmul.f32 1.0, %v4929
      %v4931 = vrcp.pop %v4727
      %v4932 = vmul.f32 1.0, %v4931
      %v4933 = vrcp.pop %v4728
      %v4934 = vmul.f32 1.0, %v4933
      %v4935 = vrcp.pop %v4729
      %v4936 = vmul.f32 1.0, %v4935
      %v4937 = vrcp.pop %v4730
      %v4938 = vmul.f32 1.0, %v4937
      %v4939 = vrcp.pop %v4731
      %v4940 = vmul.f32 1.0, %v4939
      %v4941 = vrcp.pop %v4732
      %v4942 = vmul.f32 1.0, %v4941
      %v4943 = vrcp.pop %v4733
      %v4944 = vmul.f32 1.0, %v4943
      %v4945 = vrcp.pop %v4734
      %v4946 = vmul.f32 1.0, %v4945
      %v4947 = vrcp.pop %v4735
      %v4948 = vmul.f32 1.0, %v4947
      %v4949 = vrcp.pop %v4736
      %v4950 = vmul.f32 1.0, %v4949
      %v4951 = vrcp.pop %v4737
      %v4952 = vmul.f32 1.0, %v4951
      %v4953 = vrcp.pop %v4738
      %v4954 = vmul.f32 1.0, %v4953
      %v4955 = vrcp.pop %v4739
      %v4956 = vmul.f32 1.0, %v4955
      %v4957 = vrcp.pop %v4740
      %v4958 = vmul.f32 1.0, %v4957
      %v4959 = vrcp.pop %v4741
      %v4960 = vmul.f32 1.0, %v4959
      %v4961 = vrcp.pop %v4742
      %v4962 = vmul.f32 1.0, %v4961
      %v4963 = vrcp.pop %v4743
      %v4964 = vmul.f32 1.0, %v4963
      %v4965 = vrcp.pop %v4744
      %v4966 = vmul.f32 1.0, %v4965
      %v4967 = vrcp.pop %v4745
      %v4968 = vmul.f32 1.0, %v4967
      %v4969 = vrcp.pop %v4746
      %v4970 = vmul.f32 1.0, %v4969
      %v4971 = vrcp.pop %v4747
      %v4972 = vmul.f32 1.0, %v4971
      %v4973 = vrcp.pop %v4748
      %v4974 = vmul.f32 1.0, %v4973
      %v4975 = vrcp.pop %v4749
      %v4976 = vmul.f32 1.0, %v4975
      %v4977 = vrcp.pop %v4750
      %v4978 = vmul.f32 1.0, %v4977
      %v4979 = vrcp.pop %v4751
      %v4980 = vmul.f32 1.0, %v4979
      %v4981 = vrcp.pop %v4752
      %v4982 = vmul.f32 1.0, %v4981
      %v4983 = vrcp.pop %v4753
      %v4984 = vmul.f32 1.0, %v4983
      %v4985 = vrcp.pop %v4754
      %v4986 = vmul.f32 1.0, %v4985
      %v4987 = vrcp.pop %v4755
      %v4988 = vmul.f32 1.0, %v4987
      %v4989 = vrcp.pop %v4756
      %v4990 = vmul.f32 1.0, %v4989
      %v4991 = vrcp.pop %v4757
      %v4992 = vmul.f32 1.0, %v4991
      %v4993 = vrcp.pop %v4758
      %v4994 = vmul.f32 1.0, %v4993
      %v4995 = vrcp.pop %v4759
      %v4996 = vmul.f32 1.0, %v4995
      %v4997 = vrcp.pop %v4760
      %v4998 = vmul.f32 1.0, %v4997
      %v4999 = vrcp.pop %v4761
      %v5000 = vmul.f32 1.0, %v4999
      %v5001 = vrcp.pop %v4762
      %v5002 = vmul.f32 1.0, %v5001
      %v5003 = vrcp.pop %v4763
      %v5004 = vmul.f32 1.0, %v5003
      %v5005 = vrcp.pop %v4764
      %v5006 = vmul.f32 1.0, %v5005
      %v5007 = vrcp.pop %v4765
      %v5008 = vmul.f32 1.0, %v5007
      %v5009 = vrcp.pop %v4766
      %v5010 = vmul.f32 1.0, %v5009
      %v5011 = vrcp.pop %v4767
      %v5012 = vmul.f32 1.0, %v5011
      %v5013 = vrcp.pop %v4768
      %v5014 = vmul.f32 1.0, %v5013
      %v5015 = vrcp.pop %v4769
      %v5016 = vmul.f32 1.0, %v5015
      %v5017 = vrcp.pop %v4770
      %v5018 = vmul.f32 1.0, %v5017
      %v5019 = vrcp.pop %v4771
      %v5020 = vmul.f32 1.0, %v5019
      %v5021 = vrcp.pop %v4772
      %v5022 = vmul.f32 1.0, %v5021
      %v5023 = vrcp.pop %v4773
      %v5024 = vmul.f32 1.0, %v5023
      %v5025 = vrcp.pop %v4774
      %v5026 = vmul.f32 1.0, %v5025
      %v5027 = vrcp.pop %v4775
      %v5028 = vmul.f32 1.0, %v5027
      %v5029 = vrcp.pop %v4776
      %v5030 = vmul.f32 1.0, %v5029
      %v5031 = vrcp.pop %v4777
      %v5032 = vmul.f32 1.0, %v5031
      %v5033 = vrcp.pop %v4778
      %v5034 = vmul.f32 1.0, %v5033
      %v5035 = vrcp.pop %v4779
      %v5036 = vmul.f32 1.0, %v5035
      %v5037 = vrcp.pop %v4780
      %v5038 = vmul.f32 1.0, %v5037
      %v5039 = vrcp.pop %v4781
      %v5040 = vmul.f32 1.0, %v5039
      %v5041 = vrcp.pop %v4782
      %v5042 = vmul.f32 1.0, %v5041
      %v5043 = vrcp.pop %v4783
      %v5044 = vmul.f32 1.0, %v5043
      %v5045 = vrcp.pop %v4784
      %v5046 = vmul.f32 1.0, %v5045
      %v5047 = vrcp.pop %v4785
      %v5048 = vmul.f32 1.0, %v5047
      %v5049 = vrcp.pop %v4786
      %v5050 = vmul.f32 1.0, %v5049
      %v5051 = vrcp.pop %v4787
      %v5052 = vmul.f32 1.0, %v5051
      %v5053 = vrcp.pop %v4788
      %v5054 = vmul.f32 1.0, %v5053
      %v5055 = vrcp.pop %v4789
      %v5056 = vmul.f32 1.0, %v5055
      %v5057 = vrcp.pop %v4790
      %v5058 = vmul.f32 1.0, %v5057
      %v5059 = vrcp.pop %v4791
      %v5060 = vmul.f32 1.0, %v5059
      %v5061 = vrcp.pop %v4792
      %v5062 = vmul.f32 1.0, %v5061
      %v5063 = vrcp.pop %v4793
      %v5064 = vmul.f32 1.0, %v5063
      %v5065 = vrcp.pop %v4794
      %v5066 = vmul.f32 1.0, %v5065
      %v5067 = vrcp.pop %v4795
      %v5068 = vmul.f32 1.0, %v5067
      %v5069 = vrcp.pop %v4796
      %v5070 = vmul.f32 1.0, %v5069
      %v5071 = vrcp.pop %v4797
      %v5072 = vmul.f32 1.0, %v5071
      %v5073 = vrcp.pop %v4798
      %v5074 = vmul.f32 1.0, %v5073
      %v5075 = vrcp.pop %v4799
      %v5076 = vmul.f32 1.0, %v5075
      %v5077 = vrcp.pop %v4800
      %v5078 = vmul.f32 1.0, %v5077
      %v5079 = vrcp.pop %v4801
      %v5080 = vmul.f32 1.0, %v5079
      %v5081 = vrcp.pop %v4802
      %v5082 = vmul.f32 1.0, %v5081
      %v5083 = vpack.c.bf16 %v4818, %v4804
      %v5084 = vpack.c.bf16 %v4820, %v4806
      %v5085 = vpack.c.bf16 %v4822, %v4808
      %v5086 = vpack.c.bf16 %v4824, %v4810
      %v5087 = vpack.c.bf16 %v4826, %v4812
      %v5088 = vpack.c.bf16 %v4828, %v4814
      %v5089 = vpack.c.bf16 %v4830, %v4816
      %v5090 = vpack.c.bf16 %v4846, %v4832
      %v5091 = vpack.c.bf16 %v4848, %v4834
      %v5092 = vpack.c.bf16 %v4850, %v4836
      %v5093 = vpack.c.bf16 %v4852, %v4838
      %v5094 = vpack.c.bf16 %v4854, %v4840
      %v5095 = vpack.c.bf16 %v4856, %v4842
      %v5096 = vpack.c.bf16 %v4858, %v4844
      %v5097 = vpack.c.bf16 %v4874, %v4860
      %v5098 = vpack.c.bf16 %v4876, %v4862
      %v5099 = vpack.c.bf16 %v4878, %v4864
      %v5100 = vpack.c.bf16 %v4880, %v4866
      %v5101 = vpack.c.bf16 %v4882, %v4868
      %v5102 = vpack.c.bf16 %v4884, %v4870
      %v5103 = vpack.c.bf16 %v4886, %v4872
      %v5104 = vpack.c.bf16 %v4902, %v4888
      %v5105 = vpack.c.bf16 %v4904, %v4890
      %v5106 = vpack.c.bf16 %v4906, %v4892
      %v5107 = vpack.c.bf16 %v4908, %v4894
      %v5108 = vpack.c.bf16 %v4910, %v4896
      %v5109 = vpack.c.bf16 %v4912, %v4898
      %v5110 = vpack.c.bf16 %v4914, %v4900
      %v5111 = vpack.c.bf16 %v4930, %v4916
      %v5112 = vpack.c.bf16 %v4932, %v4918
      %v5113 = vpack.c.bf16 %v4934, %v4920
      %v5114 = vpack.c.bf16 %v4936, %v4922
      %v5115 = vpack.c.bf16 %v4938, %v4924
      %v5116 = vpack.c.bf16 %v4940, %v4926
      %v5117 = vpack.c.bf16 %v4942, %v4928
      %v5118 = vpack.c.bf16 %v4958, %v4944
      %v5119 = vpack.c.bf16 %v4960, %v4946
      %v5120 = vpack.c.bf16 %v4962, %v4948
      %v5121 = vpack.c.bf16 %v4964, %v4950
      %v5122 = vpack.c.bf16 %v4966, %v4952
      %v5123 = vpack.c.bf16 %v4968, %v4954
      %v5124 = vpack.c.bf16 %v4970, %v4956
      %v5125 = vpack.c.bf16 %v4986, %v4972
      %v5126 = vpack.c.bf16 %v4988, %v4974
      %v5127 = vpack.c.bf16 %v4990, %v4976
      %v5128 = vpack.c.bf16 %v4992, %v4978
      %v5129 = vpack.c.bf16 %v4994, %v4980
      %v5130 = vpack.c.bf16 %v4996, %v4982
      %v5131 = vpack.c.bf16 %v4998, %v4984
      %v5132 = vpack.c.bf16 %v5014, %v5000
      %v5133 = vpack.c.bf16 %v5016, %v5002
      %v5134 = vpack.c.bf16 %v5018, %v5004
      %v5135 = vpack.c.bf16 %v5020, %v5006
      %v5136 = vpack.c.bf16 %v5022, %v5008
      %v5137 = vpack.c.bf16 %v5024, %v5010
      %v5138 = vpack.c.bf16 %v5026, %v5012
      %v5139 = vpack.c.bf16 %v5042, %v5028
      %v5140 = vpack.c.bf16 %v5044, %v5030
      %v5141 = vpack.c.bf16 %v5046, %v5032
      %v5142 = vpack.c.bf16 %v5048, %v5034
      %v5143 = vpack.c.bf16 %v5050, %v5036
      %v5144 = vpack.c.bf16 %v5052, %v5038
      %v5145 = vpack.c.bf16 %v5054, %v5040
      %v5146 = vpack.c.bf16 %v5070, %v5056
      %v5147 = vpack.c.bf16 %v5072, %v5058
      %v5148 = vpack.c.bf16 %v5074, %v5060
      %v5149 = vpack.c.bf16 %v5076, %v5062
      %v5150 = vpack.c.bf16 %v5078, %v5064
      %v5151 = vpack.c.bf16 %v5080, %v5066
      %v5152 = vpack.c.bf16 %v5082, %v5068
      %v5223 = vunpack.c.l.b16 %v5083
      %v5224 = vunpack.c.l.b16 %v5084
      %v5225 = vunpack.c.l.b16 %v5085
      %v5226 = vunpack.c.l.b16 %v5086
      %v5227 = vunpack.c.l.b16 %v5087
      %v5228 = vunpack.c.l.b16 %v5088
      %v5229 = vunpack.c.l.b16 %v5089
      %v5230 = vunpack.c.h.b16 %v5083
      %v5231 = vunpack.c.h.b16 %v5084
      %v5232 = vunpack.c.h.b16 %v5085
      %v5233 = vunpack.c.h.b16 %v5086
      %v5234 = vunpack.c.h.b16 %v5087
      %v5235 = vunpack.c.h.b16 %v5088
      %v5236 = vunpack.c.h.b16 %v5089
      %v5237 = vunpack.c.l.b16 %v5090
      %v5238 = vunpack.c.l.b16 %v5091
      %v5239 = vunpack.c.l.b16 %v5092
      %v5240 = vunpack.c.l.b16 %v5093
      %v5241 = vunpack.c.l.b16 %v5094
      %v5242 = vunpack.c.l.b16 %v5095
      %v5243 = vunpack.c.l.b16 %v5096
      %v5244 = vunpack.c.h.b16 %v5090
      %v5245 = vunpack.c.h.b16 %v5091
      %v5246 = vunpack.c.h.b16 %v5092
      %v5247 = vunpack.c.h.b16 %v5093
      %v5248 = vunpack.c.h.b16 %v5094
      %v5249 = vunpack.c.h.b16 %v5095
      %v5250 = vunpack.c.h.b16 %v5096
      %v5251 = vunpack.c.l.b16 %v5097
      %v5252 = vunpack.c.l.b16 %v5098
      %v5253 = vunpack.c.l.b16 %v5099
      %v5254 = vunpack.c.l.b16 %v5100
      %v5255 = vunpack.c.l.b16 %v5101
      %v5256 = vunpack.c.l.b16 %v5102
      %v5257 = vunpack.c.l.b16 %v5103
      %v5258 = vunpack.c.h.b16 %v5097
      %v5259 = vunpack.c.h.b16 %v5098
      %v5260 = vunpack.c.h.b16 %v5099
      %v5261 = vunpack.c.h.b16 %v5100
      %v5262 = vunpack.c.h.b16 %v5101
      %v5263 = vunpack.c.h.b16 %v5102
      %v5264 = vunpack.c.h.b16 %v5103
      %v5265 = vunpack.c.l.b16 %v5104
      %v5266 = vunpack.c.l.b16 %v5105
      %v5267 = vunpack.c.l.b16 %v5106
      %v5268 = vunpack.c.l.b16 %v5107
      %v5269 = vunpack.c.l.b16 %v5108
      %v5270 = vunpack.c.l.b16 %v5109
      %v5271 = vunpack.c.l.b16 %v5110
      %v5272 = vunpack.c.h.b16 %v5104
      %v5273 = vunpack.c.h.b16 %v5105
      %v5274 = vunpack.c.h.b16 %v5106
      %v5275 = vunpack.c.h.b16 %v5107
      %v5276 = vunpack.c.h.b16 %v5108
      %v5277 = vunpack.c.h.b16 %v5109
      %v5278 = vunpack.c.h.b16 %v5110
      %v5279 = vunpack.c.l.b16 %v5111
      %v5280 = vunpack.c.l.b16 %v5112
      %v5281 = vunpack.c.l.b16 %v5113
      %v5282 = vunpack.c.l.b16 %v5114
      %v5283 = vunpack.c.l.b16 %v5115
      %v5284 = vunpack.c.l.b16 %v5116
      %v5285 = vunpack.c.l.b16 %v5117
      %v5286 = vunpack.c.h.b16 %v5111
      %v5287 = vunpack.c.h.b16 %v5112
      %v5288 = vunpack.c.h.b16 %v5113
      %v5289 = vunpack.c.h.b16 %v5114
      %v5290 = vunpack.c.h.b16 %v5115
      %v5291 = vunpack.c.h.b16 %v5116
      %v5292 = vunpack.c.h.b16 %v5117
      %v5293 = vunpack.c.l.b16 %v5118
      %v5294 = vunpack.c.l.b16 %v5119
      %v5295 = vunpack.c.l.b16 %v5120
      %v5296 = vunpack.c.l.b16 %v5121
      %v5297 = vunpack.c.l.b16 %v5122
      %v5298 = vunpack.c.l.b16 %v5123
      %v5299 = vunpack.c.l.b16 %v5124
      %v5300 = vunpack.c.h.b16 %v5118
      %v5301 = vunpack.c.h.b16 %v5119
      %v5302 = vunpack.c.h.b16 %v5120
      %v5303 = vunpack.c.h.b16 %v5121
      %v5304 = vunpack.c.h.b16 %v5122
      %v5305 = vunpack.c.h.b16 %v5123
      %v5306 = vunpack.c.h.b16 %v5124
      %v5307 = vunpack.c.l.b16 %v5125
      %v5308 = vunpack.c.l.b16 %v5126
      %v5309 = vunpack.c.l.b16 %v5127
      %v5310 = vunpack.c.l.b16 %v5128
      %v5311 = vunpack.c.l.b16 %v5129
      %v5312 = vunpack.c.l.b16 %v5130
      %v5313 = vunpack.c.l.b16 %v5131
      %v5314 = vunpack.c.h.b16 %v5125
      %v5315 = vunpack.c.h.b16 %v5126
      %v5316 = vunpack.c.h.b16 %v5127
      %v5317 = vunpack.c.h.b16 %v5128
      %v5318 = vunpack.c.h.b16 %v5129
      %v5319 = vunpack.c.h.b16 %v5130
      %v5320 = vunpack.c.h.b16 %v5131
      %v5321 = vunpack.c.l.b16 %v5132
      %v5322 = vunpack.c.l.b16 %v5133
      %v5323 = vunpack.c.l.b16 %v5134
      %v5324 = vunpack.c.l.b16 %v5135
      %v5325 = vunpack.c.l.b16 %v5136
      %v5326 = vunpack.c.l.b16 %v5137
      %v5327 = vunpack.c.l.b16 %v5138
      %v5328 = vunpack.c.h.b16 %v5132
      %v5329 = vunpack.c.h.b16 %v5133
      %v5330 = vunpack.c.h.b16 %v5134
      %v5331 = vunpack.c.h.b16 %v5135
      %v5332 = vunpack.c.h.b16 %v5136
      %v5333 = vunpack.c.h.b16 %v5137
      %v5334 = vunpack.c.h.b16 %v5138
      %v5335 = vunpack.c.l.b16 %v5139
      %v5336 = vunpack.c.l.b16 %v5140
      %v5337 = vunpack.c.l.b16 %v5141
      %v5338 = vunpack.c.l.b16 %v5142
      %v5339 = vunpack.c.l.b16 %v5143
      %v5340 = vunpack.c.l.b16 %v5144
      %v5341 = vunpack.c.l.b16 %v5145
      %v5342 = vunpack.c.h.b16 %v5139
      %v5343 = vunpack.c.h.b16 %v5140
      %v5344 = vunpack.c.h.b16 %v5141
      %v5345 = vunpack.c.h.b16 %v5142
      %v5346 = vunpack.c.h.b16 %v5143
      %v5347 = vunpack.c.h.b16 %v5144
      %v5348 = vunpack.c.h.b16 %v5145
      %v5349 = vunpack.c.l.b16 %v5146
      %v5350 = vunpack.c.l.b16 %v5147
      %v5351 = vunpack.c.l.b16 %v5148
      %v5352 = vunpack.c.l.b16 %v5149
      %v5353 = vunpack.c.l.b16 %v5150
      %v5354 = vunpack.c.l.b16 %v5151
      %v5355 = vunpack.c.l.b16 %v5152
      %v5356 = vunpack.c.h.b16 %v5146
      %v5357 = vunpack.c.h.b16 %v5147
      %v5358 = vunpack.c.h.b16 %v5148
      %v5359 = vunpack.c.h.b16 %v5149
      %v5360 = vunpack.c.h.b16 %v5150
      %v5361 = vunpack.c.h.b16 %v5151
      %v5362 = vunpack.c.h.b16 %v5152
      %v5363 = vpack.c.b16 %v5224, %v5223
      %v5364 = vpack.c.b16 %v5226, %v5225
      %v5365 = vpack.c.b16 %v5228, %v5227
      %v5366 = vpack.c.b16 %v5229, %v5229
      %v5367 = vpack.c.b16 %v5231, %v5230
      %v5368 = vpack.c.b16 %v5233, %v5232
      %v5369 = vpack.c.b16 %v5235, %v5234
      %v5370 = vpack.c.b16 %v5236, %v5236
      %v5371 = vpack.c.b16 %v5238, %v5237
      %v5372 = vpack.c.b16 %v5240, %v5239
      %v5373 = vpack.c.b16 %v5242, %v5241
      %v5374 = vpack.c.b16 %v5243, %v5243
      %v5375 = vpack.c.b16 %v5245, %v5244
      %v5376 = vpack.c.b16 %v5247, %v5246
      %v5377 = vpack.c.b16 %v5249, %v5248
      %v5378 = vpack.c.b16 %v5250, %v5250
      %v5379 = vpack.c.b16 %v5252, %v5251
      %v5380 = vpack.c.b16 %v5254, %v5253
      %v5381 = vpack.c.b16 %v5256, %v5255
      %v5382 = vpack.c.b16 %v5257, %v5257
      %v5383 = vpack.c.b16 %v5259, %v5258
      %v5384 = vpack.c.b16 %v5261, %v5260
      %v5385 = vpack.c.b16 %v5263, %v5262
      %v5386 = vpack.c.b16 %v5264, %v5264
      %v5387 = vpack.c.b16 %v5266, %v5265
      %v5388 = vpack.c.b16 %v5268, %v5267
      %v5389 = vpack.c.b16 %v5270, %v5269
      %v5390 = vpack.c.b16 %v5271, %v5271
      %v5391 = vpack.c.b16 %v5273, %v5272
      %v5392 = vpack.c.b16 %v5275, %v5274
      %v5393 = vpack.c.b16 %v5277, %v5276
      %v5394 = vpack.c.b16 %v5278, %v5278
      %v5395 = vpack.c.b16 %v5280, %v5279
      %v5396 = vpack.c.b16 %v5282, %v5281
      %v5397 = vpack.c.b16 %v5284, %v5283
      %v5398 = vpack.c.b16 %v5285, %v5285
      %v5399 = vpack.c.b16 %v5287, %v5286
      %v5400 = vpack.c.b16 %v5289, %v5288
      %v5401 = vpack.c.b16 %v5291, %v5290
      %v5402 = vpack.c.b16 %v5292, %v5292
      %v5403 = vpack.c.b16 %v5294, %v5293
      %v5404 = vpack.c.b16 %v5296, %v5295
      %v5405 = vpack.c.b16 %v5298, %v5297
      %v5406 = vpack.c.b16 %v5299, %v5299
      %v5407 = vpack.c.b16 %v5301, %v5300
      %v5408 = vpack.c.b16 %v5303, %v5302
      %v5409 = vpack.c.b16 %v5305, %v5304
      %v5410 = vpack.c.b16 %v5306, %v5306
      %v5411 = vpack.c.b16 %v5308, %v5307
      %v5412 = vpack.c.b16 %v5310, %v5309
      %v5413 = vpack.c.b16 %v5312, %v5311
      %v5414 = vpack.c.b16 %v5313, %v5313
      %v5415 = vpack.c.b16 %v5315, %v5314
      %v5416 = vpack.c.b16 %v5317, %v5316
      %v5417 = vpack.c.b16 %v5319, %v5318
      %v5418 = vpack.c.b16 %v5320, %v5320
      %v5419 = vpack.c.b16 %v5322, %v5321
      %v5420 = vpack.c.b16 %v5324, %v5323
      %v5421 = vpack.c.b16 %v5326, %v5325
      %v5422 = vpack.c.b16 %v5327, %v5327
      %v5423 = vpack.c.b16 %v5329, %v5328
      %v5424 = vpack.c.b16 %v5331, %v5330
      %v5425 = vpack.c.b16 %v5333, %v5332
      %v5426 = vpack.c.b16 %v5334, %v5334
      %v5427 = vpack.c.b16 %v5336, %v5335
      %v5428 = vpack.c.b16 %v5338, %v5337
      %v5429 = vpack.c.b16 %v5340, %v5339
      %v5430 = vpack.c.b16 %v5341, %v5341
      %v5431 = vpack.c.b16 %v5343, %v5342
      %v5432 = vpack.c.b16 %v5345, %v5344
      %v5433 = vpack.c.b16 %v5347, %v5346
      %v5434 = vpack.c.b16 %v5348, %v5348
      %v5435 = vpack.c.b16 %v5350, %v5349
      %v5436 = vpack.c.b16 %v5352, %v5351
      %v5437 = vpack.c.b16 %v5354, %v5353
      %v5438 = vpack.c.b16 %v5355, %v5355
      %v5439 = vpack.c.b16 %v5357, %v5356
      %v5440 = vpack.c.b16 %v5359, %v5358
      %v5441 = vpack.c.b16 %v5361, %v5360
      %v5442 = vpack.c.b16 %v5362, %v5362
      %5523 = vst [vmem:[%s596] sm:$0xff] %v5363
      %5524 = vst [vmem:[%s596 + $0x8] sm:$0xff] %v5364
      %5525 = vst [vmem:[%s596 + $0x10] sm:$0xff] %v5365
      %vm5526 = vcmask 125952
      %5527 = vst.msk [vmem:[%s596 + $0x18] sm:$0xf] %vm5526, %v5366
      %5528 = vst [vmem:[%s596 + $0x1c] sm:$0xff] %v5367
      %5529 = vst [vmem:[%s596 + $0x24] sm:$0xff] %v5368
      %5530 = vst [vmem:[%s596 + $0x2c] sm:$0xff] %v5369
      %5531 = vst.msk [vmem:[%s596 + $0x34] sm:$0xf] %vm5526, %v5370
      %5532 = vst [vmem:[%s596 + $0x38] sm:$0xff] %v5371
      %5533 = vst [vmem:[%s596 + $0x40] sm:$0xff] %v5372
      %5534 = vst [vmem:[%s596 + $0x48] sm:$0xff] %v5373
      %5535 = vst.msk [vmem:[%s596 + $0x50] sm:$0xf] %vm5526, %v5374
      %5536 = vst [vmem:[%s596 + $0x54] sm:$0xff] %v5375
      %5537 = vst [vmem:[%s596 + $0x5c] sm:$0xff] %v5376
      %5538 = vst [vmem:[%s596 + $0x64] sm:$0xff] %v5377
      %5539 = vst.msk [vmem:[%s596 + $0x6c] sm:$0xf] %vm5526, %v5378
      %5540 = vst [vmem:[%s596 + $0x70] sm:$0xff] %v5379
      %5541 = vst [vmem:[%s596 + $0x78] sm:$0xff] %v5380
      %5542 = vst [vmem:[%s596 + $0x80] sm:$0xff] %v5381
      %5543 = vst.msk [vmem:[%s596 + $0x88] sm:$0xf] %vm5526, %v5382
      %5544 = vst [vmem:[%s596 + $0x8c] sm:$0xff] %v5383
      %5545 = vst [vmem:[%s596 + $0x94] sm:$0xff] %v5384
      %5546 = vst [vmem:[%s596 + $0x9c] sm:$0xff] %v5385
      %5547 = vst.msk [vmem:[%s596 + $0xa4] sm:$0xf] %vm5526, %v5386
      %5548 = vst [vmem:[%s596 + $0xa8] sm:$0xff] %v5387
      %5549 = vst [vmem:[%s596 + $0xb0] sm:$0xff] %v5388
      %5550 = vst [vmem:[%s596 + $0xb8] sm:$0xff] %v5389
      %5551 = vst.msk [vmem:[%s596 + $0xc0] sm:$0xf] %vm5526, %v5390
      %5552 = vst [vmem:[%s596 + $0xc4] sm:$0xff] %v5391
      %5553 = vst [vmem:[%s596 + $0xcc] sm:$0xff] %v5392
      %5554 = vst [vmem:[%s596 + $0xd4] sm:$0xff] %v5393
      %5555 = vst.msk [vmem:[%s596 + $0xdc] sm:$0xf] %vm5526, %v5394
      %5556 = vst [vmem:[%s596 + $0xe0] sm:$0xff] %v5395
      %5557 = vst [vmem:[%s596 + $0xe8] sm:$0xff] %v5396
      %5558 = vst [vmem:[%s596 + $0xf0] sm:$0xff] %v5397
      %5559 = vst.msk [vmem:[%s596 + $0xf8] sm:$0xf] %vm5526, %v5398
      %5560 = vst [vmem:[%s596 + $0xfc] sm:$0xff] %v5399
      %5561 = vst [vmem:[%s596 + $0x104] sm:$0xff] %v5400
      %5562 = vst [vmem:[%s596 + $0x10c] sm:$0xff] %v5401
      %5563 = vst.msk [vmem:[%s596 + $0x114] sm:$0xf] %vm5526, %v5402
      %5564 = vst [vmem:[%s596 + $0x118] sm:$0xff] %v5403
      %5565 = vst [vmem:[%s596 + $0x120] sm:$0xff] %v5404
      %5566 = vst [vmem:[%s596 + $0x128] sm:$0xff] %v5405
      %5567 = vst.msk [vmem:[%s596 + $0x130] sm:$0xf] %vm5526, %v5406
      %5568 = vst [vmem:[%s596 + $0x134] sm:$0xff] %v5407
      %5569 = vst [vmem:[%s596 + $0x13c] sm:$0xff] %v5408
      %5570 = vst [vmem:[%s596 + $0x144] sm:$0xff] %v5409
      %5571 = vst.msk [vmem:[%s596 + $0x14c] sm:$0xf] %vm5526, %v5410
      %5572 = vst [vmem:[%s596 + $0x150] sm:$0xff] %v5411
      %5573 = vst [vmem:[%s596 + $0x158] sm:$0xff] %v5412
      %5574 = vst [vmem:[%s596 + $0x160] sm:$0xff] %v5413
      %5575 = vst.msk [vmem:[%s596 + $0x168] sm:$0xf] %vm5526, %v5414
      %5576 = vst [vmem:[%s596 + $0x16c] sm:$0xff] %v5415
      %5577 = vst [vmem:[%s596 + $0x174] sm:$0xff] %v5416
      %5578 = vst [vmem:[%s596 + $0x17c] sm:$0xff] %v5417
      %5579 = vst.msk [vmem:[%s596 + $0x184] sm:$0xf] %vm5526, %v5418
      %5580 = vst [vmem:[%s596 + $0x188] sm:$0xff] %v5419
      %5581 = vst [vmem:[%s596 + $0x190] sm:$0xff] %v5420
      %5582 = vst [vmem:[%s596 + $0x198] sm:$0xff] %v5421
      %5583 = vst.msk [vmem:[%s596 + $0x1a0] sm:$0xf] %vm5526, %v5422
      %5584 = vst [vmem:[%s596 + $0x1a4] sm:$0xff] %v5423
      %5585 = vst [vmem:[%s596 + $0x1ac] sm:$0xff] %v5424
      %5586 = vst [vmem:[%s596 + $0x1b4] sm:$0xff] %v5425
      %5587 = vst.msk [vmem:[%s596 + $0x1bc] sm:$0xf] %vm5526, %v5426
      %5588 = vst [vmem:[%s596 + $0x1c0] sm:$0xff] %v5427
      %5589 = vst [vmem:[%s596 + $0x1c8] sm:$0xff] %v5428
      %5590 = vst [vmem:[%s596 + $0x1d0] sm:$0xff] %v5429
      %5591 = vst.msk [vmem:[%s596 + $0x1d8] sm:$0xf] %vm5526, %v5430
      %5592 = vst [vmem:[%s596 + $0x1dc] sm:$0xff] %v5431
      %5593 = vst [vmem:[%s596 + $0x1e4] sm:$0xff] %v5432
      %5594 = vst [vmem:[%s596 + $0x1ec] sm:$0xff] %v5433
      %5595 = vst.msk [vmem:[%s596 + $0x1f4] sm:$0xf] %vm5526, %v5434
      %5596 = vst [vmem:[%s596 + $0x1f8] sm:$0xff] %v5435
      %5597 = vst [vmem:[%s596 + $0x200] sm:$0xff] %v5436
      %5598 = vst [vmem:[%s596 + $0x208] sm:$0xff] %v5437
      %5599 = vst.msk [vmem:[%s596 + $0x210] sm:$0xf] %vm5526, %v5438
      %5600 = vst [vmem:[%s596 + $0x214] sm:$0xff] %v5439
      %5601 = vst [vmem:[%s596 + $0x21c] sm:$0xff] %v5440
      %5602 = vst [vmem:[%s596 + $0x224] sm:$0xff] %v5441
      %5603 = vst.msk [vmem:[%s596 + $0x22c] sm:$0xf] %vm5526, %v5442
      %s5604 = smul.u32 20, %s30
      %p5605 = scmp.lt.s32.totalorder %s5604, 39
      %s5606 = scalar_select %p5605, %s5604, 39
      %s5607 = smul.addr %s5606, 8
      %s5608 = scalar_lea.vmem %s17, %s5607
      %s5609 = smul.u32 20, %s30
      %p5610 = scmp.lt.s32.totalorder %s5609, 39
      %s5611 = scalar_select %p5610, %s5609, 39
      %s5612 = smul.addr %s5611, 7
      %s5613 = smul.addr %s5612, 4
      %s5614 = scalar_lea.vmem %s18, %s5613
      // Predicated region
      $region89: #{autoencoder_forward.1} parent=87 // pred_check
        %p5615 = pneg %p410
      $region90: #{autoencoder_forward.1} parent=87 // pred_check_branch
        %5617 = sbr.rel (%p5615) target = $region92
      $region91: #{autoencoder_forward.1} parent=87 // pred_region
        %s5618 = smul.u32 20, %s30
      $region92: #{autoencoder_forward.1} parent=87 // pred_fallthru
        _
      // Predicated region
      $region93: #{autoencoder_forward.1} parent=87 // pred_check
        %p5619 = pneg %p436
      $region94: #{autoencoder_forward.1} parent=87 // pred_check_branch
        %5621 = sbr.rel (%p5619) target = $region96
      $region95: #{autoencoder_forward.1} parent=87 // pred_region
        %s5622 = smul.u32 20, %s30
      $region96: #{autoencoder_forward.1} parent=87 // pred_fallthru
        _
    $region88: #{autoencoder_forward.1} parent=5 // pred_fallthru
      _
    %p5623 = scmp.le.s32.totalorder 2, %s25
    // Predicated region
    $region97: #{autoencoder_forward.1} parent=5 // pred_check
      %p5624 = pneg %p5623
    $region98: #{autoencoder_forward.1} parent=5 // pred_check_branch
      %5626 = sbr.rel (%p5624) target = $region100
    $region99: #{autoencoder_forward.1} parent=5 // pred_region
      %s5627 = ssub.s32 %s25, 2
      // Predicated region
      $region101: #{autoencoder_forward.1} parent=99 // pred_check
        %p5628 = pneg %p416
      $region102: #{autoencoder_forward.1} parent=99 // pred_check_branch
        %5630 = sbr.rel (%p5628) target = $region104
      $region103: #{autoencoder_forward.1} parent=99 // pred_region
        %s5631 = smul.u32 20, %s31
        %p5632 = scmp.lt.s32.totalorder %s5631, 39
        %s5633 = scalar_select %p5632, %s5631, 39
        %s5634 = smul.addr %s5633, 8
        %s5635 = scalar_lea.vmem %s17, %s5634
      $region104: #{autoencoder_forward.1} parent=99 // pred_fallthru
        _
      // Predicated region
      $region105: #{autoencoder_forward.1} parent=99 // pred_check
        %p5636 = pneg %p442
      $region106: #{autoencoder_forward.1} parent=99 // pred_check_branch
        %5638 = sbr.rel (%p5636) target = $region108
      $region107: #{autoencoder_forward.1} parent=99 // pred_region
        %s5639 = smul.u32 20, %s31
        %p5640 = scmp.lt.s32.totalorder %s5639, 39
        %s5641 = scalar_select %p5640, %s5639, 39
        %s5642 = smul.addr %s5641, 7
        %s5643 = smul.addr %s5642, 4
        %s5644 = scalar_lea.vmem %s18, %s5643
      $region108: #{autoencoder_forward.1} parent=99 // pred_fallthru
        _
    $region100: #{autoencoder_forward.1} parent=5 // pred_fallthru
      _
  $region6: #{autoencoder_forward.1} parent=0 // loop_footer
    %s29 = sadd.s32 1, %s25
  $region7: #{autoencoder_forward.1} parent=0 // loop_footer_branch
    %24 = sbr.rel target = $region3
  $region8: #{autoencoder_forward.1} parent=0 // loop_exit
    _

</llo_original>
